<compile_context>
chip_gen: v7x
topology: tpu7x:2x2x1
jax: 0.10.0
libtpu: 0.0.40
codegen_flags: <defaults>
</compile_context>

<pallas_src>
import math

import jax
import jax.numpy as jnp
from jax.experimental import pallas as pl
from jax.experimental.pallas import tpu as pltpu


# ----------------------------------------------------------------------------
# Fused kernel: bi-GRU encoder  ->  Bahdanau attention  ->  GRU decoder
# ----------------------------------------------------------------------------
def encdec_kernel(
    emb_ref,      # (S, B, E)  time-major embedded tokens
    mask_ref,     # (S, B)     int32 (1 = keep, 0 = pad)
    ef_wih_ref, ef_whh_ref, ef_bih_ref, ef_bhh_ref,         # enc fwd GRU
    eb_wih_ref, eb_whh_ref, eb_bih_ref, eb_bhh_ref,         # enc bwd GRU
    at_wx_ref, at_wh_ref, at_b_ref, at_vs_ref, at_bvs_ref,  # attention
    de_wih_ref, de_whh_ref, de_bih_ref, de_bhh_ref,         # decoder GRU
    x_out_ref,    # (B, H)  decoder output at t == 0
    hid_out_ref,  # (B, H)  final decoder hidden state
    gi_f_scr,     # VMEM (3, S, B, H)  enc-fwd gate inputs [r,z,n]
    gi_b_scr,     # VMEM (3, S, B, H)  enc-bwd gate inputs
    gi_d_scr,     # VMEM (3, S, B, H)  decoder gate inputs
    enc_f_scr,    # VMEM (S, B, H)     fwd encoder outputs
    enc_b_scr,    # VMEM (S, B, H)     bwd encoder outputs
):
    S, B = mask_ref.shape
    E = emb_ref.shape[-1]
    H = x_out_ref.shape[-1]
    f32 = jnp.float32

    # --- Hoisted input projections: ONE flattened big-M matmul per GRU -------
    emb_flat = emb_ref[...].reshape(S * B, E)
    gf = (jnp.dot(emb_flat, ef_wih_ref[...], preferred_element_type=f32)
          + ef_bih_ref[...]).reshape(S, B, 3 * H)
    gb = (jnp.dot(emb_flat, eb_wih_ref[...], preferred_element_type=f32)
          + eb_bih_ref[...]).reshape(S, B, 3 * H)
    # Gate-split once, OFF the serial path; per-step gate selection then
    # indexes a leading scratch axis (no in-vreg lane slicing for small H).
    for g in range(3):
        gi_f_scr[g] = gf[:, :, g * H:(g + 1) * H]
        gi_b_scr[g] = gb[:, :, g * H:(g + 1) * H]

    ef_whh = ef_whh_ref[...]
    eb_whh = eb_whh_ref[...]
    de_whh = de_whh_ref[...]
    ef_bhh = jnp.broadcast_to(ef_bhh_ref[...], (B, 3 * H))   # hoisted
    eb_bhh = jnp.broadcast_to(eb_bhh_ref[...], (B, 3 * H))
    de_bhh = jnp.broadcast_to(de_bhh_ref[...], (B, 3 * H))

    def gru_cell(gi_r, gi_z, gi_n, h, whh, bhh):
        """One GRU step. gi_*: (B,H) precomputed x@Wih+bih gate inputs."""
        gh = jnp.dot(h, whh, preferred_element_type=f32) + bhh        # (B, 3H)
        r = jax.nn.sigmoid(gi_r + gh[:, 0 * H:1 * H])
        z = jax.nn.sigmoid(gi_z + gh[:, 1 * H:2 * H])
        n = jnp.tanh(gi_n + r * gh[:, 2 * H:3 * H])
        return (1.0 - z) * n + z * h

    # --- Encoder: fwd & bwd chains interleaved in one loop (two independent
    #     recurrences hide each other's MXU/EUP latency) ----------------------
    h0 = jnp.zeros((B, H), f32)

    def enc_step(i, carry):
        h_f, h_b = carry
        j = S - 1 - i
        h_f = gru_cell(gi_f_scr[0, i], gi_f_scr[1, i], gi_f_scr[2, i],
                       h_f, ef_whh, ef_bhh)
        h_b = gru_cell(gi_b_scr[0, j], gi_b_scr[1, j], gi_b_scr[2, j],
                       h_b, eb_whh, eb_bhh)
        enc_f_scr[i] = h_f
        enc_b_scr[j] = h_b
        return h_f, h_b

    h_fwd, h_bwd = jax.lax.fori_loop(0, S, enc_step, (h0, h0), unroll=True)

    enc_hid = h_fwd + h_bwd                          # (B, H)  summed directions
    enc_out = enc_f_scr[...] + enc_b_scr[...]        # (S, B, H) summed outputs

    # --- Bahdanau attention (V projection collapsed to a vector dot) ---------
    enc_flat = enc_out.reshape(S * B, H)
    xw = jnp.dot(enc_flat, at_wx_ref[...],
                 preferred_element_type=f32).reshape(S, B, H)
    hproj = jnp.dot(enc_hid, at_wh_ref[...],
                    preferred_element_type=f32) + at_b_ref[...]        # (B, H)
    t1 = jnp.tanh(xw + hproj[None])                                    # (S, B, H)
    # scores[t,b] = sum_k V(tanh(...))[t,b,k]  ==  t1 . colsum(V^T) + sum(bV)
    scores = jnp.sum(t1 * at_vs_ref[...], axis=-1) + at_bvs_ref[...]   # (S, B)

    # Masked softmax over the sequence axis.  Finite fill -> fully-masked rows
    # give uniform weights instead of NaN (intentional behavioral difference).
    scores = jnp.where(mask_ref[...] == 0, jnp.float32(-1e30), scores)
    m = jnp.max(scores, axis=0, keepdims=True)                         # (1, B)
    e = jnp.exp(scores - m)
    sm = e / jnp.sum(e, axis=0, keepdims=True)       # exact division (parity)

    # --- Decoder GRU: fold softmax weights into the hoisted input projection
    #     (attn_out = sm * enc_out is never materialized) ---------------------
    gd = jnp.dot(enc_flat, de_wih_ref[...],
                 preferred_element_type=f32).reshape(S, B, 3 * H)
    gd = gd * sm[:, :, None] + de_bih_ref[...]
    for g in range(3):
        gi_d_scr[g] = gd[:, :, g * H:(g + 1) * H]

    # Step t == 0 outside the loop: its output is dec_out[:, 0].
    h = gru_cell(gi_d_scr[0, 0], gi_d_scr[1, 0], gi_d_scr[2, 0],
                 enc_hid, de_whh, de_bhh)
    x_out_ref[...] = h

    def dec_step(t, h):
        return gru_cell(gi_d_scr[0, t], gi_d_scr[1, t], gi_d_scr[2, t],
                        h, de_whh, de_bhh)

    h = jax.lax.fori_loop(1, S, dec_step, h, unroll=True)
    hid_out_ref[...] = h


# ----------------------------------------------------------------------------
# Wrapper (single pallas_call, whole-array VMEM blocks — toy shapes are tiny)
# ----------------------------------------------------------------------------
_VMEM = pl.BlockSpec(memory_space=pltpu.MemorySpace.VMEM)


def _vmem_limit_bytes(operands, S, B, H):
    """Scoped-VMEM limit sized from the actual buffer footprint."""
    io = sum(o.size * o.dtype.itemsize for o in operands)
    io += 2 * B * H * 4                                    # the two outputs
    scratch = (3 * 3 + 2) * S * B * H * 4                  # gi_{f,b,d} + enc_{f,b}
    est = 2 * (io + scratch) + (4 << 20)                   # headroom for temps
    return int(max(16 << 20, min(est, 64 << 20)))          # clamp: v7x = 64 MiB


def encoder_decoder_forward(params, token_ids, mask):
    """token_ids: (B, S) int32, mask: (B, S) int32.
    Returns (x (B, H), hidden (1, B, H)) — matches PyTorch EncoderDecoder.forward."""
    B, S = token_ids.shape
    H = params['dec']['whh'].shape[0]

    # Glue (no float transposes / flips): gather embeddings directly into the
    # time-major layout used by the kernel; transpose only the tiny int mask.
    emb_tm = params['embedding'][token_ids.T]           # (S, B, E)
    mask_tm = mask.T.astype(jnp.int32)                  # (S, B)

    at = params['attn']
    # Exact algebraic collapse of the V projection (sum over V's output dim).
    at_vs = jnp.sum(at['vT'], axis=1)[None, :]          # (1, H)
    at_bvs = jnp.sum(at['bv']).reshape(1, 1)            # (1, 1)

    pf, pb, pd = params['enc_fwd'], params['enc_bwd'], params['dec']

    operands = (emb_tm, mask_tm,
                pf['wih'], pf['whh'], pf['bih'], pf['bhh'],
                pb['wih'], pb['whh'], pb['bih'], pb['bhh'],
                at['wxT'], at['whT'], at['bw'], at_vs, at_bvs,
                pd['wih'], pd['whh'], pd['bih'], pd['bhh'])

    scratch = ([pltpu.VMEM((3, S, B, H), jnp.float32)] * 3
               + [pltpu.VMEM((S, B, H), jnp.float32)] * 2)

    x, hid = pl.pallas_call(
        encdec_kernel,
        out_shape=(jax.ShapeDtypeStruct((B, H), jnp.float32),
                   jax.ShapeDtypeStruct((B, H), jnp.float32)),
        in_specs=[_VMEM] * len(operands),
        out_specs=(_VMEM, _VMEM),
        scratch_shapes=scratch,
        compiler_params=pltpu.CompilerParams(
            vmem_limit_bytes=_vmem_limit_bytes(operands, S, B, H)),
    )(*operands)

    return x, hid[None]                                 # hidden: (1, B, H)


# ----------------------------------------------------------------------------
# Parameters (deterministic synthetic init — no checkpoint loading)
# ----------------------------------------------------------------------------
def _uniform(key, shape, fan):
    bound = 1.0 / math.sqrt(fan)
    return jax.random.uniform(key, shape, jnp.float32, -bound, bound)


def _gru_params(key, in_dim, hidden):
    k = jax.random.split(key, 4)
    return dict(
        wih=_uniform(k[0], (in_dim, 3 * hidden), hidden),   # gates packed [r|z|n]
        whh=_uniform(k[1], (hidden, 3 * hidden), hidden),
        bih=_uniform(k[2], (1, 3 * hidden), hidden),
        bhh=_uniform(k[3], (1, 3 * hidden), hidden),
    )


def init_params(key, vocab, emb_dim, hidden):
    ks = jax.random.split(key, 5)
    emb = jax.random.normal(ks[0], (vocab, emb_dim), jnp.float32) * 0.1
    emb = emb.at[0].set(0.0)                                # padding_idx=0
    ak = jax.random.split(ks[3], 5)
    return dict(
        embedding=emb,
        enc_fwd=_gru_params(ks[1], emb_dim, hidden),
        enc_bwd=_gru_params(ks[2], emb_dim, hidden),
        attn=dict(
            wxT=_uniform(ak[0], (hidden, hidden), 2 * hidden),  # W[:, :H]^T
            whT=_uniform(ak[1], (hidden, hidden), 2 * hidden),  # W[:, H:]^T
            bw=_uniform(ak[2], (1, hidden), 2 * hidden),
            vT=_uniform(ak[3], (hidden, hidden), hidden),       # V.weight^T
            bv=_uniform(ak[4], (1, hidden), hidden),
        ),
        dec=_gru_params(ks[4], hidden, hidden),    # embedding_size == hidden_size
    )


# ----------------------------------------------------------------------------
if __name__ == "__main__":
    B, S = 2, 8
    VOCAB, E, H = 100, 32, 32   # embedding_size == hidden_size (as in the module)

    key = jax.random.PRNGKey(0)
    k_par, k_tok = jax.random.split(key)
    params = init_params(k_par, VOCAB, E, H)

    token_ids = jax.random.randint(k_tok, (B, S), 1, VOCAB, dtype=jnp.int32)
    mask = jnp.ones((B, S), jnp.int32)
    mask = mask.at[1, 6:].set(0)                 # pad last two positions of row 1
    token_ids = jnp.where(mask == 0, 0, token_ids)

    fwd = jax.jit(encoder_decoder_forward)
    x, hidden = fwd(params, token_ids, mask)
    jax.block_until_ready((x, hidden))

    assert x.shape == (B, H) and hidden.shape == (1, B, H)
    assert bool(jnp.all(jnp.isfinite(x))) and bool(jnp.all(jnp.isfinite(hidden)))
    print("KERNEL_OK")
</pallas_src>

<mosaic_0001>
module attributes {stable_mosaic.version = 11 : i64} {
  func.func @encdec_kernel(%arg0: memref<8x2x32xf32, #tpu.memory_space<vmem>>, %arg1: memref<8x2xi32, #tpu.memory_space<vmem>>, %arg2: memref<32x96xf32, #tpu.memory_space<vmem>>, %arg3: memref<32x96xf32, #tpu.memory_space<vmem>>, %arg4: memref<1x96xf32, #tpu.memory_space<vmem>>, %arg5: memref<1x96xf32, #tpu.memory_space<vmem>>, %arg6: memref<32x96xf32, #tpu.memory_space<vmem>>, %arg7: memref<32x96xf32, #tpu.memory_space<vmem>>, %arg8: memref<1x96xf32, #tpu.memory_space<vmem>>, %arg9: memref<1x96xf32, #tpu.memory_space<vmem>>, %arg10: memref<32x32xf32, #tpu.memory_space<vmem>>, %arg11: memref<32x32xf32, #tpu.memory_space<vmem>>, %arg12: memref<1x32xf32, #tpu.memory_space<vmem>>, %arg13: memref<1x32xf32, #tpu.memory_space<vmem>>, %arg14: memref<1x1xf32, #tpu.memory_space<vmem>>, %arg15: memref<32x96xf32, #tpu.memory_space<vmem>>, %arg16: memref<32x96xf32, #tpu.memory_space<vmem>>, %arg17: memref<1x96xf32, #tpu.memory_space<vmem>>, %arg18: memref<1x96xf32, #tpu.memory_space<vmem>>, %arg19: memref<2x32xf32, #tpu.memory_space<vmem>>, %arg20: memref<2x32xf32, #tpu.memory_space<vmem>>, %arg21: memref<3x8x2x32xf32, #tpu.memory_space<vmem>>, %arg22: memref<3x8x2x32xf32, #tpu.memory_space<vmem>>, %arg23: memref<3x8x2x32xf32, #tpu.memory_space<vmem>>, %arg24: memref<8x2x32xf32, #tpu.memory_space<vmem>>, %arg25: memref<8x2x32xf32, #tpu.memory_space<vmem>>) attributes {dimension_semantics = [], scalar_prefetch = 0 : i64, scratch_operands = 5 : i64, tpu.core_type = #tpu.core_type<tc>} {
    %c0 = arith.constant 0 : index
    %c0_0 = arith.constant 0 : index
    %c0_1 = arith.constant 0 : index
    %0 = vector.load %arg0[%c0, %c0_0, %c0_1] : memref<8x2x32xf32, #tpu.memory_space<vmem>>, vector<8x2x32xf32>
    %1 = vector.shape_cast %0 : vector<8x2x32xf32> to vector<16x32xf32>
    %c0_2 = arith.constant 0 : index
    %c0_3 = arith.constant 0 : index
    %2 = vector.load %arg2[%c0_2, %c0_3] : memref<32x96xf32, #tpu.memory_space<vmem>>, vector<32x96xf32>
    %cst = arith.constant dense<0.000000e+00> : vector<16x96xf32>
    %3 = tpu.matmul %1, %2, %cst {dimension_numbers = #tpu.dot_dimension_numbers<[1], [0], [0], [1], [0, 0, 1, 1], [], []>} : vector<16x32xf32>, vector<32x96xf32>, vector<16x96xf32> -> vector<16x96xf32>
    %c0_4 = arith.constant 0 : index
    %c0_5 = arith.constant 0 : index
    %4 = vector.load %arg4[%c0_4, %c0_5] : memref<1x96xf32, #tpu.memory_space<vmem>>, vector<1x96xf32>
    %5 = vector.broadcast %4 : vector<1x96xf32> to vector<16x96xf32>
    %6 = arith.addf %3, %5 : vector<16x96xf32>
    %7 = vector.shape_cast %6 : vector<16x96xf32> to vector<8x2x96xf32>
    %c0_6 = arith.constant 0 : index
    %c0_7 = arith.constant 0 : index
    %8 = vector.load %arg6[%c0_6, %c0_7] : memref<32x96xf32, #tpu.memory_space<vmem>>, vector<32x96xf32>
    %cst_8 = arith.constant dense<0.000000e+00> : vector<16x96xf32>
    %9 = tpu.matmul %1, %8, %cst_8 {dimension_numbers = #tpu.dot_dimension_numbers<[1], [0], [0], [1], [0, 0, 1, 1], [], []>} : vector<16x32xf32>, vector<32x96xf32>, vector<16x96xf32> -> vector<16x96xf32>
    %c0_9 = arith.constant 0 : index
    %c0_10 = arith.constant 0 : index
    %10 = vector.load %arg8[%c0_9, %c0_10] : memref<1x96xf32, #tpu.memory_space<vmem>>, vector<1x96xf32>
    %11 = vector.broadcast %10 : vector<1x96xf32> to vector<16x96xf32>
    %12 = arith.addf %9, %11 : vector<16x96xf32>
    %13 = vector.shape_cast %12 : vector<16x96xf32> to vector<8x2x96xf32>
    %14 = vector.extract_strided_slice %7 {offsets = [0, 0, 0], sizes = [8, 2, 32], strides = [1, 1, 1]} : vector<8x2x96xf32> to vector<8x2x32xf32>
    %c0_11 = arith.constant 0 : index
    %c0_12 = arith.constant 0 : index
    %c0_13 = arith.constant 0 : index
    %c0_14 = arith.constant 0 : index
    %15 = vector.load %arg21[%c0_11, %c0_12, %c0_13, %c0_14] : memref<3x8x2x32xf32, #tpu.memory_space<vmem>>, vector<1x8x2x32xf32>
    %16 = vector.shape_cast %15 : vector<1x8x2x32xf32> to vector<8x2x32xf32>
    %17 = vector.shape_cast %14 : vector<8x2x32xf32> to vector<1x8x2x32xf32>
    tpu.vector_store %arg21[%c0_11, %c0_12, %c0_13, %c0_14], %17 {strides = array<i32>} : memref<3x8x2x32xf32, #tpu.memory_space<vmem>>, vector<1x8x2x32xf32>,
    %18 = vector.extract_strided_slice %13 {offsets = [0, 0, 0], sizes = [8, 2, 32], strides = [1, 1, 1]} : vector<8x2x96xf32> to vector<8x2x32xf32>
    %c0_15 = arith.constant 0 : index
    %c0_16 = arith.constant 0 : index
    %c0_17 = arith.constant 0 : index
    %c0_18 = arith.constant 0 : index
    %19 = vector.load %arg22[%c0_15, %c0_16, %c0_17, %c0_18] : memref<3x8x2x32xf32, #tpu.memory_space<vmem>>, vector<1x8x2x32xf32>
    %20 = vector.shape_cast %19 : vector<1x8x2x32xf32> to vector<8x2x32xf32>
    %21 = vector.shape_cast %18 : vector<8x2x32xf32> to vector<1x8x2x32xf32>
    tpu.vector_store %arg22[%c0_15, %c0_16, %c0_17, %c0_18], %21 {strides = array<i32>} : memref<3x8x2x32xf32, #tpu.memory_space<vmem>>, vector<1x8x2x32xf32>,
    %22 = vector.extract_strided_slice %7 {offsets = [0, 0, 32], sizes = [8, 2, 32], strides = [1, 1, 1]} : vector<8x2x96xf32> to vector<8x2x32xf32>
    %c1 = arith.constant 1 : index
    %c0_19 = arith.constant 0 : index
    %c0_20 = arith.constant 0 : index
    %c0_21 = arith.constant 0 : index
    %23 = vector.load %arg21[%c1, %c0_19, %c0_20, %c0_21] : memref<3x8x2x32xf32, #tpu.memory_space<vmem>>, vector<1x8x2x32xf32>
    %24 = vector.shape_cast %23 : vector<1x8x2x32xf32> to vector<8x2x32xf32>
    %25 = vector.shape_cast %22 : vector<8x2x32xf32> to vector<1x8x2x32xf32>
    tpu.vector_store %arg21[%c1, %c0_19, %c0_20, %c0_21], %25 {strides = array<i32>} : memref<3x8x2x32xf32, #tpu.memory_space<vmem>>, vector<1x8x2x32xf32>,
    %26 = vector.extract_strided_slice %13 {offsets = [0, 0, 32], sizes = [8, 2, 32], strides = [1, 1, 1]} : vector<8x2x96xf32> to vector<8x2x32xf32>
    %c1_22 = arith.constant 1 : index
    %c0_23 = arith.constant 0 : index
    %c0_24 = arith.constant 0 : index
    %c0_25 = arith.constant 0 : index
    %27 = vector.load %arg22[%c1_22, %c0_23, %c0_24, %c0_25] : memref<3x8x2x32xf32, #tpu.memory_space<vmem>>, vector<1x8x2x32xf32>
    %28 = vector.shape_cast %27 : vector<1x8x2x32xf32> to vector<8x2x32xf32>
    %29 = vector.shape_cast %26 : vector<8x2x32xf32> to vector<1x8x2x32xf32>
    tpu.vector_store %arg22[%c1_22, %c0_23, %c0_24, %c0_25], %29 {strides = array<i32>} : memref<3x8x2x32xf32, #tpu.memory_space<vmem>>, vector<1x8x2x32xf32>,
    %30 = vector.extract_strided_slice %7 {offsets = [0, 0, 64], sizes = [8, 2, 32], strides = [1, 1, 1]} : vector<8x2x96xf32> to vector<8x2x32xf32>
    %c2 = arith.constant 2 : index
    %c0_26 = arith.constant 0 : index
    %c0_27 = arith.constant 0 : index
    %c0_28 = arith.constant 0 : index
    %31 = vector.load %arg21[%c2, %c0_26, %c0_27, %c0_28] : memref<3x8x2x32xf32, #tpu.memory_space<vmem>>, vector<1x8x2x32xf32>
    %32 = vector.shape_cast %31 : vector<1x8x2x32xf32> to vector<8x2x32xf32>
    %33 = vector.shape_cast %30 : vector<8x2x32xf32> to vector<1x8x2x32xf32>
    tpu.vector_store %arg21[%c2, %c0_26, %c0_27, %c0_28], %33 {strides = array<i32>} : memref<3x8x2x32xf32, #tpu.memory_space<vmem>>, vector<1x8x2x32xf32>,
    %34 = vector.extract_strided_slice %13 {offsets = [0, 0, 64], sizes = [8, 2, 32], strides = [1, 1, 1]} : vector<8x2x96xf32> to vector<8x2x32xf32>
    %c2_29 = arith.constant 2 : index
    %c0_30 = arith.constant 0 : index
    %c0_31 = arith.constant 0 : index
    %c0_32 = arith.constant 0 : index
    %35 = vector.load %arg22[%c2_29, %c0_30, %c0_31, %c0_32] : memref<3x8x2x32xf32, #tpu.memory_space<vmem>>, vector<1x8x2x32xf32>
    %36 = vector.shape_cast %35 : vector<1x8x2x32xf32> to vector<8x2x32xf32>
    %37 = vector.shape_cast %34 : vector<8x2x32xf32> to vector<1x8x2x32xf32>
    tpu.vector_store %arg22[%c2_29, %c0_30, %c0_31, %c0_32], %37 {strides = array<i32>} : memref<3x8x2x32xf32, #tpu.memory_space<vmem>>, vector<1x8x2x32xf32>,
    %c0_33 = arith.constant 0 : index
    %c0_34 = arith.constant 0 : index
    %38 = vector.load %arg3[%c0_33, %c0_34] : memref<32x96xf32, #tpu.memory_space<vmem>>, vector<32x96xf32>
    %c0_35 = arith.constant 0 : index
    %c0_36 = arith.constant 0 : index
    %39 = vector.load %arg7[%c0_35, %c0_36] : memref<32x96xf32, #tpu.memory_space<vmem>>, vector<32x96xf32>
    %c0_37 = arith.constant 0 : index
    %c0_38 = arith.constant 0 : index
    %40 = vector.load %arg16[%c0_37, %c0_38] : memref<32x96xf32, #tpu.memory_space<vmem>>, vector<32x96xf32>
    %c0_39 = arith.constant 0 : index
    %c0_40 = arith.constant 0 : index
    %41 = vector.load %arg5[%c0_39, %c0_40] : memref<1x96xf32, #tpu.memory_space<vmem>>, vector<1x96xf32>
    %42 = vector.shape_cast %41 : vector<1x96xf32> to vector<1x96xf32>
    %43 = vector.broadcast %42 : vector<1x96xf32> to vector<2x96xf32>
    %c0_41 = arith.constant 0 : index
    %c0_42 = arith.constant 0 : index
    %44 = vector.load %arg9[%c0_41, %c0_42] : memref<1x96xf32, #tpu.memory_space<vmem>>, vector<1x96xf32>
    %45 = vector.shape_cast %44 : vector<1x96xf32> to vector<1x96xf32>
    %46 = vector.broadcast %45 : vector<1x96xf32> to vector<2x96xf32>
    %c0_43 = arith.constant 0 : index
    %c0_44 = arith.constant 0 : index
    %47 = vector.load %arg18[%c0_43, %c0_44] : memref<1x96xf32, #tpu.memory_space<vmem>>, vector<1x96xf32>
    %48 = vector.shape_cast %47 : vector<1x96xf32> to vector<1x96xf32>
    %49 = vector.broadcast %48 : vector<1x96xf32> to vector<2x96xf32>
    %cst_45 = arith.constant 0.000000e+00 : f32
    %50 = vector.broadcast %cst_45 : f32 to vector<2x32xf32>
    %c0_i32 = arith.constant 0 : i32
    %c7_i32 = arith.constant 7 : i32
    %51 = arith.subi %c7_i32, %c0_i32 : i32
    %c0_46 = arith.constant 0 : index
    %52 = arith.index_cast %c0_i32 : i32 to index
    %c0_47 = arith.constant 0 : index
    %c0_48 = arith.constant 0 : index
    %53 = vector.load %arg21[%c0_46, %52, %c0_47, %c0_48] : memref<3x8x2x32xf32, #tpu.memory_space<vmem>>, vector<1x1x2x32xf32>
    %54 = vector.shape_cast %53 : vector<1x1x2x32xf32> to vector<2x32xf32>
    %c1_49 = arith.constant 1 : index
    %55 = arith.index_cast %c0_i32 : i32 to index
    %c0_50 = arith.constant 0 : index
    %c0_51 = arith.constant 0 : index
    %56 = vector.load %arg21[%c1_49, %55, %c0_50, %c0_51] : memref<3x8x2x32xf32, #tpu.memory_space<vmem>>, vector<1x1x2x32xf32>
    %57 = vector.shape_cast %56 : vector<1x1x2x32xf32> to vector<2x32xf32>
    %c2_52 = arith.constant 2 : index
    %58 = arith.index_cast %c0_i32 : i32 to index
    %c0_53 = arith.constant 0 : index
    %c0_54 = arith.constant 0 : index
    %59 = vector.load %arg21[%c2_52, %58, %c0_53, %c0_54] : memref<3x8x2x32xf32, #tpu.memory_space<vmem>>, vector<1x1x2x32xf32>
    %60 = vector.shape_cast %59 : vector<1x1x2x32xf32> to vector<2x32xf32>
    %cst_55 = arith.constant dense<0.000000e+00> : vector<2x96xf32>
    %61 = tpu.matmul %50, %38, %cst_55 {dimension_numbers = #tpu.dot_dimension_numbers<[1], [0], [0], [1], [0, 0, 1, 1], [], []>} : vector<2x32xf32>, vector<32x96xf32>, vector<2x96xf32> -> vector<2x96xf32>
    %62 = arith.addf %61, %43 : vector<2x96xf32>
    %63 = vector.extract_strided_slice %62 {offsets = [0, 0], sizes = [2, 32], strides = [1, 1]} : vector<2x96xf32> to vector<2x32xf32>
    %64 = arith.addf %54, %63 : vector<2x32xf32>
    %65 = arith.negf %64 : vector<2x32xf32>
    %66 = math.exp %65 : vector<2x32xf32>
    %cst_56 = arith.constant 1.000000e+00 : f32
    %67 = vector.broadcast %cst_56 : f32 to vector<2x32xf32>
    %68 = arith.addf %67, %66 : vector<2x32xf32>
    %69 = arith.divf %67, %68 : vector<2x32xf32>
    %70 = vector.extract_strided_slice %62 {offsets = [0, 32], sizes = [2, 32], strides = [1, 1]} : vector<2x96xf32> to vector<2x32xf32>
    %71 = arith.addf %57, %70 : vector<2x32xf32>
    %72 = arith.negf %71 : vector<2x32xf32>
    %73 = math.exp %72 : vector<2x32xf32>
    %cst_57 = arith.constant 1.000000e+00 : f32
    %74 = vector.broadcast %cst_57 : f32 to vector<2x32xf32>
    %75 = arith.addf %74, %73 : vector<2x32xf32>
    %76 = arith.divf %74, %75 : vector<2x32xf32>
    %77 = vector.extract_strided_slice %62 {offsets = [0, 64], sizes = [2, 32], strides = [1, 1]} : vector<2x96xf32> to vector<2x32xf32>
    %78 = arith.mulf %69, %77 : vector<2x32xf32>
    %79 = arith.addf %60, %78 : vector<2x32xf32>
    %80 = math.tanh %79 : vector<2x32xf32>
    %cst_58 = arith.constant 1.000000e+00 : f32
    %81 = vector.broadcast %cst_58 : f32 to vector<2x32xf32>
    %82 = arith.subf %81, %76 : vector<2x32xf32>
    %83 = arith.mulf %82, %80 : vector<2x32xf32>
    %84 = arith.mulf %76, %50 : vector<2x32xf32>
    %85 = arith.addf %83, %84 : vector<2x32xf32>
    %c0_59 = arith.constant 0 : index
    %86 = arith.index_cast %51 : i32 to index
    %c0_60 = arith.constant 0 : index
    %c0_61 = arith.constant 0 : index
    %87 = vector.load %arg22[%c0_59, %86, %c0_60, %c0_61] : memref<3x8x2x32xf32, #tpu.memory_space<vmem>>, vector<1x1x2x32xf32>
    %88 = vector.shape_cast %87 : vector<1x1x2x32xf32> to vector<2x32xf32>
    %c1_62 = arith.constant 1 : index
    %89 = arith.index_cast %51 : i32 to index
    %c0_63 = arith.constant 0 : index
    %c0_64 = arith.constant 0 : index
    %90 = vector.load %arg22[%c1_62, %89, %c0_63, %c0_64] : memref<3x8x2x32xf32, #tpu.memory_space<vmem>>, vector<1x1x2x32xf32>
    %91 = vector.shape_cast %90 : vector<1x1x2x32xf32> to vector<2x32xf32>
    %c2_65 = arith.constant 2 : index
    %92 = arith.index_cast %51 : i32 to index
    %c0_66 = arith.constant 0 : index
    %c0_67 = arith.constant 0 : index
    %93 = vector.load %arg22[%c2_65, %92, %c0_66, %c0_67] : memref<3x8x2x32xf32, #tpu.memory_space<vmem>>, vector<1x1x2x32xf32>
    %94 = vector.shape_cast %93 : vector<1x1x2x32xf32> to vector<2x32xf32>
    %cst_68 = arith.constant dense<0.000000e+00> : vector<2x96xf32>
    %95 = tpu.matmul %50, %39, %cst_68 {dimension_numbers = #tpu.dot_dimension_numbers<[1], [0], [0], [1], [0, 0, 1, 1], [], []>} : vector<2x32xf32>, vector<32x96xf32>, vector<2x96xf32> -> vector<2x96xf32>
    %96 = arith.addf %95, %46 : vector<2x96xf32>
    %97 = vector.extract_strided_slice %96 {offsets = [0, 0], sizes = [2, 32], strides = [1, 1]} : vector<2x96xf32> to vector<2x32xf32>
    %98 = arith.addf %88, %97 : vector<2x32xf32>
    %99 = arith.negf %98 : vector<2x32xf32>
    %100 = math.exp %99 : vector<2x32xf32>
    %cst_69 = arith.constant 1.000000e+00 : f32
    %101 = vector.broadcast %cst_69 : f32 to vector<2x32xf32>
    %102 = arith.addf %101, %100 : vector<2x32xf32>
    %103 = arith.divf %101, %102 : vector<2x32xf32>
    %104 = vector.extract_strided_slice %96 {offsets = [0, 32], sizes = [2, 32], strides = [1, 1]} : vector<2x96xf32> to vector<2x32xf32>
    %105 = arith.addf %91, %104 : vector<2x32xf32>
    %106 = arith.negf %105 : vector<2x32xf32>
    %107 = math.exp %106 : vector<2x32xf32>
    %cst_70 = arith.constant 1.000000e+00 : f32
    %108 = vector.broadcast %cst_70 : f32 to vector<2x32xf32>
    %109 = arith.addf %108, %107 : vector<2x32xf32>
    %110 = arith.divf %108, %109 : vector<2x32xf32>
    %111 = vector.extract_strided_slice %96 {offsets = [0, 64], sizes = [2, 32], strides = [1, 1]} : vector<2x96xf32> to vector<2x32xf32>
    %112 = arith.mulf %103, %111 : vector<2x32xf32>
    %113 = arith.addf %94, %112 : vector<2x32xf32>
    %114 = math.tanh %113 : vector<2x32xf32>
    %cst_71 = arith.constant 1.000000e+00 : f32
    %115 = vector.broadcast %cst_71 : f32 to vector<2x32xf32>
    %116 = arith.subf %115, %110 : vector<2x32xf32>
    %117 = arith.mulf %116, %114 : vector<2x32xf32>
    %118 = arith.mulf %110, %50 : vector<2x32xf32>
    %119 = arith.addf %117, %118 : vector<2x32xf32>
    %120 = arith.index_cast %c0_i32 : i32 to index
    %c0_72 = arith.constant 0 : index
    %c0_73 = arith.constant 0 : index
    %121 = vector.load %arg24[%120, %c0_72, %c0_73] : memref<8x2x32xf32, #tpu.memory_space<vmem>>, vector<1x2x32xf32>
    %122 = vector.shape_cast %121 : vector<1x2x32xf32> to vector<2x32xf32>
    %123 = vector.shape_cast %85 : vector<2x32xf32> to vector<1x2x32xf32>
    tpu.vector_store %arg24[%120, %c0_72, %c0_73], %123 {strides = array<i32>} : memref<8x2x32xf32, #tpu.memory_space<vmem>>, vector<1x2x32xf32>,
    %124 = arith.index_cast %51 : i32 to index
    %c0_74 = arith.constant 0 : index
    %c0_75 = arith.constant 0 : index
    %125 = vector.load %arg25[%124, %c0_74, %c0_75] : memref<8x2x32xf32, #tpu.memory_space<vmem>>, vector<1x2x32xf32>
    %126 = vector.shape_cast %125 : vector<1x2x32xf32> to vector<2x32xf32>
    %127 = vector.shape_cast %119 : vector<2x32xf32> to vector<1x2x32xf32>
    tpu.vector_store %arg25[%124, %c0_74, %c0_75], %127 {strides = array<i32>} : memref<8x2x32xf32, #tpu.memory_space<vmem>>, vector<1x2x32xf32>,
    %c1_i32 = arith.constant 1 : i32
    %c7_i32_76 = arith.constant 7 : i32
    %128 = arith.subi %c7_i32_76, %c1_i32 : i32
    %c0_77 = arith.constant 0 : index
    %129 = arith.index_cast %c1_i32 : i32 to index
    %c0_78 = arith.constant 0 : index
    %c0_79 = arith.constant 0 : index
    %130 = vector.load %arg21[%c0_77, %129, %c0_78, %c0_79] : memref<3x8x2x32xf32, #tpu.memory_space<vmem>>, vector<1x1x2x32xf32>
    %131 = vector.shape_cast %130 : vector<1x1x2x32xf32> to vector<2x32xf32>
    %c1_80 = arith.constant 1 : index
    %132 = arith.index_cast %c1_i32 : i32 to index
    %c0_81 = arith.constant 0 : index
    %c0_82 = arith.constant 0 : index
    %133 = vector.load %arg21[%c1_80, %132, %c0_81, %c0_82] : memref<3x8x2x32xf32, #tpu.memory_space<vmem>>, vector<1x1x2x32xf32>
    %134 = vector.shape_cast %133 : vector<1x1x2x32xf32> to vector<2x32xf32>
    %c2_83 = arith.constant 2 : index
    %135 = arith.index_cast %c1_i32 : i32 to index
    %c0_84 = arith.constant 0 : index
    %c0_85 = arith.constant 0 : index
    %136 = vector.load %arg21[%c2_83, %135, %c0_84, %c0_85] : memref<3x8x2x32xf32, #tpu.memory_space<vmem>>, vector<1x1x2x32xf32>
    %137 = vector.shape_cast %136 : vector<1x1x2x32xf32> to vector<2x32xf32>
    %cst_86 = arith.constant dense<0.000000e+00> : vector<2x96xf32>
    %138 = tpu.matmul %85, %38, %cst_86 {dimension_numbers = #tpu.dot_dimension_numbers<[1], [0], [0], [1], [0, 0, 1, 1], [], []>} : vector<2x32xf32>, vector<32x96xf32>, vector<2x96xf32> -> vector<2x96xf32>
    %139 = arith.addf %138, %43 : vector<2x96xf32>
    %140 = vector.extract_strided_slice %139 {offsets = [0, 0], sizes = [2, 32], strides = [1, 1]} : vector<2x96xf32> to vector<2x32xf32>
    %141 = arith.addf %131, %140 : vector<2x32xf32>
    %142 = arith.negf %141 : vector<2x32xf32>
    %143 = math.exp %142 : vector<2x32xf32>
    %cst_87 = arith.constant 1.000000e+00 : f32
    %144 = vector.broadcast %cst_87 : f32 to vector<2x32xf32>
    %145 = arith.addf %144, %143 : vector<2x32xf32>
    %146 = arith.divf %144, %145 : vector<2x32xf32>
    %147 = vector.extract_strided_slice %139 {offsets = [0, 32], sizes = [2, 32], strides = [1, 1]} : vector<2x96xf32> to vector<2x32xf32>
    %148 = arith.addf %134, %147 : vector<2x32xf32>
    %149 = arith.negf %148 : vector<2x32xf32>
    %150 = math.exp %149 : vector<2x32xf32>
    %cst_88 = arith.constant 1.000000e+00 : f32
    %151 = vector.broadcast %cst_88 : f32 to vector<2x32xf32>
    %152 = arith.addf %151, %150 : vector<2x32xf32>
    %153 = arith.divf %151, %152 : vector<2x32xf32>
    %154 = vector.extract_strided_slice %139 {offsets = [0, 64], sizes = [2, 32], strides = [1, 1]} : vector<2x96xf32> to vector<2x32xf32>
    %155 = arith.mulf %146, %154 : vector<2x32xf32>
    %156 = arith.addf %137, %155 : vector<2x32xf32>
    %157 = math.tanh %156 : vector<2x32xf32>
    %cst_89 = arith.constant 1.000000e+00 : f32
    %158 = vector.broadcast %cst_89 : f32 to vector<2x32xf32>
    %159 = arith.subf %158, %153 : vector<2x32xf32>
    %160 = arith.mulf %159, %157 : vector<2x32xf32>
    %161 = arith.mulf %153, %85 : vector<2x32xf32>
    %162 = arith.addf %160, %161 : vector<2x32xf32>
    %c0_90 = arith.constant 0 : index
    %163 = arith.index_cast %128 : i32 to index
    %c0_91 = arith.constant 0 : index
    %c0_92 = arith.constant 0 : index
    %164 = vector.load %arg22[%c0_90, %163, %c0_91, %c0_92] : memref<3x8x2x32xf32, #tpu.memory_space<vmem>>, vector<1x1x2x32xf32>
    %165 = vector.shape_cast %164 : vector<1x1x2x32xf32> to vector<2x32xf32>
    %c1_93 = arith.constant 1 : index
    %166 = arith.index_cast %128 : i32 to index
    %c0_94 = arith.constant 0 : index
    %c0_95 = arith.constant 0 : index
    %167 = vector.load %arg22[%c1_93, %166, %c0_94, %c0_95] : memref<3x8x2x32xf32, #tpu.memory_space<vmem>>, vector<1x1x2x32xf32>
    %168 = vector.shape_cast %167 : vector<1x1x2x32xf32> to vector<2x32xf32>
    %c2_96 = arith.constant 2 : index
    %169 = arith.index_cast %128 : i32 to index
    %c0_97 = arith.constant 0 : index
    %c0_98 = arith.constant 0 : index
    %170 = vector.load %arg22[%c2_96, %169, %c0_97, %c0_98] : memref<3x8x2x32xf32, #tpu.memory_space<vmem>>, vector<1x1x2x32xf32>
    %171 = vector.shape_cast %170 : vector<1x1x2x32xf32> to vector<2x32xf32>
    %cst_99 = arith.constant dense<0.000000e+00> : vector<2x96xf32>
    %172 = tpu.matmul %119, %39, %cst_99 {dimension_numbers = #tpu.dot_dimension_numbers<[1], [0], [0], [1], [0, 0, 1, 1], [], []>} : vector<2x32xf32>, vector<32x96xf32>, vector<2x96xf32> -> vector<2x96xf32>
    %173 = arith.addf %172, %46 : vector<2x96xf32>
    %174 = vector.extract_strided_slice %173 {offsets = [0, 0], sizes = [2, 32], strides = [1, 1]} : vector<2x96xf32> to vector<2x32xf32>
    %175 = arith.addf %165, %174 : vector<2x32xf32>
    %176 = arith.negf %175 : vector<2x32xf32>
    %177 = math.exp %176 : vector<2x32xf32>
    %cst_100 = arith.constant 1.000000e+00 : f32
    %178 = vector.broadcast %cst_100 : f32 to vector<2x32xf32>
    %179 = arith.addf %178, %177 : vector<2x32xf32>
    %180 = arith.divf %178, %179 : vector<2x32xf32>
    %181 = vector.extract_strided_slice %173 {offsets = [0, 32], sizes = [2, 32], strides = [1, 1]} : vector<2x96xf32> to vector<2x32xf32>
    %182 = arith.addf %168, %181 : vector<2x32xf32>
    %183 = arith.negf %182 : vector<2x32xf32>
    %184 = math.exp %183 : vector<2x32xf32>
    %cst_101 = arith.constant 1.000000e+00 : f32
    %185 = vector.broadcast %cst_101 : f32 to vector<2x32xf32>
    %186 = arith.addf %185, %184 : vector<2x32xf32>
    %187 = arith.divf %185, %186 : vector<2x32xf32>
    %188 = vector.extract_strided_slice %173 {offsets = [0, 64], sizes = [2, 32], strides = [1, 1]} : vector<2x96xf32> to vector<2x32xf32>
    %189 = arith.mulf %180, %188 : vector<2x32xf32>
    %190 = arith.addf %171, %189 : vector<2x32xf32>
    %191 = math.tanh %190 : vector<2x32xf32>
    %cst_102 = arith.constant 1.000000e+00 : f32
    %192 = vector.broadcast %cst_102 : f32 to vector<2x32xf32>
    %193 = arith.subf %192, %187 : vector<2x32xf32>
    %194 = arith.mulf %193, %191 : vector<2x32xf32>
    %195 = arith.mulf %187, %119 : vector<2x32xf32>
    %196 = arith.addf %194, %195 : vector<2x32xf32>
    %197 = arith.index_cast %c1_i32 : i32 to index
    %c0_103 = arith.constant 0 : index
    %c0_104 = arith.constant 0 : index
    %198 = vector.load %arg24[%197, %c0_103, %c0_104] : memref<8x2x32xf32, #tpu.memory_space<vmem>>, vector<1x2x32xf32>
    %199 = vector.shape_cast %198 : vector<1x2x32xf32> to vector<2x32xf32>
    %200 = vector.shape_cast %162 : vector<2x32xf32> to vector<1x2x32xf32>
    tpu.vector_store %arg24[%197, %c0_103, %c0_104], %200 {strides = array<i32>} : memref<8x2x32xf32, #tpu.memory_space<vmem>>, vector<1x2x32xf32>,
    %201 = arith.index_cast %128 : i32 to index
    %c0_105 = arith.constant 0 : index
    %c0_106 = arith.constant 0 : index
    %202 = vector.load %arg25[%201, %c0_105, %c0_106] : memref<8x2x32xf32, #tpu.memory_space<vmem>>, vector<1x2x32xf32>
    %203 = vector.shape_cast %202 : vector<1x2x32xf32> to vector<2x32xf32>
    %204 = vector.shape_cast %196 : vector<2x32xf32> to vector<1x2x32xf32>
    tpu.vector_store %arg25[%201, %c0_105, %c0_106], %204 {strides = array<i32>} : memref<8x2x32xf32, #tpu.memory_space<vmem>>, vector<1x2x32xf32>,
    %c2_i32 = arith.constant 2 : i32
    %c7_i32_107 = arith.constant 7 : i32
    %205 = arith.subi %c7_i32_107, %c2_i32 : i32
    %c0_108 = arith.constant 0 : index
    %206 = arith.index_cast %c2_i32 : i32 to index
    %c0_109 = arith.constant 0 : index
    %c0_110 = arith.constant 0 : index
    %207 = vector.load %arg21[%c0_108, %206, %c0_109, %c0_110] : memref<3x8x2x32xf32, #tpu.memory_space<vmem>>, vector<1x1x2x32xf32>
    %208 = vector.shape_cast %207 : vector<1x1x2x32xf32> to vector<2x32xf32>
    %c1_111 = arith.constant 1 : index
    %209 = arith.index_cast %c2_i32 : i32 to index
    %c0_112 = arith.constant 0 : index
    %c0_113 = arith.constant 0 : index
    %210 = vector.load %arg21[%c1_111, %209, %c0_112, %c0_113] : memref<3x8x2x32xf32, #tpu.memory_space<vmem>>, vector<1x1x2x32xf32>
    %211 = vector.shape_cast %210 : vector<1x1x2x32xf32> to vector<2x32xf32>
    %c2_114 = arith.constant 2 : index
    %212 = arith.index_cast %c2_i32 : i32 to index
    %c0_115 = arith.constant 0 : index
    %c0_116 = arith.constant 0 : index
    %213 = vector.load %arg21[%c2_114, %212, %c0_115, %c0_116] : memref<3x8x2x32xf32, #tpu.memory_space<vmem>>, vector<1x1x2x32xf32>
    %214 = vector.shape_cast %213 : vector<1x1x2x32xf32> to vector<2x32xf32>
    %cst_117 = arith.constant dense<0.000000e+00> : vector<2x96xf32>
    %215 = tpu.matmul %162, %38, %cst_117 {dimension_numbers = #tpu.dot_dimension_numbers<[1], [0], [0], [1], [0, 0, 1, 1], [], []>} : vector<2x32xf32>, vector<32x96xf32>, vector<2x96xf32> -> vector<2x96xf32>
    %216 = arith.addf %215, %43 : vector<2x96xf32>
    %217 = vector.extract_strided_slice %216 {offsets = [0, 0], sizes = [2, 32], strides = [1, 1]} : vector<2x96xf32> to vector<2x32xf32>
    %218 = arith.addf %208, %217 : vector<2x32xf32>
    %219 = arith.negf %218 : vector<2x32xf32>
    %220 = math.exp %219 : vector<2x32xf32>
    %cst_118 = arith.constant 1.000000e+00 : f32
    %221 = vector.broadcast %cst_118 : f32 to vector<2x32xf32>
    %222 = arith.addf %221, %220 : vector<2x32xf32>
    %223 = arith.divf %221, %222 : vector<2x32xf32>
    %224 = vector.extract_strided_slice %216 {offsets = [0, 32], sizes = [2, 32], strides = [1, 1]} : vector<2x96xf32> to vector<2x32xf32>
    %225 = arith.addf %211, %224 : vector<2x32xf32>
    %226 = arith.negf %225 : vector<2x32xf32>
    %227 = math.exp %226 : vector<2x32xf32>
    %cst_119 = arith.constant 1.000000e+00 : f32
    %228 = vector.broadcast %cst_119 : f32 to vector<2x32xf32>
    %229 = arith.addf %228, %227 : vector<2x32xf32>
    %230 = arith.divf %228, %229 : vector<2x32xf32>
    %231 = vector.extract_strided_slice %216 {offsets = [0, 64], sizes = [2, 32], strides = [1, 1]} : vector<2x96xf32> to vector<2x32xf32>
    %232 = arith.mulf %223, %231 : vector<2x32xf32>
    %233 = arith.addf %214, %232 : vector<2x32xf32>
    %234 = math.tanh %233 : vector<2x32xf32>
    %cst_120 = arith.constant 1.000000e+00 : f32
    %235 = vector.broadcast %cst_120 : f32 to vector<2x32xf32>
    %236 = arith.subf %235, %230 : vector<2x32xf32>
    %237 = arith.mulf %236, %234 : vector<2x32xf32>
    %238 = arith.mulf %230, %162 : vector<2x32xf32>
    %239 = arith.addf %237, %238 : vector<2x32xf32>
    %c0_121 = arith.constant 0 : index
    %240 = arith.index_cast %205 : i32 to index
    %c0_122 = arith.constant 0 : index
    %c0_123 = arith.constant 0 : index
    %241 = vector.load %arg22[%c0_121, %240, %c0_122, %c0_123] : memref<3x8x2x32xf32, #tpu.memory_space<vmem>>, vector<1x1x2x32xf32>
    %242 = vector.shape_cast %241 : vector<1x1x2x32xf32> to vector<2x32xf32>
    %c1_124 = arith.constant 1 : index
    %243 = arith.index_cast %205 : i32 to index
    %c0_125 = arith.constant 0 : index
    %c0_126 = arith.constant 0 : index
    %244 = vector.load %arg22[%c1_124, %243, %c0_125, %c0_126] : memref<3x8x2x32xf32, #tpu.memory_space<vmem>>, vector<1x1x2x32xf32>
    %245 = vector.shape_cast %244 : vector<1x1x2x32xf32> to vector<2x32xf32>
    %c2_127 = arith.constant 2 : index
    %246 = arith.index_cast %205 : i32 to index
    %c0_128 = arith.constant 0 : index
    %c0_129 = arith.constant 0 : index
    %247 = vector.load %arg22[%c2_127, %246, %c0_128, %c0_129] : memref<3x8x2x32xf32, #tpu.memory_space<vmem>>, vector<1x1x2x32xf32>
    %248 = vector.shape_cast %247 : vector<1x1x2x32xf32> to vector<2x32xf32>
    %cst_130 = arith.constant dense<0.000000e+00> : vector<2x96xf32>
    %249 = tpu.matmul %196, %39, %cst_130 {dimension_numbers = #tpu.dot_dimension_numbers<[1], [0], [0], [1], [0, 0, 1, 1], [], []>} : vector<2x32xf32>, vector<32x96xf32>, vector<2x96xf32> -> vector<2x96xf32>
    %250 = arith.addf %249, %46 : vector<2x96xf32>
    %251 = vector.extract_strided_slice %250 {offsets = [0, 0], sizes = [2, 32], strides = [1, 1]} : vector<2x96xf32> to vector<2x32xf32>
    %252 = arith.addf %242, %251 : vector<2x32xf32>
    %253 = arith.negf %252 : vector<2x32xf32>
    %254 = math.exp %253 : vector<2x32xf32>
    %cst_131 = arith.constant 1.000000e+00 : f32
    %255 = vector.broadcast %cst_131 : f32 to vector<2x32xf32>
    %256 = arith.addf %255, %254 : vector<2x32xf32>
    %257 = arith.divf %255, %256 : vector<2x32xf32>
    %258 = vector.extract_strided_slice %250 {offsets = [0, 32], sizes = [2, 32], strides = [1, 1]} : vector<2x96xf32> to vector<2x32xf32>
    %259 = arith.addf %245, %258 : vector<2x32xf32>
    %260 = arith.negf %259 : vector<2x32xf32>
    %261 = math.exp %260 : vector<2x32xf32>
    %cst_132 = arith.constant 1.000000e+00 : f32
    %262 = vector.broadcast %cst_132 : f32 to vector<2x32xf32>
    %263 = arith.addf %262, %261 : vector<2x32xf32>
    %264 = arith.divf %262, %263 : vector<2x32xf32>
    %265 = vector.extract_strided_slice %250 {offsets = [0, 64], sizes = [2, 32], strides = [1, 1]} : vector<2x96xf32> to vector<2x32xf32>
    %266 = arith.mulf %257, %265 : vector<2x32xf32>
    %267 = arith.addf %248, %266 : vector<2x32xf32>
    %268 = math.tanh %267 : vector<2x32xf32>
    %cst_133 = arith.constant 1.000000e+00 : f32
    %269 = vector.broadcast %cst_133 : f32 to vector<2x32xf32>
    %270 = arith.subf %269, %264 : vector<2x32xf32>
    %271 = arith.mulf %270, %268 : vector<2x32xf32>
    %272 = arith.mulf %264, %196 : vector<2x32xf32>
    %273 = arith.addf %271, %272 : vector<2x32xf32>
    %274 = arith.index_cast %c2_i32 : i32 to index
    %c0_134 = arith.constant 0 : index
    %c0_135 = arith.constant 0 : index
    %275 = vector.load %arg24[%274, %c0_134, %c0_135] : memref<8x2x32xf32, #tpu.memory_space<vmem>>, vector<1x2x32xf32>
    %276 = vector.shape_cast %275 : vector<1x2x32xf32> to vector<2x32xf32>
    %277 = vector.shape_cast %239 : vector<2x32xf32> to vector<1x2x32xf32>
    tpu.vector_store %arg24[%274, %c0_134, %c0_135], %277 {strides = array<i32>} : memref<8x2x32xf32, #tpu.memory_space<vmem>>, vector<1x2x32xf32>,
    %278 = arith.index_cast %205 : i32 to index
    %c0_136 = arith.constant 0 : index
    %c0_137 = arith.constant 0 : index
    %279 = vector.load %arg25[%278, %c0_136, %c0_137] : memref<8x2x32xf32, #tpu.memory_space<vmem>>, vector<1x2x32xf32>
    %280 = vector.shape_cast %279 : vector<1x2x32xf32> to vector<2x32xf32>
    %281 = vector.shape_cast %273 : vector<2x32xf32> to vector<1x2x32xf32>
    tpu.vector_store %arg25[%278, %c0_136, %c0_137], %281 {strides = array<i32>} : memref<8x2x32xf32, #tpu.memory_space<vmem>>, vector<1x2x32xf32>,
    %c3_i32 = arith.constant 3 : i32
    %c7_i32_138 = arith.constant 7 : i32
    %282 = arith.subi %c7_i32_138, %c3_i32 : i32
    %c0_139 = arith.constant 0 : index
    %283 = arith.index_cast %c3_i32 : i32 to index
    %c0_140 = arith.constant 0 : index
    %c0_141 = arith.constant 0 : index
    %284 = vector.load %arg21[%c0_139, %283, %c0_140, %c0_141] : memref<3x8x2x32xf32, #tpu.memory_space<vmem>>, vector<1x1x2x32xf32>
    %285 = vector.shape_cast %284 : vector<1x1x2x32xf32> to vector<2x32xf32>
    %c1_142 = arith.constant 1 : index
    %286 = arith.index_cast %c3_i32 : i32 to index
    %c0_143 = arith.constant 0 : index
    %c0_144 = arith.constant 0 : index
    %287 = vector.load %arg21[%c1_142, %286, %c0_143, %c0_144] : memref<3x8x2x32xf32, #tpu.memory_space<vmem>>, vector<1x1x2x32xf32>
    %288 = vector.shape_cast %287 : vector<1x1x2x32xf32> to vector<2x32xf32>
    %c2_145 = arith.constant 2 : index
    %289 = arith.index_cast %c3_i32 : i32 to index
    %c0_146 = arith.constant 0 : index
    %c0_147 = arith.constant 0 : index
    %290 = vector.load %arg21[%c2_145, %289, %c0_146, %c0_147] : memref<3x8x2x32xf32, #tpu.memory_space<vmem>>, vector<1x1x2x32xf32>
    %291 = vector.shape_cast %290 : vector<1x1x2x32xf32> to vector<2x32xf32>
    %cst_148 = arith.constant dense<0.000000e+00> : vector<2x96xf32>
    %292 = tpu.matmul %239, %38, %cst_148 {dimension_numbers = #tpu.dot_dimension_numbers<[1], [0], [0], [1], [0, 0, 1, 1], [], []>} : vector<2x32xf32>, vector<32x96xf32>, vector<2x96xf32> -> vector<2x96xf32>
    %293 = arith.addf %292, %43 : vector<2x96xf32>
    %294 = vector.extract_strided_slice %293 {offsets = [0, 0], sizes = [2, 32], strides = [1, 1]} : vector<2x96xf32> to vector<2x32xf32>
    %295 = arith.addf %285, %294 : vector<2x32xf32>
    %296 = arith.negf %295 : vector<2x32xf32>
    %297 = math.exp %296 : vector<2x32xf32>
    %cst_149 = arith.constant 1.000000e+00 : f32
    %298 = vector.broadcast %cst_149 : f32 to vector<2x32xf32>
    %299 = arith.addf %298, %297 : vector<2x32xf32>
    %300 = arith.divf %298, %299 : vector<2x32xf32>
    %301 = vector.extract_strided_slice %293 {offsets = [0, 32], sizes = [2, 32], strides = [1, 1]} : vector<2x96xf32> to vector<2x32xf32>
    %302 = arith.addf %288, %301 : vector<2x32xf32>
    %303 = arith.negf %302 : vector<2x32xf32>
    %304 = math.exp %303 : vector<2x32xf32>
    %cst_150 = arith.constant 1.000000e+00 : f32
    %305 = vector.broadcast %cst_150 : f32 to vector<2x32xf32>
    %306 = arith.addf %305, %304 : vector<2x32xf32>
    %307 = arith.divf %305, %306 : vector<2x32xf32>
    %308 = vector.extract_strided_slice %293 {offsets = [0, 64], sizes = [2, 32], strides = [1, 1]} : vector<2x96xf32> to vector<2x32xf32>
    %309 = arith.mulf %300, %308 : vector<2x32xf32>
    %310 = arith.addf %291, %309 : vector<2x32xf32>
    %311 = math.tanh %310 : vector<2x32xf32>
    %cst_151 = arith.constant 1.000000e+00 : f32
    %312 = vector.broadcast %cst_151 : f32 to vector<2x32xf32>
    %313 = arith.subf %312, %307 : vector<2x32xf32>
    %314 = arith.mulf %313, %311 : vector<2x32xf32>
    %315 = arith.mulf %307, %239 : vector<2x32xf32>
    %316 = arith.addf %314, %315 : vector<2x32xf32>
    %c0_152 = arith.constant 0 : index
    %317 = arith.index_cast %282 : i32 to index
    %c0_153 = arith.constant 0 : index
    %c0_154 = arith.constant 0 : index
    %318 = vector.load %arg22[%c0_152, %317, %c0_153, %c0_154] : memref<3x8x2x32xf32, #tpu.memory_space<vmem>>, vector<1x1x2x32xf32>
    %319 = vector.shape_cast %318 : vector<1x1x2x32xf32> to vector<2x32xf32>
    %c1_155 = arith.constant 1 : index
    %320 = arith.index_cast %282 : i32 to index
    %c0_156 = arith.constant 0 : index
    %c0_157 = arith.constant 0 : index
    %321 = vector.load %arg22[%c1_155, %320, %c0_156, %c0_157] : memref<3x8x2x32xf32, #tpu.memory_space<vmem>>, vector<1x1x2x32xf32>
    %322 = vector.shape_cast %321 : vector<1x1x2x32xf32> to vector<2x32xf32>
    %c2_158 = arith.constant 2 : index
    %323 = arith.index_cast %282 : i32 to index
    %c0_159 = arith.constant 0 : index
    %c0_160 = arith.constant 0 : index
    %324 = vector.load %arg22[%c2_158, %323, %c0_159, %c0_160] : memref<3x8x2x32xf32, #tpu.memory_space<vmem>>, vector<1x1x2x32xf32>
    %325 = vector.shape_cast %324 : vector<1x1x2x32xf32> to vector<2x32xf32>
    %cst_161 = arith.constant dense<0.000000e+00> : vector<2x96xf32>
    %326 = tpu.matmul %273, %39, %cst_161 {dimension_numbers = #tpu.dot_dimension_numbers<[1], [0], [0], [1], [0, 0, 1, 1], [], []>} : vector<2x32xf32>, vector<32x96xf32>, vector<2x96xf32> -> vector<2x96xf32>
    %327 = arith.addf %326, %46 : vector<2x96xf32>
    %328 = vector.extract_strided_slice %327 {offsets = [0, 0], sizes = [2, 32], strides = [1, 1]} : vector<2x96xf32> to vector<2x32xf32>
    %329 = arith.addf %319, %328 : vector<2x32xf32>
    %330 = arith.negf %329 : vector<2x32xf32>
    %331 = math.exp %330 : vector<2x32xf32>
    %cst_162 = arith.constant 1.000000e+00 : f32
    %332 = vector.broadcast %cst_162 : f32 to vector<2x32xf32>
    %333 = arith.addf %332, %331 : vector<2x32xf32>
    %334 = arith.divf %332, %333 : vector<2x32xf32>
    %335 = vector.extract_strided_slice %327 {offsets = [0, 32], sizes = [2, 32], strides = [1, 1]} : vector<2x96xf32> to vector<2x32xf32>
    %336 = arith.addf %322, %335 : vector<2x32xf32>
    %337 = arith.negf %336 : vector<2x32xf32>
    %338 = math.exp %337 : vector<2x32xf32>
    %cst_163 = arith.constant 1.000000e+00 : f32
    %339 = vector.broadcast %cst_163 : f32 to vector<2x32xf32>
    %340 = arith.addf %339, %338 : vector<2x32xf32>
    %341 = arith.divf %339, %340 : vector<2x32xf32>
    %342 = vector.extract_strided_slice %327 {offsets = [0, 64], sizes = [2, 32], strides = [1, 1]} : vector<2x96xf32> to vector<2x32xf32>
    %343 = arith.mulf %334, %342 : vector<2x32xf32>
    %344 = arith.addf %325, %343 : vector<2x32xf32>
    %345 = math.tanh %344 : vector<2x32xf32>
    %cst_164 = arith.constant 1.000000e+00 : f32
    %346 = vector.broadcast %cst_164 : f32 to vector<2x32xf32>
    %347 = arith.subf %346, %341 : vector<2x32xf32>
    %348 = arith.mulf %347, %345 : vector<2x32xf32>
    %349 = arith.mulf %341, %273 : vector<2x32xf32>
    %350 = arith.addf %348, %349 : vector<2x32xf32>
    %351 = arith.index_cast %c3_i32 : i32 to index
    %c0_165 = arith.constant 0 : index
    %c0_166 = arith.constant 0 : index
    %352 = vector.load %arg24[%351, %c0_165, %c0_166] : memref<8x2x32xf32, #tpu.memory_space<vmem>>, vector<1x2x32xf32>
    %353 = vector.shape_cast %352 : vector<1x2x32xf32> to vector<2x32xf32>
    %354 = vector.shape_cast %316 : vector<2x32xf32> to vector<1x2x32xf32>
    tpu.vector_store %arg24[%351, %c0_165, %c0_166], %354 {strides = array<i32>} : memref<8x2x32xf32, #tpu.memory_space<vmem>>, vector<1x2x32xf32>,
    %355 = arith.index_cast %282 : i32 to index
    %c0_167 = arith.constant 0 : index
    %c0_168 = arith.constant 0 : index
    %356 = vector.load %arg25[%355, %c0_167, %c0_168] : memref<8x2x32xf32, #tpu.memory_space<vmem>>, vector<1x2x32xf32>
    %357 = vector.shape_cast %356 : vector<1x2x32xf32> to vector<2x32xf32>
    %358 = vector.shape_cast %350 : vector<2x32xf32> to vector<1x2x32xf32>
    tpu.vector_store %arg25[%355, %c0_167, %c0_168], %358 {strides = array<i32>} : memref<8x2x32xf32, #tpu.memory_space<vmem>>, vector<1x2x32xf32>,
    %c4_i32 = arith.constant 4 : i32
    %c7_i32_169 = arith.constant 7 : i32
    %359 = arith.subi %c7_i32_169, %c4_i32 : i32
    %c0_170 = arith.constant 0 : index
    %360 = arith.index_cast %c4_i32 : i32 to index
    %c0_171 = arith.constant 0 : index
    %c0_172 = arith.constant 0 : index
    %361 = vector.load %arg21[%c0_170, %360, %c0_171, %c0_172] : memref<3x8x2x32xf32, #tpu.memory_space<vmem>>, vector<1x1x2x32xf32>
    %362 = vector.shape_cast %361 : vector<1x1x2x32xf32> to vector<2x32xf32>
    %c1_173 = arith.constant 1 : index
    %363 = arith.index_cast %c4_i32 : i32 to index
    %c0_174 = arith.constant 0 : index
    %c0_175 = arith.constant 0 : index
    %364 = vector.load %arg21[%c1_173, %363, %c0_174, %c0_175] : memref<3x8x2x32xf32, #tpu.memory_space<vmem>>, vector<1x1x2x32xf32>
    %365 = vector.shape_cast %364 : vector<1x1x2x32xf32> to vector<2x32xf32>
    %c2_176 = arith.constant 2 : index
    %366 = arith.index_cast %c4_i32 : i32 to index
    %c0_177 = arith.constant 0 : index
    %c0_178 = arith.constant 0 : index
    %367 = vector.load %arg21[%c2_176, %366, %c0_177, %c0_178] : memref<3x8x2x32xf32, #tpu.memory_space<vmem>>, vector<1x1x2x32xf32>
    %368 = vector.shape_cast %367 : vector<1x1x2x32xf32> to vector<2x32xf32>
    %cst_179 = arith.constant dense<0.000000e+00> : vector<2x96xf32>
    %369 = tpu.matmul %316, %38, %cst_179 {dimension_numbers = #tpu.dot_dimension_numbers<[1], [0], [0], [1], [0, 0, 1, 1], [], []>} : vector<2x32xf32>, vector<32x96xf32>, vector<2x96xf32> -> vector<2x96xf32>
    %370 = arith.addf %369, %43 : vector<2x96xf32>
    %371 = vector.extract_strided_slice %370 {offsets = [0, 0], sizes = [2, 32], strides = [1, 1]} : vector<2x96xf32> to vector<2x32xf32>
    %372 = arith.addf %362, %371 : vector<2x32xf32>
    %373 = arith.negf %372 : vector<2x32xf32>
    %374 = math.exp %373 : vector<2x32xf32>
    %cst_180 = arith.constant 1.000000e+00 : f32
    %375 = vector.broadcast %cst_180 : f32 to vector<2x32xf32>
    %376 = arith.addf %375, %374 : vector<2x32xf32>
    %377 = arith.divf %375, %376 : vector<2x32xf32>
    %378 = vector.extract_strided_slice %370 {offsets = [0, 32], sizes = [2, 32], strides = [1, 1]} : vector<2x96xf32> to vector<2x32xf32>
    %379 = arith.addf %365, %378 : vector<2x32xf32>
    %380 = arith.negf %379 : vector<2x32xf32>
    %381 = math.exp %380 : vector<2x32xf32>
    %cst_181 = arith.constant 1.000000e+00 : f32
    %382 = vector.broadcast %cst_181 : f32 to vector<2x32xf32>
    %383 = arith.addf %382, %381 : vector<2x32xf32>
    %384 = arith.divf %382, %383 : vector<2x32xf32>
    %385 = vector.extract_strided_slice %370 {offsets = [0, 64], sizes = [2, 32], strides = [1, 1]} : vector<2x96xf32> to vector<2x32xf32>
    %386 = arith.mulf %377, %385 : vector<2x32xf32>
    %387 = arith.addf %368, %386 : vector<2x32xf32>
    %388 = math.tanh %387 : vector<2x32xf32>
    %cst_182 = arith.constant 1.000000e+00 : f32
    %389 = vector.broadcast %cst_182 : f32 to vector<2x32xf32>
    %390 = arith.subf %389, %384 : vector<2x32xf32>
    %391 = arith.mulf %390, %388 : vector<2x32xf32>
    %392 = arith.mulf %384, %316 : vector<2x32xf32>
    %393 = arith.addf %391, %392 : vector<2x32xf32>
    %c0_183 = arith.constant 0 : index
    %394 = arith.index_cast %359 : i32 to index
    %c0_184 = arith.constant 0 : index
    %c0_185 = arith.constant 0 : index
    %395 = vector.load %arg22[%c0_183, %394, %c0_184, %c0_185] : memref<3x8x2x32xf32, #tpu.memory_space<vmem>>, vector<1x1x2x32xf32>
    %396 = vector.shape_cast %395 : vector<1x1x2x32xf32> to vector<2x32xf32>
    %c1_186 = arith.constant 1 : index
    %397 = arith.index_cast %359 : i32 to index
    %c0_187 = arith.constant 0 : index
    %c0_188 = arith.constant 0 : index
    %398 = vector.load %arg22[%c1_186, %397, %c0_187, %c0_188] : memref<3x8x2x32xf32, #tpu.memory_space<vmem>>, vector<1x1x2x32xf32>
    %399 = vector.shape_cast %398 : vector<1x1x2x32xf32> to vector<2x32xf32>
    %c2_189 = arith.constant 2 : index
    %400 = arith.index_cast %359 : i32 to index
    %c0_190 = arith.constant 0 : index
    %c0_191 = arith.constant 0 : index
    %401 = vector.load %arg22[%c2_189, %400, %c0_190, %c0_191] : memref<3x8x2x32xf32, #tpu.memory_space<vmem>>, vector<1x1x2x32xf32>
    %402 = vector.shape_cast %401 : vector<1x1x2x32xf32> to vector<2x32xf32>
    %cst_192 = arith.constant dense<0.000000e+00> : vector<2x96xf32>
    %403 = tpu.matmul %350, %39, %cst_192 {dimension_numbers = #tpu.dot_dimension_numbers<[1], [0], [0], [1], [0, 0, 1, 1], [], []>} : vector<2x32xf32>, vector<32x96xf32>, vector<2x96xf32> -> vector<2x96xf32>
    %404 = arith.addf %403, %46 : vector<2x96xf32>
    %405 = vector.extract_strided_slice %404 {offsets = [0, 0], sizes = [2, 32], strides = [1, 1]} : vector<2x96xf32> to vector<2x32xf32>
    %406 = arith.addf %396, %405 : vector<2x32xf32>
    %407 = arith.negf %406 : vector<2x32xf32>
    %408 = math.exp %407 : vector<2x32xf32>
    %cst_193 = arith.constant 1.000000e+00 : f32
    %409 = vector.broadcast %cst_193 : f32 to vector<2x32xf32>
    %410 = arith.addf %409, %408 : vector<2x32xf32>
    %411 = arith.divf %409, %410 : vector<2x32xf32>
    %412 = vector.extract_strided_slice %404 {offsets = [0, 32], sizes = [2, 32], strides = [1, 1]} : vector<2x96xf32> to vector<2x32xf32>
    %413 = arith.addf %399, %412 : vector<2x32xf32>
    %414 = arith.negf %413 : vector<2x32xf32>
    %415 = math.exp %414 : vector<2x32xf32>
    %cst_194 = arith.constant 1.000000e+00 : f32
    %416 = vector.broadcast %cst_194 : f32 to vector<2x32xf32>
    %417 = arith.addf %416, %415 : vector<2x32xf32>
    %418 = arith.divf %416, %417 : vector<2x32xf32>
    %419 = vector.extract_strided_slice %404 {offsets = [0, 64], sizes = [2, 32], strides = [1, 1]} : vector<2x96xf32> to vector<2x32xf32>
    %420 = arith.mulf %411, %419 : vector<2x32xf32>
    %421 = arith.addf %402, %420 : vector<2x32xf32>
    %422 = math.tanh %421 : vector<2x32xf32>
    %cst_195 = arith.constant 1.000000e+00 : f32
    %423 = vector.broadcast %cst_195 : f32 to vector<2x32xf32>
    %424 = arith.subf %423, %418 : vector<2x32xf32>
    %425 = arith.mulf %424, %422 : vector<2x32xf32>
    %426 = arith.mulf %418, %350 : vector<2x32xf32>
    %427 = arith.addf %425, %426 : vector<2x32xf32>
    %428 = arith.index_cast %c4_i32 : i32 to index
    %c0_196 = arith.constant 0 : index
    %c0_197 = arith.constant 0 : index
    %429 = vector.load %arg24[%428, %c0_196, %c0_197] : memref<8x2x32xf32, #tpu.memory_space<vmem>>, vector<1x2x32xf32>
    %430 = vector.shape_cast %429 : vector<1x2x32xf32> to vector<2x32xf32>
    %431 = vector.shape_cast %393 : vector<2x32xf32> to vector<1x2x32xf32>
    tpu.vector_store %arg24[%428, %c0_196, %c0_197], %431 {strides = array<i32>} : memref<8x2x32xf32, #tpu.memory_space<vmem>>, vector<1x2x32xf32>,
    %432 = arith.index_cast %359 : i32 to index
    %c0_198 = arith.constant 0 : index
    %c0_199 = arith.constant 0 : index
    %433 = vector.load %arg25[%432, %c0_198, %c0_199] : memref<8x2x32xf32, #tpu.memory_space<vmem>>, vector<1x2x32xf32>
    %434 = vector.shape_cast %433 : vector<1x2x32xf32> to vector<2x32xf32>
    %435 = vector.shape_cast %427 : vector<2x32xf32> to vector<1x2x32xf32>
    tpu.vector_store %arg25[%432, %c0_198, %c0_199], %435 {strides = array<i32>} : memref<8x2x32xf32, #tpu.memory_space<vmem>>, vector<1x2x32xf32>,
    %c5_i32 = arith.constant 5 : i32
    %c7_i32_200 = arith.constant 7 : i32
    %436 = arith.subi %c7_i32_200, %c5_i32 : i32
    %c0_201 = arith.constant 0 : index
    %437 = arith.index_cast %c5_i32 : i32 to index
    %c0_202 = arith.constant 0 : index
    %c0_203 = arith.constant 0 : index
    %438 = vector.load %arg21[%c0_201, %437, %c0_202, %c0_203] : memref<3x8x2x32xf32, #tpu.memory_space<vmem>>, vector<1x1x2x32xf32>
    %439 = vector.shape_cast %438 : vector<1x1x2x32xf32> to vector<2x32xf32>
    %c1_204 = arith.constant 1 : index
    %440 = arith.index_cast %c5_i32 : i32 to index
    %c0_205 = arith.constant 0 : index
    %c0_206 = arith.constant 0 : index
    %441 = vector.load %arg21[%c1_204, %440, %c0_205, %c0_206] : memref<3x8x2x32xf32, #tpu.memory_space<vmem>>, vector<1x1x2x32xf32>
    %442 = vector.shape_cast %441 : vector<1x1x2x32xf32> to vector<2x32xf32>
    %c2_207 = arith.constant 2 : index
    %443 = arith.index_cast %c5_i32 : i32 to index
    %c0_208 = arith.constant 0 : index
    %c0_209 = arith.constant 0 : index
    %444 = vector.load %arg21[%c2_207, %443, %c0_208, %c0_209] : memref<3x8x2x32xf32, #tpu.memory_space<vmem>>, vector<1x1x2x32xf32>
    %445 = vector.shape_cast %444 : vector<1x1x2x32xf32> to vector<2x32xf32>
    %cst_210 = arith.constant dense<0.000000e+00> : vector<2x96xf32>
    %446 = tpu.matmul %393, %38, %cst_210 {dimension_numbers = #tpu.dot_dimension_numbers<[1], [0], [0], [1], [0, 0, 1, 1], [], []>} : vector<2x32xf32>, vector<32x96xf32>, vector<2x96xf32> -> vector<2x96xf32>
    %447 = arith.addf %446, %43 : vector<2x96xf32>
    %448 = vector.extract_strided_slice %447 {offsets = [0, 0], sizes = [2, 32], strides = [1, 1]} : vector<2x96xf32> to vector<2x32xf32>
    %449 = arith.addf %439, %448 : vector<2x32xf32>
    %450 = arith.negf %449 : vector<2x32xf32>
    %451 = math.exp %450 : vector<2x32xf32>
    %cst_211 = arith.constant 1.000000e+00 : f32
    %452 = vector.broadcast %cst_211 : f32 to vector<2x32xf32>
    %453 = arith.addf %452, %451 : vector<2x32xf32>
    %454 = arith.divf %452, %453 : vector<2x32xf32>
    %455 = vector.extract_strided_slice %447 {offsets = [0, 32], sizes = [2, 32], strides = [1, 1]} : vector<2x96xf32> to vector<2x32xf32>
    %456 = arith.addf %442, %455 : vector<2x32xf32>
    %457 = arith.negf %456 : vector<2x32xf32>
    %458 = math.exp %457 : vector<2x32xf32>
    %cst_212 = arith.constant 1.000000e+00 : f32
    %459 = vector.broadcast %cst_212 : f32 to vector<2x32xf32>
    %460 = arith.addf %459, %458 : vector<2x32xf32>
    %461 = arith.divf %459, %460 : vector<2x32xf32>
    %462 = vector.extract_strided_slice %447 {offsets = [0, 64], sizes = [2, 32], strides = [1, 1]} : vector<2x96xf32> to vector<2x32xf32>
    %463 = arith.mulf %454, %462 : vector<2x32xf32>
    %464 = arith.addf %445, %463 : vector<2x32xf32>
    %465 = math.tanh %464 : vector<2x32xf32>
    %cst_213 = arith.constant 1.000000e+00 : f32
    %466 = vector.broadcast %cst_213 : f32 to vector<2x32xf32>
    %467 = arith.subf %466, %461 : vector<2x32xf32>
    %468 = arith.mulf %467, %465 : vector<2x32xf32>
    %469 = arith.mulf %461, %393 : vector<2x32xf32>
    %470 = arith.addf %468, %469 : vector<2x32xf32>
    %c0_214 = arith.constant 0 : index
    %471 = arith.index_cast %436 : i32 to index
    %c0_215 = arith.constant 0 : index
    %c0_216 = arith.constant 0 : index
    %472 = vector.load %arg22[%c0_214, %471, %c0_215, %c0_216] : memref<3x8x2x32xf32, #tpu.memory_space<vmem>>, vector<1x1x2x32xf32>
    %473 = vector.shape_cast %472 : vector<1x1x2x32xf32> to vector<2x32xf32>
    %c1_217 = arith.constant 1 : index
    %474 = arith.index_cast %436 : i32 to index
    %c0_218 = arith.constant 0 : index
    %c0_219 = arith.constant 0 : index
    %475 = vector.load %arg22[%c1_217, %474, %c0_218, %c0_219] : memref<3x8x2x32xf32, #tpu.memory_space<vmem>>, vector<1x1x2x32xf32>
    %476 = vector.shape_cast %475 : vector<1x1x2x32xf32> to vector<2x32xf32>
    %c2_220 = arith.constant 2 : index
    %477 = arith.index_cast %436 : i32 to index
    %c0_221 = arith.constant 0 : index
    %c0_222 = arith.constant 0 : index
    %478 = vector.load %arg22[%c2_220, %477, %c0_221, %c0_222] : memref<3x8x2x32xf32, #tpu.memory_space<vmem>>, vector<1x1x2x32xf32>
    %479 = vector.shape_cast %478 : vector<1x1x2x32xf32> to vector<2x32xf32>
    %cst_223 = arith.constant dense<0.000000e+00> : vector<2x96xf32>
    %480 = tpu.matmul %427, %39, %cst_223 {dimension_numbers = #tpu.dot_dimension_numbers<[1], [0], [0], [1], [0, 0, 1, 1], [], []>} : vector<2x32xf32>, vector<32x96xf32>, vector<2x96xf32> -> vector<2x96xf32>
    %481 = arith.addf %480, %46 : vector<2x96xf32>
    %482 = vector.extract_strided_slice %481 {offsets = [0, 0], sizes = [2, 32], strides = [1, 1]} : vector<2x96xf32> to vector<2x32xf32>
    %483 = arith.addf %473, %482 : vector<2x32xf32>
    %484 = arith.negf %483 : vector<2x32xf32>
    %485 = math.exp %484 : vector<2x32xf32>
    %cst_224 = arith.constant 1.000000e+00 : f32
    %486 = vector.broadcast %cst_224 : f32 to vector<2x32xf32>
    %487 = arith.addf %486, %485 : vector<2x32xf32>
    %488 = arith.divf %486, %487 : vector<2x32xf32>
    %489 = vector.extract_strided_slice %481 {offsets = [0, 32], sizes = [2, 32], strides = [1, 1]} : vector<2x96xf32> to vector<2x32xf32>
    %490 = arith.addf %476, %489 : vector<2x32xf32>
    %491 = arith.negf %490 : vector<2x32xf32>
    %492 = math.exp %491 : vector<2x32xf32>
    %cst_225 = arith.constant 1.000000e+00 : f32
    %493 = vector.broadcast %cst_225 : f32 to vector<2x32xf32>
    %494 = arith.addf %493, %492 : vector<2x32xf32>
    %495 = arith.divf %493, %494 : vector<2x32xf32>
    %496 = vector.extract_strided_slice %481 {offsets = [0, 64], sizes = [2, 32], strides = [1, 1]} : vector<2x96xf32> to vector<2x32xf32>
    %497 = arith.mulf %488, %496 : vector<2x32xf32>
    %498 = arith.addf %479, %497 : vector<2x32xf32>
    %499 = math.tanh %498 : vector<2x32xf32>
    %cst_226 = arith.constant 1.000000e+00 : f32
    %500 = vector.broadcast %cst_226 : f32 to vector<2x32xf32>
    %501 = arith.subf %500, %495 : vector<2x32xf32>
    %502 = arith.mulf %501, %499 : vector<2x32xf32>
    %503 = arith.mulf %495, %427 : vector<2x32xf32>
    %504 = arith.addf %502, %503 : vector<2x32xf32>
    %505 = arith.index_cast %c5_i32 : i32 to index
    %c0_227 = arith.constant 0 : index
    %c0_228 = arith.constant 0 : index
    %506 = vector.load %arg24[%505, %c0_227, %c0_228] : memref<8x2x32xf32, #tpu.memory_space<vmem>>, vector<1x2x32xf32>
    %507 = vector.shape_cast %506 : vector<1x2x32xf32> to vector<2x32xf32>
    %508 = vector.shape_cast %470 : vector<2x32xf32> to vector<1x2x32xf32>
    tpu.vector_store %arg24[%505, %c0_227, %c0_228], %508 {strides = array<i32>} : memref<8x2x32xf32, #tpu.memory_space<vmem>>, vector<1x2x32xf32>,
    %509 = arith.index_cast %436 : i32 to index
    %c0_229 = arith.constant 0 : index
    %c0_230 = arith.constant 0 : index
    %510 = vector.load %arg25[%509, %c0_229, %c0_230] : memref<8x2x32xf32, #tpu.memory_space<vmem>>, vector<1x2x32xf32>
    %511 = vector.shape_cast %510 : vector<1x2x32xf32> to vector<2x32xf32>
    %512 = vector.shape_cast %504 : vector<2x32xf32> to vector<1x2x32xf32>
    tpu.vector_store %arg25[%509, %c0_229, %c0_230], %512 {strides = array<i32>} : memref<8x2x32xf32, #tpu.memory_space<vmem>>, vector<1x2x32xf32>,
    %c6_i32 = arith.constant 6 : i32
    %c7_i32_231 = arith.constant 7 : i32
    %513 = arith.subi %c7_i32_231, %c6_i32 : i32
    %c0_232 = arith.constant 0 : index
    %514 = arith.index_cast %c6_i32 : i32 to index
    %c0_233 = arith.constant 0 : index
    %c0_234 = arith.constant 0 : index
    %515 = vector.load %arg21[%c0_232, %514, %c0_233, %c0_234] : memref<3x8x2x32xf32, #tpu.memory_space<vmem>>, vector<1x1x2x32xf32>
    %516 = vector.shape_cast %515 : vector<1x1x2x32xf32> to vector<2x32xf32>
    %c1_235 = arith.constant 1 : index
    %517 = arith.index_cast %c6_i32 : i32 to index
    %c0_236 = arith.constant 0 : index
    %c0_237 = arith.constant 0 : index
    %518 = vector.load %arg21[%c1_235, %517, %c0_236, %c0_237] : memref<3x8x2x32xf32, #tpu.memory_space<vmem>>, vector<1x1x2x32xf32>
    %519 = vector.shape_cast %518 : vector<1x1x2x32xf32> to vector<2x32xf32>
    %c2_238 = arith.constant 2 : index
    %520 = arith.index_cast %c6_i32 : i32 to index
    %c0_239 = arith.constant 0 : index
    %c0_240 = arith.constant 0 : index
    %521 = vector.load %arg21[%c2_238, %520, %c0_239, %c0_240] : memref<3x8x2x32xf32, #tpu.memory_space<vmem>>, vector<1x1x2x32xf32>
    %522 = vector.shape_cast %521 : vector<1x1x2x32xf32> to vector<2x32xf32>
    %cst_241 = arith.constant dense<0.000000e+00> : vector<2x96xf32>
    %523 = tpu.matmul %470, %38, %cst_241 {dimension_numbers = #tpu.dot_dimension_numbers<[1], [0], [0], [1], [0, 0, 1, 1], [], []>} : vector<2x32xf32>, vector<32x96xf32>, vector<2x96xf32> -> vector<2x96xf32>
    %524 = arith.addf %523, %43 : vector<2x96xf32>
    %525 = vector.extract_strided_slice %524 {offsets = [0, 0], sizes = [2, 32], strides = [1, 1]} : vector<2x96xf32> to vector<2x32xf32>
    %526 = arith.addf %516, %525 : vector<2x32xf32>
    %527 = arith.negf %526 : vector<2x32xf32>
    %528 = math.exp %527 : vector<2x32xf32>
    %cst_242 = arith.constant 1.000000e+00 : f32
    %529 = vector.broadcast %cst_242 : f32 to vector<2x32xf32>
    %530 = arith.addf %529, %528 : vector<2x32xf32>
    %531 = arith.divf %529, %530 : vector<2x32xf32>
    %532 = vector.extract_strided_slice %524 {offsets = [0, 32], sizes = [2, 32], strides = [1, 1]} : vector<2x96xf32> to vector<2x32xf32>
    %533 = arith.addf %519, %532 : vector<2x32xf32>
    %534 = arith.negf %533 : vector<2x32xf32>
    %535 = math.exp %534 : vector<2x32xf32>
    %cst_243 = arith.constant 1.000000e+00 : f32
    %536 = vector.broadcast %cst_243 : f32 to vector<2x32xf32>
    %537 = arith.addf %536, %535 : vector<2x32xf32>
    %538 = arith.divf %536, %537 : vector<2x32xf32>
    %539 = vector.extract_strided_slice %524 {offsets = [0, 64], sizes = [2, 32], strides = [1, 1]} : vector<2x96xf32> to vector<2x32xf32>
    %540 = arith.mulf %531, %539 : vector<2x32xf32>
    %541 = arith.addf %522, %540 : vector<2x32xf32>
    %542 = math.tanh %541 : vector<2x32xf32>
    %cst_244 = arith.constant 1.000000e+00 : f32
    %543 = vector.broadcast %cst_244 : f32 to vector<2x32xf32>
    %544 = arith.subf %543, %538 : vector<2x32xf32>
    %545 = arith.mulf %544, %542 : vector<2x32xf32>
    %546 = arith.mulf %538, %470 : vector<2x32xf32>
    %547 = arith.addf %545, %546 : vector<2x32xf32>
    %c0_245 = arith.constant 0 : index
    %548 = arith.index_cast %513 : i32 to index
    %c0_246 = arith.constant 0 : index
    %c0_247 = arith.constant 0 : index
    %549 = vector.load %arg22[%c0_245, %548, %c0_246, %c0_247] : memref<3x8x2x32xf32, #tpu.memory_space<vmem>>, vector<1x1x2x32xf32>
    %550 = vector.shape_cast %549 : vector<1x1x2x32xf32> to vector<2x32xf32>
    %c1_248 = arith.constant 1 : index
    %551 = arith.index_cast %513 : i32 to index
    %c0_249 = arith.constant 0 : index
    %c0_250 = arith.constant 0 : index
    %552 = vector.load %arg22[%c1_248, %551, %c0_249, %c0_250] : memref<3x8x2x32xf32, #tpu.memory_space<vmem>>, vector<1x1x2x32xf32>
    %553 = vector.shape_cast %552 : vector<1x1x2x32xf32> to vector<2x32xf32>
    %c2_251 = arith.constant 2 : index
    %554 = arith.index_cast %513 : i32 to index
    %c0_252 = arith.constant 0 : index
    %c0_253 = arith.constant 0 : index
    %555 = vector.load %arg22[%c2_251, %554, %c0_252, %c0_253] : memref<3x8x2x32xf32, #tpu.memory_space<vmem>>, vector<1x1x2x32xf32>
    %556 = vector.shape_cast %555 : vector<1x1x2x32xf32> to vector<2x32xf32>
    %cst_254 = arith.constant dense<0.000000e+00> : vector<2x96xf32>
    %557 = tpu.matmul %504, %39, %cst_254 {dimension_numbers = #tpu.dot_dimension_numbers<[1], [0], [0], [1], [0, 0, 1, 1], [], []>} : vector<2x32xf32>, vector<32x96xf32>, vector<2x96xf32> -> vector<2x96xf32>
    %558 = arith.addf %557, %46 : vector<2x96xf32>
    %559 = vector.extract_strided_slice %558 {offsets = [0, 0], sizes = [2, 32], strides = [1, 1]} : vector<2x96xf32> to vector<2x32xf32>
    %560 = arith.addf %550, %559 : vector<2x32xf32>
    %561 = arith.negf %560 : vector<2x32xf32>
    %562 = math.exp %561 : vector<2x32xf32>
    %cst_255 = arith.constant 1.000000e+00 : f32
    %563 = vector.broadcast %cst_255 : f32 to vector<2x32xf32>
    %564 = arith.addf %563, %562 : vector<2x32xf32>
    %565 = arith.divf %563, %564 : vector<2x32xf32>
    %566 = vector.extract_strided_slice %558 {offsets = [0, 32], sizes = [2, 32], strides = [1, 1]} : vector<2x96xf32> to vector<2x32xf32>
    %567 = arith.addf %553, %566 : vector<2x32xf32>
    %568 = arith.negf %567 : vector<2x32xf32>
    %569 = math.exp %568 : vector<2x32xf32>
    %cst_256 = arith.constant 1.000000e+00 : f32
    %570 = vector.broadcast %cst_256 : f32 to vector<2x32xf32>
    %571 = arith.addf %570, %569 : vector<2x32xf32>
    %572 = arith.divf %570, %571 : vector<2x32xf32>
    %573 = vector.extract_strided_slice %558 {offsets = [0, 64], sizes = [2, 32], strides = [1, 1]} : vector<2x96xf32> to vector<2x32xf32>
    %574 = arith.mulf %565, %573 : vector<2x32xf32>
    %575 = arith.addf %556, %574 : vector<2x32xf32>
    %576 = math.tanh %575 : vector<2x32xf32>
    %cst_257 = arith.constant 1.000000e+00 : f32
    %577 = vector.broadcast %cst_257 : f32 to vector<2x32xf32>
    %578 = arith.subf %577, %572 : vector<2x32xf32>
    %579 = arith.mulf %578, %576 : vector<2x32xf32>
    %580 = arith.mulf %572, %504 : vector<2x32xf32>
    %581 = arith.addf %579, %580 : vector<2x32xf32>
    %582 = arith.index_cast %c6_i32 : i32 to index
    %c0_258 = arith.constant 0 : index
    %c0_259 = arith.constant 0 : index
    %583 = vector.load %arg24[%582, %c0_258, %c0_259] : memref<8x2x32xf32, #tpu.memory_space<vmem>>, vector<1x2x32xf32>
    %584 = vector.shape_cast %583 : vector<1x2x32xf32> to vector<2x32xf32>
    %585 = vector.shape_cast %547 : vector<2x32xf32> to vector<1x2x32xf32>
    tpu.vector_store %arg24[%582, %c0_258, %c0_259], %585 {strides = array<i32>} : memref<8x2x32xf32, #tpu.memory_space<vmem>>, vector<1x2x32xf32>,
    %586 = arith.index_cast %513 : i32 to index
    %c0_260 = arith.constant 0 : index
    %c0_261 = arith.constant 0 : index
    %587 = vector.load %arg25[%586, %c0_260, %c0_261] : memref<8x2x32xf32, #tpu.memory_space<vmem>>, vector<1x2x32xf32>
    %588 = vector.shape_cast %587 : vector<1x2x32xf32> to vector<2x32xf32>
    %589 = vector.shape_cast %581 : vector<2x32xf32> to vector<1x2x32xf32>
    tpu.vector_store %arg25[%586, %c0_260, %c0_261], %589 {strides = array<i32>} : memref<8x2x32xf32, #tpu.memory_space<vmem>>, vector<1x2x32xf32>,
    %c7_i32_262 = arith.constant 7 : i32
    %c7_i32_263 = arith.constant 7 : i32
    %590 = arith.subi %c7_i32_263, %c7_i32_262 : i32
    %c0_264 = arith.constant 0 : index
    %591 = arith.index_cast %c7_i32_262 : i32 to index
    %c0_265 = arith.constant 0 : index
    %c0_266 = arith.constant 0 : index
    %592 = vector.load %arg21[%c0_264, %591, %c0_265, %c0_266] : memref<3x8x2x32xf32, #tpu.memory_space<vmem>>, vector<1x1x2x32xf32>
    %593 = vector.shape_cast %592 : vector<1x1x2x32xf32> to vector<2x32xf32>
    %c1_267 = arith.constant 1 : index
    %594 = arith.index_cast %c7_i32_262 : i32 to index
    %c0_268 = arith.constant 0 : index
    %c0_269 = arith.constant 0 : index
    %595 = vector.load %arg21[%c1_267, %594, %c0_268, %c0_269] : memref<3x8x2x32xf32, #tpu.memory_space<vmem>>, vector<1x1x2x32xf32>
    %596 = vector.shape_cast %595 : vector<1x1x2x32xf32> to vector<2x32xf32>
    %c2_270 = arith.constant 2 : index
    %597 = arith.index_cast %c7_i32_262 : i32 to index
    %c0_271 = arith.constant 0 : index
    %c0_272 = arith.constant 0 : index
    %598 = vector.load %arg21[%c2_270, %597, %c0_271, %c0_272] : memref<3x8x2x32xf32, #tpu.memory_space<vmem>>, vector<1x1x2x32xf32>
    %599 = vector.shape_cast %598 : vector<1x1x2x32xf32> to vector<2x32xf32>
    %cst_273 = arith.constant dense<0.000000e+00> : vector<2x96xf32>
    %600 = tpu.matmul %547, %38, %cst_273 {dimension_numbers = #tpu.dot_dimension_numbers<[1], [0], [0], [1], [0, 0, 1, 1], [], []>} : vector<2x32xf32>, vector<32x96xf32>, vector<2x96xf32> -> vector<2x96xf32>
    %601 = arith.addf %600, %43 : vector<2x96xf32>
    %602 = vector.extract_strided_slice %601 {offsets = [0, 0], sizes = [2, 32], strides = [1, 1]} : vector<2x96xf32> to vector<2x32xf32>
    %603 = arith.addf %593, %602 : vector<2x32xf32>
    %604 = arith.negf %603 : vector<2x32xf32>
    %605 = math.exp %604 : vector<2x32xf32>
    %cst_274 = arith.constant 1.000000e+00 : f32
    %606 = vector.broadcast %cst_274 : f32 to vector<2x32xf32>
    %607 = arith.addf %606, %605 : vector<2x32xf32>
    %608 = arith.divf %606, %607 : vector<2x32xf32>
    %609 = vector.extract_strided_slice %601 {offsets = [0, 32], sizes = [2, 32], strides = [1, 1]} : vector<2x96xf32> to vector<2x32xf32>
    %610 = arith.addf %596, %609 : vector<2x32xf32>
    %611 = arith.negf %610 : vector<2x32xf32>
    %612 = math.exp %611 : vector<2x32xf32>
    %cst_275 = arith.constant 1.000000e+00 : f32
    %613 = vector.broadcast %cst_275 : f32 to vector<2x32xf32>
    %614 = arith.addf %613, %612 : vector<2x32xf32>
    %615 = arith.divf %613, %614 : vector<2x32xf32>
    %616 = vector.extract_strided_slice %601 {offsets = [0, 64], sizes = [2, 32], strides = [1, 1]} : vector<2x96xf32> to vector<2x32xf32>
    %617 = arith.mulf %608, %616 : vector<2x32xf32>
    %618 = arith.addf %599, %617 : vector<2x32xf32>
    %619 = math.tanh %618 : vector<2x32xf32>
    %cst_276 = arith.constant 1.000000e+00 : f32
    %620 = vector.broadcast %cst_276 : f32 to vector<2x32xf32>
    %621 = arith.subf %620, %615 : vector<2x32xf32>
    %622 = arith.mulf %621, %619 : vector<2x32xf32>
    %623 = arith.mulf %615, %547 : vector<2x32xf32>
    %624 = arith.addf %622, %623 : vector<2x32xf32>
    %c0_277 = arith.constant 0 : index
    %625 = arith.index_cast %590 : i32 to index
    %c0_278 = arith.constant 0 : index
    %c0_279 = arith.constant 0 : index
    %626 = vector.load %arg22[%c0_277, %625, %c0_278, %c0_279] : memref<3x8x2x32xf32, #tpu.memory_space<vmem>>, vector<1x1x2x32xf32>
    %627 = vector.shape_cast %626 : vector<1x1x2x32xf32> to vector<2x32xf32>
    %c1_280 = arith.constant 1 : index
    %628 = arith.index_cast %590 : i32 to index
    %c0_281 = arith.constant 0 : index
    %c0_282 = arith.constant 0 : index
    %629 = vector.load %arg22[%c1_280, %628, %c0_281, %c0_282] : memref<3x8x2x32xf32, #tpu.memory_space<vmem>>, vector<1x1x2x32xf32>
    %630 = vector.shape_cast %629 : vector<1x1x2x32xf32> to vector<2x32xf32>
    %c2_283 = arith.constant 2 : index
    %631 = arith.index_cast %590 : i32 to index
    %c0_284 = arith.constant 0 : index
    %c0_285 = arith.constant 0 : index
    %632 = vector.load %arg22[%c2_283, %631, %c0_284, %c0_285] : memref<3x8x2x32xf32, #tpu.memory_space<vmem>>, vector<1x1x2x32xf32>
    %633 = vector.shape_cast %632 : vector<1x1x2x32xf32> to vector<2x32xf32>
    %cst_286 = arith.constant dense<0.000000e+00> : vector<2x96xf32>
    %634 = tpu.matmul %581, %39, %cst_286 {dimension_numbers = #tpu.dot_dimension_numbers<[1], [0], [0], [1], [0, 0, 1, 1], [], []>} : vector<2x32xf32>, vector<32x96xf32>, vector<2x96xf32> -> vector<2x96xf32>
    %635 = arith.addf %634, %46 : vector<2x96xf32>
    %636 = vector.extract_strided_slice %635 {offsets = [0, 0], sizes = [2, 32], strides = [1, 1]} : vector<2x96xf32> to vector<2x32xf32>
    %637 = arith.addf %627, %636 : vector<2x32xf32>
    %638 = arith.negf %637 : vector<2x32xf32>
    %639 = math.exp %638 : vector<2x32xf32>
    %cst_287 = arith.constant 1.000000e+00 : f32
    %640 = vector.broadcast %cst_287 : f32 to vector<2x32xf32>
    %641 = arith.addf %640, %639 : vector<2x32xf32>
    %642 = arith.divf %640, %641 : vector<2x32xf32>
    %643 = vector.extract_strided_slice %635 {offsets = [0, 32], sizes = [2, 32], strides = [1, 1]} : vector<2x96xf32> to vector<2x32xf32>
    %644 = arith.addf %630, %643 : vector<2x32xf32>
    %645 = arith.negf %644 : vector<2x32xf32>
    %646 = math.exp %645 : vector<2x32xf32>
    %cst_288 = arith.constant 1.000000e+00 : f32
    %647 = vector.broadcast %cst_288 : f32 to vector<2x32xf32>
    %648 = arith.addf %647, %646 : vector<2x32xf32>
    %649 = arith.divf %647, %648 : vector<2x32xf32>
    %650 = vector.extract_strided_slice %635 {offsets = [0, 64], sizes = [2, 32], strides = [1, 1]} : vector<2x96xf32> to vector<2x32xf32>
    %651 = arith.mulf %642, %650 : vector<2x32xf32>
    %652 = arith.addf %633, %651 : vector<2x32xf32>
    %653 = math.tanh %652 : vector<2x32xf32>
    %cst_289 = arith.constant 1.000000e+00 : f32
    %654 = vector.broadcast %cst_289 : f32 to vector<2x32xf32>
    %655 = arith.subf %654, %649 : vector<2x32xf32>
    %656 = arith.mulf %655, %653 : vector<2x32xf32>
    %657 = arith.mulf %649, %581 : vector<2x32xf32>
    %658 = arith.addf %656, %657 : vector<2x32xf32>
    %659 = arith.index_cast %c7_i32_262 : i32 to index
    %c0_290 = arith.constant 0 : index
    %c0_291 = arith.constant 0 : index
    %660 = vector.load %arg24[%659, %c0_290, %c0_291] : memref<8x2x32xf32, #tpu.memory_space<vmem>>, vector<1x2x32xf32>
    %661 = vector.shape_cast %660 : vector<1x2x32xf32> to vector<2x32xf32>
    %662 = vector.shape_cast %624 : vector<2x32xf32> to vector<1x2x32xf32>
    tpu.vector_store %arg24[%659, %c0_290, %c0_291], %662 {strides = array<i32>} : memref<8x2x32xf32, #tpu.memory_space<vmem>>, vector<1x2x32xf32>,
    %663 = arith.index_cast %590 : i32 to index
    %c0_292 = arith.constant 0 : index
    %c0_293 = arith.constant 0 : index
    %664 = vector.load %arg25[%663, %c0_292, %c0_293] : memref<8x2x32xf32, #tpu.memory_space<vmem>>, vector<1x2x32xf32>
    %665 = vector.shape_cast %664 : vector<1x2x32xf32> to vector<2x32xf32>
    %666 = vector.shape_cast %658 : vector<2x32xf32> to vector<1x2x32xf32>
    tpu.vector_store %arg25[%663, %c0_292, %c0_293], %666 {strides = array<i32>} : memref<8x2x32xf32, #tpu.memory_space<vmem>>, vector<1x2x32xf32>,
    %c8_i32 = arith.constant 8 : i32
    %667 = arith.addf %624, %658 : vector<2x32xf32>
    %c0_294 = arith.constant 0 : index
    %c0_295 = arith.constant 0 : index
    %c0_296 = arith.constant 0 : index
    %668 = vector.load %arg24[%c0_294, %c0_295, %c0_296] : memref<8x2x32xf32, #tpu.memory_space<vmem>>, vector<8x2x32xf32>
    %c0_297 = arith.constant 0 : index
    %c0_298 = arith.constant 0 : index
    %c0_299 = arith.constant 0 : index
    %669 = vector.load %arg25[%c0_297, %c0_298, %c0_299] : memref<8x2x32xf32, #tpu.memory_space<vmem>>, vector<8x2x32xf32>
    %670 = arith.addf %668, %669 : vector<8x2x32xf32>
    %671 = vector.shape_cast %670 : vector<8x2x32xf32> to vector<16x32xf32>
    %c0_300 = arith.constant 0 : index
    %c0_301 = arith.constant 0 : index
    %672 = vector.load %arg10[%c0_300, %c0_301] : memref<32x32xf32, #tpu.memory_space<vmem>>, vector<32x32xf32>
    %cst_302 = arith.constant dense<0.000000e+00> : vector<16x32xf32>
    %673 = tpu.matmul %671, %672, %cst_302 {dimension_numbers = #tpu.dot_dimension_numbers<[1], [0], [0], [1], [0, 0, 1, 1], [], []>} : vector<16x32xf32>, vector<32x32xf32>, vector<16x32xf32> -> vector<16x32xf32>
    %674 = vector.shape_cast %673 : vector<16x32xf32> to vector<8x2x32xf32>
    %c0_303 = arith.constant 0 : index
    %c0_304 = arith.constant 0 : index
    %675 = vector.load %arg11[%c0_303, %c0_304] : memref<32x32xf32, #tpu.memory_space<vmem>>, vector<32x32xf32>
    %cst_305 = arith.constant dense<0.000000e+00> : vector<2x32xf32>
    %676 = tpu.matmul %667, %675, %cst_305 {dimension_numbers = #tpu.dot_dimension_numbers<[1], [0], [0], [1], [0, 0, 1, 1], [], []>} : vector<2x32xf32>, vector<32x32xf32>, vector<2x32xf32> -> vector<2x32xf32>
    %c0_306 = arith.constant 0 : index
    %c0_307 = arith.constant 0 : index
    %677 = vector.load %arg12[%c0_306, %c0_307] : memref<1x32xf32, #tpu.memory_space<vmem>>, vector<1x32xf32>
    %678 = vector.broadcast %677 : vector<1x32xf32> to vector<2x32xf32>
    %679 = arith.addf %676, %678 : vector<2x32xf32>
    %680 = vector.shape_cast %679 : vector<2x32xf32> to vector<1x2x32xf32>
    %681 = vector.broadcast %680 : vector<1x2x32xf32> to vector<8x2x32xf32>
    %682 = arith.addf %674, %681 : vector<8x2x32xf32>
    %683 = math.tanh %682 : vector<8x2x32xf32>
    %c0_308 = arith.constant 0 : index
    %c0_309 = arith.constant 0 : index
    %684 = vector.load %arg13[%c0_308, %c0_309] : memref<1x32xf32, #tpu.memory_space<vmem>>, vector<1x32xf32>
    %685 = vector.shape_cast %684 : vector<1x32xf32> to vector<1x1x32xf32>
    %686 = vector.broadcast %685 : vector<1x1x32xf32> to vector<8x2x32xf32>
    %687 = arith.mulf %683, %686 : vector<8x2x32xf32>
    %cst_310 = arith.constant dense<0.000000e+00> : vector<8x2xf32>
    %688 = vector.multi_reduction <add>, %687, %cst_310 [2] : vector<8x2x32xf32> to vector<8x2xf32>
    %c0_311 = arith.constant 0 : index
    %c0_312 = arith.constant 0 : index
    %689 = vector.load %arg14[%c0_311, %c0_312] : memref<1x1xf32, #tpu.memory_space<vmem>>, vector<1x1xf32>
    %690 = vector.broadcast %689 : vector<1x1xf32> to vector<8x2xf32>
    %691 = arith.addf %688, %690 : vector<8x2xf32>
    %c0_313 = arith.constant 0 : index
    %c0_314 = arith.constant 0 : index
    %692 = vector.load %arg1[%c0_313, %c0_314] : memref<8x2xi32, #tpu.memory_space<vmem>>, vector<8x2xi32>
    %c0_i32_315 = arith.constant 0 : i32
    %693 = vector.broadcast %c0_i32_315 : i32 to vector<8x2xi32>
    %694 = arith.cmpi eq, %692, %693 : vector<8x2xi32>
    %cst_316 = arith.constant -1.000000e+30 : f32
    %695 = vector.broadcast %cst_316 : f32 to vector<8x2xf32>
    %696 = arith.select %694, %695, %691 : vector<8x2xi1>, vector<8x2xf32>
    %cst_317 = arith.constant dense<0xFF800000> : vector<2xf32>
    %697 = vector.multi_reduction <maximumf>, %696, %cst_317 [0] : vector<8x2xf32> to vector<2xf32>
    %698 = vector.shape_cast %697 : vector<2xf32> to vector<1x2xf32>
    %699 = vector.broadcast %698 : vector<1x2xf32> to vector<8x2xf32>
    %700 = arith.subf %696, %699 : vector<8x2xf32>
    %701 = math.exp %700 : vector<8x2xf32>
    %cst_318 = arith.constant dense<0.000000e+00> : vector<2xf32>
    %702 = vector.multi_reduction <add>, %701, %cst_318 [0] : vector<8x2xf32> to vector<2xf32>
    %703 = vector.shape_cast %702 : vector<2xf32> to vector<1x2xf32>
    %704 = vector.broadcast %703 : vector<1x2xf32> to vector<8x2xf32>
    %705 = arith.divf %701, %704 : vector<8x2xf32>
    %c0_319 = arith.constant 0 : index
    %c0_320 = arith.constant 0 : index
    %706 = vector.load %arg15[%c0_319, %c0_320] : memref<32x96xf32, #tpu.memory_space<vmem>>, vector<32x96xf32>
    %cst_321 = arith.constant dense<0.000000e+00> : vector<16x96xf32>
    %707 = tpu.matmul %671, %706, %cst_321 {dimension_numbers = #tpu.dot_dimension_numbers<[1], [0], [0], [1], [0, 0, 1, 1], [], []>} : vector<16x32xf32>, vector<32x96xf32>, vector<16x96xf32> -> vector<16x96xf32>
    %708 = vector.shape_cast %707 : vector<16x96xf32> to vector<8x2x96xf32>
    %709 = vector.shape_cast %705 : vector<8x2xf32> to vector<8x2x1xf32>
    %710 = vector.broadcast %709 : vector<8x2x1xf32> to vector<8x2x96xf32>
    %711 = arith.mulf %708, %710 : vector<8x2x96xf32>
    %c0_322 = arith.constant 0 : index
    %c0_323 = arith.constant 0 : index
    %712 = vector.load %arg17[%c0_322, %c0_323] : memref<1x96xf32, #tpu.memory_space<vmem>>, vector<1x96xf32>
    %713 = vector.shape_cast %712 : vector<1x96xf32> to vector<1x1x96xf32>
    %714 = vector.broadcast %713 : vector<1x1x96xf32> to vector<8x2x96xf32>
    %715 = arith.addf %711, %714 : vector<8x2x96xf32>
    %716 = vector.extract_strided_slice %715 {offsets = [0, 0, 0], sizes = [8, 2, 32], strides = [1, 1, 1]} : vector<8x2x96xf32> to vector<8x2x32xf32>
    %c0_324 = arith.constant 0 : index
    %c0_325 = arith.constant 0 : index
    %c0_326 = arith.constant 0 : index
    %c0_327 = arith.constant 0 : index
    %717 = vector.load %arg23[%c0_324, %c0_325, %c0_326, %c0_327] : memref<3x8x2x32xf32, #tpu.memory_space<vmem>>, vector<1x8x2x32xf32>
    %718 = vector.shape_cast %717 : vector<1x8x2x32xf32> to vector<8x2x32xf32>
    %719 = vector.shape_cast %716 : vector<8x2x32xf32> to vector<1x8x2x32xf32>
    tpu.vector_store %arg23[%c0_324, %c0_325, %c0_326, %c0_327], %719 {strides = array<i32>} : memref<3x8x2x32xf32, #tpu.memory_space<vmem>>, vector<1x8x2x32xf32>,
    %720 = vector.extract_strided_slice %715 {offsets = [0, 0, 32], sizes = [8, 2, 32], strides = [1, 1, 1]} : vector<8x2x96xf32> to vector<8x2x32xf32>
    %c1_328 = arith.constant 1 : index
    %c0_329 = arith.constant 0 : index
    %c0_330 = arith.constant 0 : index
    %c0_331 = arith.constant 0 : index
    %721 = vector.load %arg23[%c1_328, %c0_329, %c0_330, %c0_331] : memref<3x8x2x32xf32, #tpu.memory_space<vmem>>, vector<1x8x2x32xf32>
    %722 = vector.shape_cast %721 : vector<1x8x2x32xf32> to vector<8x2x32xf32>
    %723 = vector.shape_cast %720 : vector<8x2x32xf32> to vector<1x8x2x32xf32>
    tpu.vector_store %arg23[%c1_328, %c0_329, %c0_330, %c0_331], %723 {strides = array<i32>} : memref<3x8x2x32xf32, #tpu.memory_space<vmem>>, vector<1x8x2x32xf32>,
    %724 = vector.extract_strided_slice %715 {offsets = [0, 0, 64], sizes = [8, 2, 32], strides = [1, 1, 1]} : vector<8x2x96xf32> to vector<8x2x32xf32>
    %c2_332 = arith.constant 2 : index
    %c0_333 = arith.constant 0 : index
    %c0_334 = arith.constant 0 : index
    %c0_335 = arith.constant 0 : index
    %725 = vector.load %arg23[%c2_332, %c0_333, %c0_334, %c0_335] : memref<3x8x2x32xf32, #tpu.memory_space<vmem>>, vector<1x8x2x32xf32>
    %726 = vector.shape_cast %725 : vector<1x8x2x32xf32> to vector<8x2x32xf32>
    %727 = vector.shape_cast %724 : vector<8x2x32xf32> to vector<1x8x2x32xf32>
    tpu.vector_store %arg23[%c2_332, %c0_333, %c0_334, %c0_335], %727 {strides = array<i32>} : memref<3x8x2x32xf32, #tpu.memory_space<vmem>>, vector<1x8x2x32xf32>,
    %c0_336 = arith.constant 0 : index
    %c0_337 = arith.constant 0 : index
    %c0_338 = arith.constant 0 : index
    %c0_339 = arith.constant 0 : index
    %728 = vector.load %arg23[%c0_336, %c0_337, %c0_338, %c0_339] : memref<3x8x2x32xf32, #tpu.memory_space<vmem>>, vector<1x1x2x32xf32>
    %729 = vector.shape_cast %728 : vector<1x1x2x32xf32> to vector<2x32xf32>
    %c1_340 = arith.constant 1 : index
    %c0_341 = arith.constant 0 : index
    %c0_342 = arith.constant 0 : index
    %c0_343 = arith.constant 0 : index
    %730 = vector.load %arg23[%c1_340, %c0_341, %c0_342, %c0_343] : memref<3x8x2x32xf32, #tpu.memory_space<vmem>>, vector<1x1x2x32xf32>
    %731 = vector.shape_cast %730 : vector<1x1x2x32xf32> to vector<2x32xf32>
    %c2_344 = arith.constant 2 : index
    %c0_345 = arith.constant 0 : index
    %c0_346 = arith.constant 0 : index
    %c0_347 = arith.constant 0 : index
    %732 = vector.load %arg23[%c2_344, %c0_345, %c0_346, %c0_347] : memref<3x8x2x32xf32, #tpu.memory_space<vmem>>, vector<1x1x2x32xf32>
    %733 = vector.shape_cast %732 : vector<1x1x2x32xf32> to vector<2x32xf32>
    %cst_348 = arith.constant dense<0.000000e+00> : vector<2x96xf32>
    %734 = tpu.matmul %667, %40, %cst_348 {dimension_numbers = #tpu.dot_dimension_numbers<[1], [0], [0], [1], [0, 0, 1, 1], [], []>} : vector<2x32xf32>, vector<32x96xf32>, vector<2x96xf32> -> vector<2x96xf32>
    %735 = arith.addf %734, %49 : vector<2x96xf32>
    %736 = vector.extract_strided_slice %735 {offsets = [0, 0], sizes = [2, 32], strides = [1, 1]} : vector<2x96xf32> to vector<2x32xf32>
    %737 = arith.addf %729, %736 : vector<2x32xf32>
    %738 = arith.negf %737 : vector<2x32xf32>
    %739 = math.exp %738 : vector<2x32xf32>
    %cst_349 = arith.constant 1.000000e+00 : f32
    %740 = vector.broadcast %cst_349 : f32 to vector<2x32xf32>
    %741 = arith.addf %740, %739 : vector<2x32xf32>
    %742 = arith.divf %740, %741 : vector<2x32xf32>
    %743 = vector.extract_strided_slice %735 {offsets = [0, 32], sizes = [2, 32], strides = [1, 1]} : vector<2x96xf32> to vector<2x32xf32>
    %744 = arith.addf %731, %743 : vector<2x32xf32>
    %745 = arith.negf %744 : vector<2x32xf32>
    %746 = math.exp %745 : vector<2x32xf32>
    %cst_350 = arith.constant 1.000000e+00 : f32
    %747 = vector.broadcast %cst_350 : f32 to vector<2x32xf32>
    %748 = arith.addf %747, %746 : vector<2x32xf32>
    %749 = arith.divf %747, %748 : vector<2x32xf32>
    %750 = vector.extract_strided_slice %735 {offsets = [0, 64], sizes = [2, 32], strides = [1, 1]} : vector<2x96xf32> to vector<2x32xf32>
    %751 = arith.mulf %742, %750 : vector<2x32xf32>
    %752 = arith.addf %733, %751 : vector<2x32xf32>
    %753 = math.tanh %752 : vector<2x32xf32>
    %cst_351 = arith.constant 1.000000e+00 : f32
    %754 = vector.broadcast %cst_351 : f32 to vector<2x32xf32>
    %755 = arith.subf %754, %749 : vector<2x32xf32>
    %756 = arith.mulf %755, %753 : vector<2x32xf32>
    %757 = arith.mulf %749, %667 : vector<2x32xf32>
    %758 = arith.addf %756, %757 : vector<2x32xf32>
    %c0_352 = arith.constant 0 : index
    %c0_353 = arith.constant 0 : index
    %759 = vector.load %arg19[%c0_352, %c0_353] : memref<2x32xf32, #tpu.memory_space<vmem>>, vector<2x32xf32>
    tpu.vector_store %arg19[%c0_352, %c0_353], %758 {strides = array<i32>} : memref<2x32xf32, #tpu.memory_space<vmem>>, vector<2x32xf32>,
    %c1_i32_354 = arith.constant 1 : i32
    %c0_355 = arith.constant 0 : index
    %760 = arith.index_cast %c1_i32_354 : i32 to index
    %c0_356 = arith.constant 0 : index
    %c0_357 = arith.constant 0 : index
    %761 = vector.load %arg23[%c0_355, %760, %c0_356, %c0_357] : memref<3x8x2x32xf32, #tpu.memory_space<vmem>>, vector<1x1x2x32xf32>
    %762 = vector.shape_cast %761 : vector<1x1x2x32xf32> to vector<2x32xf32>
    %c1_358 = arith.constant 1 : index
    %763 = arith.index_cast %c1_i32_354 : i32 to index
    %c0_359 = arith.constant 0 : index
    %c0_360 = arith.constant 0 : index
    %764 = vector.load %arg23[%c1_358, %763, %c0_359, %c0_360] : memref<3x8x2x32xf32, #tpu.memory_space<vmem>>, vector<1x1x2x32xf32>
    %765 = vector.shape_cast %764 : vector<1x1x2x32xf32> to vector<2x32xf32>
    %c2_361 = arith.constant 2 : index
    %766 = arith.index_cast %c1_i32_354 : i32 to index
    %c0_362 = arith.constant 0 : index
    %c0_363 = arith.constant 0 : index
    %767 = vector.load %arg23[%c2_361, %766, %c0_362, %c0_363] : memref<3x8x2x32xf32, #tpu.memory_space<vmem>>, vector<1x1x2x32xf32>
    %768 = vector.shape_cast %767 : vector<1x1x2x32xf32> to vector<2x32xf32>
    %cst_364 = arith.constant dense<0.000000e+00> : vector<2x96xf32>
    %769 = tpu.matmul %758, %40, %cst_364 {dimension_numbers = #tpu.dot_dimension_numbers<[1], [0], [0], [1], [0, 0, 1, 1], [], []>} : vector<2x32xf32>, vector<32x96xf32>, vector<2x96xf32> -> vector<2x96xf32>
    %770 = arith.addf %769, %49 : vector<2x96xf32>
    %771 = vector.extract_strided_slice %770 {offsets = [0, 0], sizes = [2, 32], strides = [1, 1]} : vector<2x96xf32> to vector<2x32xf32>
    %772 = arith.addf %762, %771 : vector<2x32xf32>
    %773 = arith.negf %772 : vector<2x32xf32>
    %774 = math.exp %773 : vector<2x32xf32>
    %cst_365 = arith.constant 1.000000e+00 : f32
    %775 = vector.broadcast %cst_365 : f32 to vector<2x32xf32>
    %776 = arith.addf %775, %774 : vector<2x32xf32>
    %777 = arith.divf %775, %776 : vector<2x32xf32>
    %778 = vector.extract_strided_slice %770 {offsets = [0, 32], sizes = [2, 32], strides = [1, 1]} : vector<2x96xf32> to vector<2x32xf32>
    %779 = arith.addf %765, %778 : vector<2x32xf32>
    %780 = arith.negf %779 : vector<2x32xf32>
    %781 = math.exp %780 : vector<2x32xf32>
    %cst_366 = arith.constant 1.000000e+00 : f32
    %782 = vector.broadcast %cst_366 : f32 to vector<2x32xf32>
    %783 = arith.addf %782, %781 : vector<2x32xf32>
    %784 = arith.divf %782, %783 : vector<2x32xf32>
    %785 = vector.extract_strided_slice %770 {offsets = [0, 64], sizes = [2, 32], strides = [1, 1]} : vector<2x96xf32> to vector<2x32xf32>
    %786 = arith.mulf %777, %785 : vector<2x32xf32>
    %787 = arith.addf %768, %786 : vector<2x32xf32>
    %788 = math.tanh %787 : vector<2x32xf32>
    %cst_367 = arith.constant 1.000000e+00 : f32
    %789 = vector.broadcast %cst_367 : f32 to vector<2x32xf32>
    %790 = arith.subf %789, %784 : vector<2x32xf32>
    %791 = arith.mulf %790, %788 : vector<2x32xf32>
    %792 = arith.mulf %784, %758 : vector<2x32xf32>
    %793 = arith.addf %791, %792 : vector<2x32xf32>
    %c2_i32_368 = arith.constant 2 : i32
    %c0_369 = arith.constant 0 : index
    %794 = arith.index_cast %c2_i32_368 : i32 to index
    %c0_370 = arith.constant 0 : index
    %c0_371 = arith.constant 0 : index
    %795 = vector.load %arg23[%c0_369, %794, %c0_370, %c0_371] : memref<3x8x2x32xf32, #tpu.memory_space<vmem>>, vector<1x1x2x32xf32>
    %796 = vector.shape_cast %795 : vector<1x1x2x32xf32> to vector<2x32xf32>
    %c1_372 = arith.constant 1 : index
    %797 = arith.index_cast %c2_i32_368 : i32 to index
    %c0_373 = arith.constant 0 : index
    %c0_374 = arith.constant 0 : index
    %798 = vector.load %arg23[%c1_372, %797, %c0_373, %c0_374] : memref<3x8x2x32xf32, #tpu.memory_space<vmem>>, vector<1x1x2x32xf32>
    %799 = vector.shape_cast %798 : vector<1x1x2x32xf32> to vector<2x32xf32>
    %c2_375 = arith.constant 2 : index
    %800 = arith.index_cast %c2_i32_368 : i32 to index
    %c0_376 = arith.constant 0 : index
    %c0_377 = arith.constant 0 : index
    %801 = vector.load %arg23[%c2_375, %800, %c0_376, %c0_377] : memref<3x8x2x32xf32, #tpu.memory_space<vmem>>, vector<1x1x2x32xf32>
    %802 = vector.shape_cast %801 : vector<1x1x2x32xf32> to vector<2x32xf32>
    %cst_378 = arith.constant dense<0.000000e+00> : vector<2x96xf32>
    %803 = tpu.matmul %793, %40, %cst_378 {dimension_numbers = #tpu.dot_dimension_numbers<[1], [0], [0], [1], [0, 0, 1, 1], [], []>} : vector<2x32xf32>, vector<32x96xf32>, vector<2x96xf32> -> vector<2x96xf32>
    %804 = arith.addf %803, %49 : vector<2x96xf32>
    %805 = vector.extract_strided_slice %804 {offsets = [0, 0], sizes = [2, 32], strides = [1, 1]} : vector<2x96xf32> to vector<2x32xf32>
    %806 = arith.addf %796, %805 : vector<2x32xf32>
    %807 = arith.negf %806 : vector<2x32xf32>
    %808 = math.exp %807 : vector<2x32xf32>
    %cst_379 = arith.constant 1.000000e+00 : f32
    %809 = vector.broadcast %cst_379 : f32 to vector<2x32xf32>
    %810 = arith.addf %809, %808 : vector<2x32xf32>
    %811 = arith.divf %809, %810 : vector<2x32xf32>
    %812 = vector.extract_strided_slice %804 {offsets = [0, 32], sizes = [2, 32], strides = [1, 1]} : vector<2x96xf32> to vector<2x32xf32>
    %813 = arith.addf %799, %812 : vector<2x32xf32>
    %814 = arith.negf %813 : vector<2x32xf32>
    %815 = math.exp %814 : vector<2x32xf32>
    %cst_380 = arith.constant 1.000000e+00 : f32
    %816 = vector.broadcast %cst_380 : f32 to vector<2x32xf32>
    %817 = arith.addf %816, %815 : vector<2x32xf32>
    %818 = arith.divf %816, %817 : vector<2x32xf32>
    %819 = vector.extract_strided_slice %804 {offsets = [0, 64], sizes = [2, 32], strides = [1, 1]} : vector<2x96xf32> to vector<2x32xf32>
    %820 = arith.mulf %811, %819 : vector<2x32xf32>
    %821 = arith.addf %802, %820 : vector<2x32xf32>
    %822 = math.tanh %821 : vector<2x32xf32>
    %cst_381 = arith.constant 1.000000e+00 : f32
    %823 = vector.broadcast %cst_381 : f32 to vector<2x32xf32>
    %824 = arith.subf %823, %818 : vector<2x32xf32>
    %825 = arith.mulf %824, %822 : vector<2x32xf32>
    %826 = arith.mulf %818, %793 : vector<2x32xf32>
    %827 = arith.addf %825, %826 : vector<2x32xf32>
    %c3_i32_382 = arith.constant 3 : i32
    %c0_383 = arith.constant 0 : index
    %828 = arith.index_cast %c3_i32_382 : i32 to index
    %c0_384 = arith.constant 0 : index
    %c0_385 = arith.constant 0 : index
    %829 = vector.load %arg23[%c0_383, %828, %c0_384, %c0_385] : memref<3x8x2x32xf32, #tpu.memory_space<vmem>>, vector<1x1x2x32xf32>
    %830 = vector.shape_cast %829 : vector<1x1x2x32xf32> to vector<2x32xf32>
    %c1_386 = arith.constant 1 : index
    %831 = arith.index_cast %c3_i32_382 : i32 to index
    %c0_387 = arith.constant 0 : index
    %c0_388 = arith.constant 0 : index
    %832 = vector.load %arg23[%c1_386, %831, %c0_387, %c0_388] : memref<3x8x2x32xf32, #tpu.memory_space<vmem>>, vector<1x1x2x32xf32>
    %833 = vector.shape_cast %832 : vector<1x1x2x32xf32> to vector<2x32xf32>
    %c2_389 = arith.constant 2 : index
    %834 = arith.index_cast %c3_i32_382 : i32 to index
    %c0_390 = arith.constant 0 : index
    %c0_391 = arith.constant 0 : index
    %835 = vector.load %arg23[%c2_389, %834, %c0_390, %c0_391] : memref<3x8x2x32xf32, #tpu.memory_space<vmem>>, vector<1x1x2x32xf32>
    %836 = vector.shape_cast %835 : vector<1x1x2x32xf32> to vector<2x32xf32>
    %cst_392 = arith.constant dense<0.000000e+00> : vector<2x96xf32>
    %837 = tpu.matmul %827, %40, %cst_392 {dimension_numbers = #tpu.dot_dimension_numbers<[1], [0], [0], [1], [0, 0, 1, 1], [], []>} : vector<2x32xf32>, vector<32x96xf32>, vector<2x96xf32> -> vector<2x96xf32>
    %838 = arith.addf %837, %49 : vector<2x96xf32>
    %839 = vector.extract_strided_slice %838 {offsets = [0, 0], sizes = [2, 32], strides = [1, 1]} : vector<2x96xf32> to vector<2x32xf32>
    %840 = arith.addf %830, %839 : vector<2x32xf32>
    %841 = arith.negf %840 : vector<2x32xf32>
    %842 = math.exp %841 : vector<2x32xf32>
    %cst_393 = arith.constant 1.000000e+00 : f32
    %843 = vector.broadcast %cst_393 : f32 to vector<2x32xf32>
    %844 = arith.addf %843, %842 : vector<2x32xf32>
    %845 = arith.divf %843, %844 : vector<2x32xf32>
    %846 = vector.extract_strided_slice %838 {offsets = [0, 32], sizes = [2, 32], strides = [1, 1]} : vector<2x96xf32> to vector<2x32xf32>
    %847 = arith.addf %833, %846 : vector<2x32xf32>
    %848 = arith.negf %847 : vector<2x32xf32>
    %849 = math.exp %848 : vector<2x32xf32>
    %cst_394 = arith.constant 1.000000e+00 : f32
    %850 = vector.broadcast %cst_394 : f32 to vector<2x32xf32>
    %851 = arith.addf %850, %849 : vector<2x32xf32>
    %852 = arith.divf %850, %851 : vector<2x32xf32>
    %853 = vector.extract_strided_slice %838 {offsets = [0, 64], sizes = [2, 32], strides = [1, 1]} : vector<2x96xf32> to vector<2x32xf32>
    %854 = arith.mulf %845, %853 : vector<2x32xf32>
    %855 = arith.addf %836, %854 : vector<2x32xf32>
    %856 = math.tanh %855 : vector<2x32xf32>
    %cst_395 = arith.constant 1.000000e+00 : f32
    %857 = vector.broadcast %cst_395 : f32 to vector<2x32xf32>
    %858 = arith.subf %857, %852 : vector<2x32xf32>
    %859 = arith.mulf %858, %856 : vector<2x32xf32>
    %860 = arith.mulf %852, %827 : vector<2x32xf32>
    %861 = arith.addf %859, %860 : vector<2x32xf32>
    %c4_i32_396 = arith.constant 4 : i32
    %c0_397 = arith.constant 0 : index
    %862 = arith.index_cast %c4_i32_396 : i32 to index
    %c0_398 = arith.constant 0 : index
    %c0_399 = arith.constant 0 : index
    %863 = vector.load %arg23[%c0_397, %862, %c0_398, %c0_399] : memref<3x8x2x32xf32, #tpu.memory_space<vmem>>, vector<1x1x2x32xf32>
    %864 = vector.shape_cast %863 : vector<1x1x2x32xf32> to vector<2x32xf32>
    %c1_400 = arith.constant 1 : index
    %865 = arith.index_cast %c4_i32_396 : i32 to index
    %c0_401 = arith.constant 0 : index
    %c0_402 = arith.constant 0 : index
    %866 = vector.load %arg23[%c1_400, %865, %c0_401, %c0_402] : memref<3x8x2x32xf32, #tpu.memory_space<vmem>>, vector<1x1x2x32xf32>
    %867 = vector.shape_cast %866 : vector<1x1x2x32xf32> to vector<2x32xf32>
    %c2_403 = arith.constant 2 : index
    %868 = arith.index_cast %c4_i32_396 : i32 to index
    %c0_404 = arith.constant 0 : index
    %c0_405 = arith.constant 0 : index
    %869 = vector.load %arg23[%c2_403, %868, %c0_404, %c0_405] : memref<3x8x2x32xf32, #tpu.memory_space<vmem>>, vector<1x1x2x32xf32>
    %870 = vector.shape_cast %869 : vector<1x1x2x32xf32> to vector<2x32xf32>
    %cst_406 = arith.constant dense<0.000000e+00> : vector<2x96xf32>
    %871 = tpu.matmul %861, %40, %cst_406 {dimension_numbers = #tpu.dot_dimension_numbers<[1], [0], [0], [1], [0, 0, 1, 1], [], []>} : vector<2x32xf32>, vector<32x96xf32>, vector<2x96xf32> -> vector<2x96xf32>
    %872 = arith.addf %871, %49 : vector<2x96xf32>
    %873 = vector.extract_strided_slice %872 {offsets = [0, 0], sizes = [2, 32], strides = [1, 1]} : vector<2x96xf32> to vector<2x32xf32>
    %874 = arith.addf %864, %873 : vector<2x32xf32>
    %875 = arith.negf %874 : vector<2x32xf32>
    %876 = math.exp %875 : vector<2x32xf32>
    %cst_407 = arith.constant 1.000000e+00 : f32
    %877 = vector.broadcast %cst_407 : f32 to vector<2x32xf32>
    %878 = arith.addf %877, %876 : vector<2x32xf32>
    %879 = arith.divf %877, %878 : vector<2x32xf32>
    %880 = vector.extract_strided_slice %872 {offsets = [0, 32], sizes = [2, 32], strides = [1, 1]} : vector<2x96xf32> to vector<2x32xf32>
    %881 = arith.addf %867, %880 : vector<2x32xf32>
    %882 = arith.negf %881 : vector<2x32xf32>
    %883 = math.exp %882 : vector<2x32xf32>
    %cst_408 = arith.constant 1.000000e+00 : f32
    %884 = vector.broadcast %cst_408 : f32 to vector<2x32xf32>
    %885 = arith.addf %884, %883 : vector<2x32xf32>
    %886 = arith.divf %884, %885 : vector<2x32xf32>
    %887 = vector.extract_strided_slice %872 {offsets = [0, 64], sizes = [2, 32], strides = [1, 1]} : vector<2x96xf32> to vector<2x32xf32>
    %888 = arith.mulf %879, %887 : vector<2x32xf32>
    %889 = arith.addf %870, %888 : vector<2x32xf32>
    %890 = math.tanh %889 : vector<2x32xf32>
    %cst_409 = arith.constant 1.000000e+00 : f32
    %891 = vector.broadcast %cst_409 : f32 to vector<2x32xf32>
    %892 = arith.subf %891, %886 : vector<2x32xf32>
    %893 = arith.mulf %892, %890 : vector<2x32xf32>
    %894 = arith.mulf %886, %861 : vector<2x32xf32>
    %895 = arith.addf %893, %894 : vector<2x32xf32>
    %c5_i32_410 = arith.constant 5 : i32
    %c0_411 = arith.constant 0 : index
    %896 = arith.index_cast %c5_i32_410 : i32 to index
    %c0_412 = arith.constant 0 : index
    %c0_413 = arith.constant 0 : index
    %897 = vector.load %arg23[%c0_411, %896, %c0_412, %c0_413] : memref<3x8x2x32xf32, #tpu.memory_space<vmem>>, vector<1x1x2x32xf32>
    %898 = vector.shape_cast %897 : vector<1x1x2x32xf32> to vector<2x32xf32>
    %c1_414 = arith.constant 1 : index
    %899 = arith.index_cast %c5_i32_410 : i32 to index
    %c0_415 = arith.constant 0 : index
    %c0_416 = arith.constant 0 : index
    %900 = vector.load %arg23[%c1_414, %899, %c0_415, %c0_416] : memref<3x8x2x32xf32, #tpu.memory_space<vmem>>, vector<1x1x2x32xf32>
    %901 = vector.shape_cast %900 : vector<1x1x2x32xf32> to vector<2x32xf32>
    %c2_417 = arith.constant 2 : index
    %902 = arith.index_cast %c5_i32_410 : i32 to index
    %c0_418 = arith.constant 0 : index
    %c0_419 = arith.constant 0 : index
    %903 = vector.load %arg23[%c2_417, %902, %c0_418, %c0_419] : memref<3x8x2x32xf32, #tpu.memory_space<vmem>>, vector<1x1x2x32xf32>
    %904 = vector.shape_cast %903 : vector<1x1x2x32xf32> to vector<2x32xf32>
    %cst_420 = arith.constant dense<0.000000e+00> : vector<2x96xf32>
    %905 = tpu.matmul %895, %40, %cst_420 {dimension_numbers = #tpu.dot_dimension_numbers<[1], [0], [0], [1], [0, 0, 1, 1], [], []>} : vector<2x32xf32>, vector<32x96xf32>, vector<2x96xf32> -> vector<2x96xf32>
    %906 = arith.addf %905, %49 : vector<2x96xf32>
    %907 = vector.extract_strided_slice %906 {offsets = [0, 0], sizes = [2, 32], strides = [1, 1]} : vector<2x96xf32> to vector<2x32xf32>
    %908 = arith.addf %898, %907 : vector<2x32xf32>
    %909 = arith.negf %908 : vector<2x32xf32>
    %910 = math.exp %909 : vector<2x32xf32>
    %cst_421 = arith.constant 1.000000e+00 : f32
    %911 = vector.broadcast %cst_421 : f32 to vector<2x32xf32>
    %912 = arith.addf %911, %910 : vector<2x32xf32>
    %913 = arith.divf %911, %912 : vector<2x32xf32>
    %914 = vector.extract_strided_slice %906 {offsets = [0, 32], sizes = [2, 32], strides = [1, 1]} : vector<2x96xf32> to vector<2x32xf32>
    %915 = arith.addf %901, %914 : vector<2x32xf32>
    %916 = arith.negf %915 : vector<2x32xf32>
    %917 = math.exp %916 : vector<2x32xf32>
    %cst_422 = arith.constant 1.000000e+00 : f32
    %918 = vector.broadcast %cst_422 : f32 to vector<2x32xf32>
    %919 = arith.addf %918, %917 : vector<2x32xf32>
    %920 = arith.divf %918, %919 : vector<2x32xf32>
    %921 = vector.extract_strided_slice %906 {offsets = [0, 64], sizes = [2, 32], strides = [1, 1]} : vector<2x96xf32> to vector<2x32xf32>
    %922 = arith.mulf %913, %921 : vector<2x32xf32>
    %923 = arith.addf %904, %922 : vector<2x32xf32>
    %924 = math.tanh %923 : vector<2x32xf32>
    %cst_423 = arith.constant 1.000000e+00 : f32
    %925 = vector.broadcast %cst_423 : f32 to vector<2x32xf32>
    %926 = arith.subf %925, %920 : vector<2x32xf32>
    %927 = arith.mulf %926, %924 : vector<2x32xf32>
    %928 = arith.mulf %920, %895 : vector<2x32xf32>
    %929 = arith.addf %927, %928 : vector<2x32xf32>
    %c6_i32_424 = arith.constant 6 : i32
    %c0_425 = arith.constant 0 : index
    %930 = arith.index_cast %c6_i32_424 : i32 to index
    %c0_426 = arith.constant 0 : index
    %c0_427 = arith.constant 0 : index
    %931 = vector.load %arg23[%c0_425, %930, %c0_426, %c0_427] : memref<3x8x2x32xf32, #tpu.memory_space<vmem>>, vector<1x1x2x32xf32>
    %932 = vector.shape_cast %931 : vector<1x1x2x32xf32> to vector<2x32xf32>
    %c1_428 = arith.constant 1 : index
    %933 = arith.index_cast %c6_i32_424 : i32 to index
    %c0_429 = arith.constant 0 : index
    %c0_430 = arith.constant 0 : index
    %934 = vector.load %arg23[%c1_428, %933, %c0_429, %c0_430] : memref<3x8x2x32xf32, #tpu.memory_space<vmem>>, vector<1x1x2x32xf32>
    %935 = vector.shape_cast %934 : vector<1x1x2x32xf32> to vector<2x32xf32>
    %c2_431 = arith.constant 2 : index
    %936 = arith.index_cast %c6_i32_424 : i32 to index
    %c0_432 = arith.constant 0 : index
    %c0_433 = arith.constant 0 : index
    %937 = vector.load %arg23[%c2_431, %936, %c0_432, %c0_433] : memref<3x8x2x32xf32, #tpu.memory_space<vmem>>, vector<1x1x2x32xf32>
    %938 = vector.shape_cast %937 : vector<1x1x2x32xf32> to vector<2x32xf32>
    %cst_434 = arith.constant dense<0.000000e+00> : vector<2x96xf32>
    %939 = tpu.matmul %929, %40, %cst_434 {dimension_numbers = #tpu.dot_dimension_numbers<[1], [0], [0], [1], [0, 0, 1, 1], [], []>} : vector<2x32xf32>, vector<32x96xf32>, vector<2x96xf32> -> vector<2x96xf32>
    %940 = arith.addf %939, %49 : vector<2x96xf32>
    %941 = vector.extract_strided_slice %940 {offsets = [0, 0], sizes = [2, 32], strides = [1, 1]} : vector<2x96xf32> to vector<2x32xf32>
    %942 = arith.addf %932, %941 : vector<2x32xf32>
    %943 = arith.negf %942 : vector<2x32xf32>
    %944 = math.exp %943 : vector<2x32xf32>
    %cst_435 = arith.constant 1.000000e+00 : f32
    %945 = vector.broadcast %cst_435 : f32 to vector<2x32xf32>
    %946 = arith.addf %945, %944 : vector<2x32xf32>
    %947 = arith.divf %945, %946 : vector<2x32xf32>
    %948 = vector.extract_strided_slice %940 {offsets = [0, 32], sizes = [2, 32], strides = [1, 1]} : vector<2x96xf32> to vector<2x32xf32>
    %949 = arith.addf %935, %948 : vector<2x32xf32>
    %950 = arith.negf %949 : vector<2x32xf32>
    %951 = math.exp %950 : vector<2x32xf32>
    %cst_436 = arith.constant 1.000000e+00 : f32
    %952 = vector.broadcast %cst_436 : f32 to vector<2x32xf32>
    %953 = arith.addf %952, %951 : vector<2x32xf32>
    %954 = arith.divf %952, %953 : vector<2x32xf32>
    %955 = vector.extract_strided_slice %940 {offsets = [0, 64], sizes = [2, 32], strides = [1, 1]} : vector<2x96xf32> to vector<2x32xf32>
    %956 = arith.mulf %947, %955 : vector<2x32xf32>
    %957 = arith.addf %938, %956 : vector<2x32xf32>
    %958 = math.tanh %957 : vector<2x32xf32>
    %cst_437 = arith.constant 1.000000e+00 : f32
    %959 = vector.broadcast %cst_437 : f32 to vector<2x32xf32>
    %960 = arith.subf %959, %954 : vector<2x32xf32>
    %961 = arith.mulf %960, %958 : vector<2x32xf32>
    %962 = arith.mulf %954, %929 : vector<2x32xf32>
    %963 = arith.addf %961, %962 : vector<2x32xf32>
    %c7_i32_438 = arith.constant 7 : i32
    %c0_439 = arith.constant 0 : index
    %964 = arith.index_cast %c7_i32_438 : i32 to index
    %c0_440 = arith.constant 0 : index
    %c0_441 = arith.constant 0 : index
    %965 = vector.load %arg23[%c0_439, %964, %c0_440, %c0_441] : memref<3x8x2x32xf32, #tpu.memory_space<vmem>>, vector<1x1x2x32xf32>
    %966 = vector.shape_cast %965 : vector<1x1x2x32xf32> to vector<2x32xf32>
    %c1_442 = arith.constant 1 : index
    %967 = arith.index_cast %c7_i32_438 : i32 to index
    %c0_443 = arith.constant 0 : index
    %c0_444 = arith.constant 0 : index
    %968 = vector.load %arg23[%c1_442, %967, %c0_443, %c0_444] : memref<3x8x2x32xf32, #tpu.memory_space<vmem>>, vector<1x1x2x32xf32>
    %969 = vector.shape_cast %968 : vector<1x1x2x32xf32> to vector<2x32xf32>
    %c2_445 = arith.constant 2 : index
    %970 = arith.index_cast %c7_i32_438 : i32 to index
    %c0_446 = arith.constant 0 : index
    %c0_447 = arith.constant 0 : index
    %971 = vector.load %arg23[%c2_445, %970, %c0_446, %c0_447] : memref<3x8x2x32xf32, #tpu.memory_space<vmem>>, vector<1x1x2x32xf32>
    %972 = vector.shape_cast %971 : vector<1x1x2x32xf32> to vector<2x32xf32>
    %cst_448 = arith.constant dense<0.000000e+00> : vector<2x96xf32>
    %973 = tpu.matmul %963, %40, %cst_448 {dimension_numbers = #tpu.dot_dimension_numbers<[1], [0], [0], [1], [0, 0, 1, 1], [], []>} : vector<2x32xf32>, vector<32x96xf32>, vector<2x96xf32> -> vector<2x96xf32>
    %974 = arith.addf %973, %49 : vector<2x96xf32>
    %975 = vector.extract_strided_slice %974 {offsets = [0, 0], sizes = [2, 32], strides = [1, 1]} : vector<2x96xf32> to vector<2x32xf32>
    %976 = arith.addf %966, %975 : vector<2x32xf32>
    %977 = arith.negf %976 : vector<2x32xf32>
    %978 = math.exp %977 : vector<2x32xf32>
    %cst_449 = arith.constant 1.000000e+00 : f32
    %979 = vector.broadcast %cst_449 : f32 to vector<2x32xf32>
    %980 = arith.addf %979, %978 : vector<2x32xf32>
    %981 = arith.divf %979, %980 : vector<2x32xf32>
    %982 = vector.extract_strided_slice %974 {offsets = [0, 32], sizes = [2, 32], strides = [1, 1]} : vector<2x96xf32> to vector<2x32xf32>
    %983 = arith.addf %969, %982 : vector<2x32xf32>
    %984 = arith.negf %983 : vector<2x32xf32>
    %985 = math.exp %984 : vector<2x32xf32>
    %cst_450 = arith.constant 1.000000e+00 : f32
    %986 = vector.broadcast %cst_450 : f32 to vector<2x32xf32>
    %987 = arith.addf %986, %985 : vector<2x32xf32>
    %988 = arith.divf %986, %987 : vector<2x32xf32>
    %989 = vector.extract_strided_slice %974 {offsets = [0, 64], sizes = [2, 32], strides = [1, 1]} : vector<2x96xf32> to vector<2x32xf32>
    %990 = arith.mulf %981, %989 : vector<2x32xf32>
    %991 = arith.addf %972, %990 : vector<2x32xf32>
    %992 = math.tanh %991 : vector<2x32xf32>
    %cst_451 = arith.constant 1.000000e+00 : f32
    %993 = vector.broadcast %cst_451 : f32 to vector<2x32xf32>
    %994 = arith.subf %993, %988 : vector<2x32xf32>
    %995 = arith.mulf %994, %992 : vector<2x32xf32>
    %996 = arith.mulf %988, %963 : vector<2x32xf32>
    %997 = arith.addf %995, %996 : vector<2x32xf32>
    %c7_i32_452 = arith.constant 7 : i32
    %c0_453 = arith.constant 0 : index
    %c0_454 = arith.constant 0 : index
    %998 = vector.load %arg20[%c0_453, %c0_454] : memref<2x32xf32, #tpu.memory_space<vmem>>, vector<2x32xf32>
    tpu.vector_store %arg20[%c0_453, %c0_454], %997 {strides = array<i32>} : memref<2x32xf32, #tpu.memory_space<vmem>>, vector<2x32xf32>,
    return
  }
}

</mosaic_0001>

<llo_original>
// kernel: encoder_decoder_forward.1
$region0: #{encoder_decoder_forward.1}
  #allocation0 [shape = 'u32[]', space=smem, size = 0x4, offset = 0x4, fixed_abs, tag = 'smem constant byte address 0x4 - core index']
  #allocation1 [shape = 'u32[144,128]{1,0:T(1,128)}', space=vmem, size = 0x12000, scoped, tag = 'internal scratch']
  #allocation2 [shape = 'f32[3,8,2,32]{3,2,1,0:T(2,128)}', space=vmem, size = 0x6000, scoped, tag = 'scratch operand']
  #allocation3 [shape = 'f32[3,8,2,32]{3,2,1,0:T(2,128)}', space=vmem, size = 0x6000, scoped, tag = 'scratch operand']
  #allocation4 [shape = 'f32[3,8,2,32]{3,2,1,0:T(2,128)}', space=vmem, size = 0x6000, scoped, tag = 'scratch operand']
  #allocation5 [shape = 'f32[8,2,32]{2,1,0:T(2,128)}', space=vmem, size = 0x2000, scoped, tag = 'scratch operand']
  #allocation6 [shape = 'f32[8,2,32]{2,1,0:T(2,128)}', space=vmem, size = 0x2000, scoped, tag = 'scratch operand']
  #allocation7 [shape = 'f32[1,1]{1,0:T(1,128)S(1)}', space=vmem, size = 0x200, scoped, tag = 'scoped memory for encoder_decoder_forward.1']
  %s0 = inlined_call_operand.vmem [shape: f32[8,2,32], index: 0, kind: input, shape index: {}]
  %s1 = inlined_call_operand.vmem [shape: s32[8,2], index: 1, kind: input, shape index: {}]
  %s2 = inlined_call_operand.vmem [shape: f32[32,96], index: 2, kind: input, shape index: {}]
  %s3 = inlined_call_operand.vmem [shape: f32[32,96], index: 3, kind: input, shape index: {}]
  %s4 = inlined_call_operand.vmem [shape: f32[1,96], index: 4, kind: input, shape index: {}]
  %s5 = inlined_call_operand.vmem [shape: f32[1,96], index: 5, kind: input, shape index: {}]
  %s6 = inlined_call_operand.vmem [shape: f32[32,96], index: 6, kind: input, shape index: {}]
  %s7 = inlined_call_operand.vmem [shape: f32[32,96], index: 7, kind: input, shape index: {}]
  %s8 = inlined_call_operand.vmem [shape: f32[1,96], index: 8, kind: input, shape index: {}]
  %s9 = inlined_call_operand.vmem [shape: f32[1,96], index: 9, kind: input, shape index: {}]
  %s10 = inlined_call_operand.vmem [shape: f32[32,32], index: 10, kind: input, shape index: {}]
  %s11 = inlined_call_operand.vmem [shape: f32[32,32], index: 11, kind: input, shape index: {}]
  %s12 = inlined_call_operand.vmem [shape: f32[1,32], index: 12, kind: input, shape index: {}]
  %s13 = inlined_call_operand.vmem [shape: f32[1,32], index: 13, kind: input, shape index: {}]
  %s14 = inlined_call_operand.<no memory space> [shape: f32[1,1], index: 14, kind: input, shape index: {}]
  %s15 = inlined_call_operand.vmem [shape: f32[32,96], index: 15, kind: input, shape index: {}]
  %s16 = inlined_call_operand.vmem [shape: f32[32,96], index: 16, kind: input, shape index: {}]
  %s17 = inlined_call_operand.vmem [shape: f32[1,96], index: 17, kind: input, shape index: {}]
  %s18 = inlined_call_operand.vmem [shape: f32[1,96], index: 18, kind: input, shape index: {}]
  %s19 = inlined_call_operand.hbm [shape: f32[2,32], index: 19, kind: output, shape index: {0}]
  %s20 = inlined_call_operand.hbm [shape: f32[2,32], index: 20, kind: output, shape index: {1}]
  %21 = xla_tuple %s19, %s20
  %s22 = sld [smem:[#allocation0]]
  $region94: #{encoder_decoder_forward.1} parent=0
    _
  %s24 = ssub.s32 1, %s22
  %s25 = scalar_select 0, %s24, %s22
  %v26 = vstv %s14
  %27 = vst [vmem:[#allocation7] sm:$0x1] %v26
  $region1: #{encoder_decoder_forward.1} parent=0
    #allocation8 [shape = 'u8[1024]{0}', space=vmem, size = 0x400, scoped, tag = 'output window, operand 0, single buffered']
    #allocation9 [shape = 's32[1]{0}', space=sflag, size = 0x4, scoped, tag = 'scoped memory for encoder_decoder_forward.1']
    #allocation10 [shape = 'u8[1024]{0}', space=vmem, size = 0x400, scoped, tag = 'output window, operand 1, single buffered']
    #allocation11 [shape = 's32[1]{0}', space=sflag, size = 0x4, scoped, tag = 'scoped memory for encoder_decoder_forward.1']
    %28 = vsyncpa [#allocation9], 0
    %29 = vsyncpa [#allocation11], 0
    // Predicated region
    $region2: #{encoder_decoder_forward.1} parent=1 // pred_check
      _
    $region3: #{encoder_decoder_forward.1} parent=1 // pred_check_branch
      %31 = sbr.rel (0) target = $region5
    $region4: #{encoder_decoder_forward.1} parent=1 // pred_region
      _
    $region5: #{encoder_decoder_forward.1} parent=1 // pred_fallthru
      _
    // Predicated region
    $region6: #{encoder_decoder_forward.1} parent=1 // pred_check
      _
    $region7: #{encoder_decoder_forward.1} parent=1 // pred_check_branch
      %33 = sbr.rel (0) target = $region9
    $region8: #{encoder_decoder_forward.1} parent=1 // pred_region
      _
    $region9: #{encoder_decoder_forward.1} parent=1 // pred_fallthru
      _
    // Predicated region
    $region10: #{encoder_decoder_forward.1} parent=1 // pred_check
      _
    $region11: #{encoder_decoder_forward.1} parent=1 // pred_check_branch
      %35 = sbr.rel (0) target = $region13
    $region12: #{encoder_decoder_forward.1} parent=1 // pred_region
      _
    $region13: #{encoder_decoder_forward.1} parent=1 // pred_fallthru
      _
    // Predicated region
    $region14: #{encoder_decoder_forward.1} parent=1 // pred_check
      _
    $region15: #{encoder_decoder_forward.1} parent=1 // pred_check_branch
      %37 = sbr.rel (0) target = $region17
    $region16: #{encoder_decoder_forward.1} parent=1 // pred_region
      _
    $region17: #{encoder_decoder_forward.1} parent=1 // pred_fallthru
      _
    // Predicated region
    $region18: #{encoder_decoder_forward.1} parent=1 // pred_check
      _
    $region19: #{encoder_decoder_forward.1} parent=1 // pred_check_branch
      %39 = sbr.rel (0) target = $region21
    $region20: #{encoder_decoder_forward.1} parent=1 // pred_region
      _
    $region21: #{encoder_decoder_forward.1} parent=1 // pred_fallthru
      _
    // Predicated region
    $region22: #{encoder_decoder_forward.1} parent=1 // pred_check
      _
    $region23: #{encoder_decoder_forward.1} parent=1 // pred_check_branch
      %41 = sbr.rel (0) target = $region25
    $region24: #{encoder_decoder_forward.1} parent=1 // pred_region
      _
    $region25: #{encoder_decoder_forward.1} parent=1 // pred_fallthru
      _
    // Predicated region
    $region26: #{encoder_decoder_forward.1} parent=1 // pred_check
      _
    $region27: #{encoder_decoder_forward.1} parent=1 // pred_check_branch
      %43 = sbr.rel (0) target = $region29
    $region28: #{encoder_decoder_forward.1} parent=1 // pred_region
      _
    $region29: #{encoder_decoder_forward.1} parent=1 // pred_fallthru
      _
    // Predicated region
    $region30: #{encoder_decoder_forward.1} parent=1 // pred_check
      _
    $region31: #{encoder_decoder_forward.1} parent=1 // pred_check_branch
      %45 = sbr.rel (0) target = $region33
    $region32: #{encoder_decoder_forward.1} parent=1 // pred_region
      _
    $region33: #{encoder_decoder_forward.1} parent=1 // pred_fallthru
      _
    // Predicated region
    $region34: #{encoder_decoder_forward.1} parent=1 // pred_check
      _
    $region35: #{encoder_decoder_forward.1} parent=1 // pred_check_branch
      %47 = sbr.rel (0) target = $region37
    $region36: #{encoder_decoder_forward.1} parent=1 // pred_region
      _
    $region37: #{encoder_decoder_forward.1} parent=1 // pred_fallthru
      _
    // Predicated region
    $region38: #{encoder_decoder_forward.1} parent=1 // pred_check
      _
    $region39: #{encoder_decoder_forward.1} parent=1 // pred_check_branch
      %49 = sbr.rel (0) target = $region41
    $region40: #{encoder_decoder_forward.1} parent=1 // pred_region
      _
    $region41: #{encoder_decoder_forward.1} parent=1 // pred_fallthru
      _
    // Predicated region
    $region42: #{encoder_decoder_forward.1} parent=1 // pred_check
      _
    $region43: #{encoder_decoder_forward.1} parent=1 // pred_check_branch
      %51 = sbr.rel (0) target = $region45
    $region44: #{encoder_decoder_forward.1} parent=1 // pred_region
      _
    $region45: #{encoder_decoder_forward.1} parent=1 // pred_fallthru
      _
    // Predicated region
    $region46: #{encoder_decoder_forward.1} parent=1 // pred_check
      _
    $region47: #{encoder_decoder_forward.1} parent=1 // pred_check_branch
      %53 = sbr.rel (0) target = $region49
    $region48: #{encoder_decoder_forward.1} parent=1 // pred_region
      _
    $region49: #{encoder_decoder_forward.1} parent=1 // pred_fallthru
      _
    // Predicated region
    $region50: #{encoder_decoder_forward.1} parent=1 // pred_check
      _
    $region51: #{encoder_decoder_forward.1} parent=1 // pred_check_branch
      %55 = sbr.rel (0) target = $region53
    $region52: #{encoder_decoder_forward.1} parent=1 // pred_region
      _
    $region53: #{encoder_decoder_forward.1} parent=1 // pred_fallthru
      _
    // Predicated region
    $region54: #{encoder_decoder_forward.1} parent=1 // pred_check
      _
    $region55: #{encoder_decoder_forward.1} parent=1 // pred_check_branch
      %57 = sbr.rel (0) target = $region57
    $region56: #{encoder_decoder_forward.1} parent=1 // pred_region
      _
    $region57: #{encoder_decoder_forward.1} parent=1 // pred_fallthru
      _
    // Predicated region
    $region58: #{encoder_decoder_forward.1} parent=1 // pred_check
      _
    $region59: #{encoder_decoder_forward.1} parent=1 // pred_check_branch
      %59 = sbr.rel (0) target = $region61
    $region60: #{encoder_decoder_forward.1} parent=1 // pred_region
      _
    $region61: #{encoder_decoder_forward.1} parent=1 // pred_fallthru
      _
    // Predicated region
    $region62: #{encoder_decoder_forward.1} parent=1 // pred_check
      _
    $region63: #{encoder_decoder_forward.1} parent=1 // pred_check_branch
      %61 = sbr.rel (0) target = $region65
    $region64: #{encoder_decoder_forward.1} parent=1 // pred_region
      _
    $region65: #{encoder_decoder_forward.1} parent=1 // pred_fallthru
      _
    // Predicated region
    $region66: #{encoder_decoder_forward.1} parent=1 // pred_check
      _
    $region67: #{encoder_decoder_forward.1} parent=1 // pred_check_branch
      %63 = sbr.rel (0) target = $region69
    $region68: #{encoder_decoder_forward.1} parent=1 // pred_region
      _
    $region69: #{encoder_decoder_forward.1} parent=1 // pred_fallthru
      _
    // Predicated region
    $region70: #{encoder_decoder_forward.1} parent=1 // pred_check
      _
    $region71: #{encoder_decoder_forward.1} parent=1 // pred_check_branch
      %65 = sbr.rel (0) target = $region73
    $region72: #{encoder_decoder_forward.1} parent=1 // pred_region
      _
    $region73: #{encoder_decoder_forward.1} parent=1 // pred_fallthru
      _
    // Predicated region
    $region74: #{encoder_decoder_forward.1} parent=1 // pred_check
      _
    $region75: #{encoder_decoder_forward.1} parent=1 // pred_check_branch
      %67 = sbr.rel (0) target = $region77
    $region76: #{encoder_decoder_forward.1} parent=1 // pred_region
      _
    $region77: #{encoder_decoder_forward.1} parent=1 // pred_fallthru
      _
    %v68 = vld [vmem:[%s0] sm:$0x3]
    %v69 = vld [vmem:[%s0 + $0x2] sm:$0x3]
    %v70 = vld [vmem:[%s0 + $0x4] sm:$0x3]
    %v71 = vld [vmem:[%s0 + $0x6] sm:$0x3]
    %v72 = vld [vmem:[%s0 + $0x8] sm:$0x3]
    %v73 = vld [vmem:[%s0 + $0xa] sm:$0x3]
    %v74 = vld [vmem:[%s0 + $0xc] sm:$0x3]
    %v75 = vld [vmem:[%s0 + $0xe] sm:$0x3]
    %v76 = vld [vmem:[%s2] sm:$0xff]
    %v77 = vld [vmem:[%s2 + $0x8] sm:$0xff]
    %v78 = vld [vmem:[%s2 + $0x10] sm:$0xff]
    %v79 = vld [vmem:[%s2 + $0x18] sm:$0xff]
    %v80 = vld [vmem:[%s4] sm:$0x1]
    %v82 = vlaneseq
    %v83 = vshrl.u32 %v82, 7
    %v84 = vsub.s32 0, %v83
    %v85 = vrot.slane %v80, %v84
    %v95 = vcombine.low %v68, %v69
    %v96 = vcombine.low %v70, %v71
    %v98 = vunpack.c.l.s4 1983009808
    %v99 = vunpack.c.0.s8 %v98
    %v100 = vlaneseq
    %v101 = vshrl.u32 %v100, 7
    %v102 = vsub.s32 %v99, %v101
    %v103 = vrot.slane %v95, %v102
    %v105 = vunpack.c.l.s4 1983009808
    %v106 = vunpack.c.0.s8 %v105
    %v107 = vlaneseq
    %v108 = vshrl.u32 %v107, 7
    %v109 = vsub.s32 %v106, %v108
    %v110 = vrot.slane %v96, %v109
    %v111 = vcombine.low %v103, %v110
    %v112 = vcombine.low %v72, %v73
    %v113 = vcombine.low %v74, %v75
    %v115 = vunpack.c.l.s4 1983009808
    %v116 = vunpack.c.0.s8 %v115
    %v117 = vlaneseq
    %v118 = vshrl.u32 %v117, 7
    %v119 = vsub.s32 %v116, %v118
    %v120 = vrot.slane %v112, %v119
    %v122 = vunpack.c.l.s4 1983009808
    %v123 = vunpack.c.0.s8 %v122
    %v124 = vlaneseq
    %v125 = vshrl.u32 %v124, 7
    %v126 = vsub.s32 %v123, %v125
    %v127 = vrot.slane %v113, %v126
    %v128 = vcombine.low %v120, %v127
    %vm129 = vcmask 261120
    %v130 = vsel %vm129, %v111, 0
    %v132 = vsel %vm129, %v128, 0
    %134 = vmatprep.subr.mxu0 0.0
    %135 = vmatpush1.msra.mxu0 %v76
    %136 = vmatprep.subr.mxu0 0.0
    %137 = vmatpush1.msra.mxu0 %v77
    %138 = vmatprep.subr.mxu0 0.0
    %139 = vmatpush1.msra.mxu0 %v78
    %140 = vmatprep.subr.mxu0 0.0
    %141 = vmatpush1.msra.mxu0 %v79
    %142 = vmatprep.subr.mxu0 0.0
    %143 = vmatpush1.msra.mxu0 0.0
    %144 = vmatprep.subr.mxu0 0.0
    %145 = vmatpush1.msra.mxu0 0.0
    %146 = vmatprep.subr.mxu0 0.0
    %147 = vmatpush1.msra.mxu0 0.0
    %148 = vmatprep.subr.mxu0 0.0
    %149 = vmatpush1.msra.mxu0 0.0
    %150 = vmatprep.subr.mxu0 0.0
    %151 = vmatpush1.msra.mxu0 0.0
    %152 = vmatprep.subr.mxu0 0.0
    %153 = vmatpush1.msra.mxu0 0.0
    %154 = vmatprep.subr.mxu0 0.0
    %155 = vmatpush1.msra.mxu0 0.0
    %156 = vmatprep.subr.mxu0 0.0
    %157 = vmatpush1.msra.mxu0 0.0
    %158 = vmatprep.subr.mxu0 0.0
    %159 = vmatpush1.msra.mxu0 0.0
    %160 = vmatprep.subr.mxu0 0.0
    %161 = vmatpush1.msra.mxu0 0.0
    %162 = vmatprep.subr.mxu0 0.0
    %163 = vmatpush1.msra.mxu0 0.0
    %164 = vmatprep.subr.mxu0 0.0
    %165 = vmatpush1.msra.mxu0 0.0
    %166 = vmatprep.subr.mxu0 0.0
    %167 = vmatpush1.msra.mxu0 0.0
    %168 = vmatprep.subr.mxu0 0.0
    %169 = vmatpush1.msra.mxu0 0.0
    %170 = vmatprep.subr.mxu0 0.0
    %171 = vmatpush1.msra.mxu0 0.0
    %172 = vmatprep.subr.mxu0 0.0
    %173 = vmatpush1.msra.mxu0 0.0
    %174 = vmatprep.subr.mxu0 0.0
    %175 = vmatpush1.msra.mxu0 0.0
    %176 = vmatprep.subr.mxu0 0.0
    %177 = vmatpush1.msra.mxu0 0.0
    %178 = vmatprep.subr.mxu0 0.0
    %179 = vmatpush1.msra.mxu0 0.0
    %180 = vmatprep.subr.mxu0 0.0
    %181 = vmatpush1.msra.mxu0 0.0
    %182 = vmatprep.subr.mxu0 0.0
    %183 = vmatpush1.msra.mxu0 0.0
    %184 = vmatprep.subr.mxu0 0.0
    %185 = vmatpush1.msra.mxu0 0.0
    %186 = vmatprep.subr.mxu0 0.0
    %187 = vmatpush1.msra.mxu0 0.0
    %188 = vmatprep.subr.mxu0 0.0
    %189 = vmatpush1.msra.mxu0 0.0
    %190 = vmatprep.subr.mxu0 0.0
    %191 = vmatpush1.msra.mxu0 0.0
    %192 = vmatprep.subr.mxu0 0.0
    %193 = vmatpush1.msra.mxu0 0.0
    %194 = vmatprep.subr.mxu0 0.0
    %195 = vmatpush1.msra.mxu0 0.0
    %196 = vmatprep.subr.mxu0 0.0
    %197 = vmatpush1.msra.mxu0 0.0
    %198 = vmatprep.mubr.f32.mxu0 0.0
    %199 = vmatmul.mubr.f32.gmra.mrb[0].mxu0 %v130
    %v200 = vpop.f32.mrb[0].mxu0
    %v201 = vadd.f32 %v85, %v200
    %v202 = vpop.f32.mrb[0].mxu0
    %203 = vmatprep.mubr.f32.mxu0 0.0
    %204 = vmatmul.mubr.f32.gmra.mrb[0].mxu0 %v132
    %v205 = vpop.f32.mrb[0].mxu0
    %v206 = vadd.f32 %v85, %v205
    %v207 = vpop.f32.mrb[0].mxu0
    %208 = vdwg.mxu0
    %v211 = vcombine.high %v201, %v201
    %v213 = vunpack.c.l.s4 1983009808
    %v214 = vunpack.c.0.s8 %v213
    %v215 = vlaneseq
    %v216 = vshrl.u32 %v215, 7
    %v217 = vsub.s32 %v214, %v216
    %v218 = vrot.slane %v201, %v217
    %v220 = vunpack.c.l.s4 1983009808
    %v221 = vunpack.c.0.s8 %v220
    %v222 = vlaneseq
    %v223 = vshrl.u32 %v222, 7
    %v224 = vsub.s32 %v221, %v223
    %v225 = vrot.slane %v211, %v224
    %v226 = vcombine.high %v218, %v218
    %v227 = vcombine.high %v225, %v225
    %v228 = vcombine.high %v206, %v206
    %v230 = vunpack.c.l.s4 1983009808
    %v231 = vunpack.c.0.s8 %v230
    %v232 = vlaneseq
    %v233 = vshrl.u32 %v232, 7
    %v234 = vsub.s32 %v231, %v233
    %v235 = vrot.slane %v206, %v234
    %v237 = vunpack.c.l.s4 1983009808
    %v238 = vunpack.c.0.s8 %v237
    %v239 = vlaneseq
    %v240 = vshrl.u32 %v239, 7
    %v241 = vsub.s32 %v238, %v240
    %v242 = vrot.slane %v228, %v241
    %v243 = vcombine.high %v235, %v235
    %v244 = vcombine.high %v242, %v242
    %v253 = vld [vmem:[%s6] sm:$0xff]
    %v254 = vld [vmem:[%s6 + $0x8] sm:$0xff]
    %v255 = vld [vmem:[%s6 + $0x10] sm:$0xff]
    %v256 = vld [vmem:[%s6 + $0x18] sm:$0xff]
    %v257 = vld [vmem:[%s8] sm:$0x1]
    %v259 = vlaneseq
    %v260 = vshrl.u32 %v259, 7
    %v261 = vsub.s32 0, %v260
    %v262 = vrot.slane %v257, %v261
    %264 = vmatprep.subr.mxu0 0.0
    %265 = vmatpush1.msra.mxu0 %v253
    %266 = vmatprep.subr.mxu0 0.0
    %267 = vmatpush1.msra.mxu0 %v254
    %268 = vmatprep.subr.mxu0 0.0
    %269 = vmatpush1.msra.mxu0 %v255
    %270 = vmatprep.subr.mxu0 0.0
    %271 = vmatpush1.msra.mxu0 %v256
    %272 = vmatprep.subr.mxu0 0.0
    %273 = vmatpush1.msra.mxu0 0.0
    %274 = vmatprep.subr.mxu0 0.0
    %275 = vmatpush1.msra.mxu0 0.0
    %276 = vmatprep.subr.mxu0 0.0
    %277 = vmatpush1.msra.mxu0 0.0
    %278 = vmatprep.subr.mxu0 0.0
    %279 = vmatpush1.msra.mxu0 0.0
    %280 = vmatprep.subr.mxu0 0.0
    %281 = vmatpush1.msra.mxu0 0.0
    %282 = vmatprep.subr.mxu0 0.0
    %283 = vmatpush1.msra.mxu0 0.0
    %284 = vmatprep.subr.mxu0 0.0
    %285 = vmatpush1.msra.mxu0 0.0
    %286 = vmatprep.subr.mxu0 0.0
    %287 = vmatpush1.msra.mxu0 0.0
    %288 = vmatprep.subr.mxu0 0.0
    %289 = vmatpush1.msra.mxu0 0.0
    %290 = vmatprep.subr.mxu0 0.0
    %291 = vmatpush1.msra.mxu0 0.0
    %292 = vmatprep.subr.mxu0 0.0
    %293 = vmatpush1.msra.mxu0 0.0
    %294 = vmatprep.subr.mxu0 0.0
    %295 = vmatpush1.msra.mxu0 0.0
    %296 = vmatprep.subr.mxu0 0.0
    %297 = vmatpush1.msra.mxu0 0.0
    %298 = vmatprep.subr.mxu0 0.0
    %299 = vmatpush1.msra.mxu0 0.0
    %300 = vmatprep.subr.mxu0 0.0
    %301 = vmatpush1.msra.mxu0 0.0
    %302 = vmatprep.subr.mxu0 0.0
    %303 = vmatpush1.msra.mxu0 0.0
    %304 = vmatprep.subr.mxu0 0.0
    %305 = vmatpush1.msra.mxu0 0.0
    %306 = vmatprep.subr.mxu0 0.0
    %307 = vmatpush1.msra.mxu0 0.0
    %308 = vmatprep.subr.mxu0 0.0
    %309 = vmatpush1.msra.mxu0 0.0
    %310 = vmatprep.subr.mxu0 0.0
    %311 = vmatpush1.msra.mxu0 0.0
    %312 = vmatprep.subr.mxu0 0.0
    %313 = vmatpush1.msra.mxu0 0.0
    %314 = vmatprep.subr.mxu0 0.0
    %315 = vmatpush1.msra.mxu0 0.0
    %316 = vmatprep.subr.mxu0 0.0
    %317 = vmatpush1.msra.mxu0 0.0
    %318 = vmatprep.subr.mxu0 0.0
    %319 = vmatpush1.msra.mxu0 0.0
    %320 = vmatprep.subr.mxu0 0.0
    %321 = vmatpush1.msra.mxu0 0.0
    %322 = vmatprep.subr.mxu0 0.0
    %323 = vmatpush1.msra.mxu0 0.0
    %324 = vmatprep.subr.mxu0 0.0
    %325 = vmatpush1.msra.mxu0 0.0
    %326 = vmatprep.subr.mxu0 0.0
    %327 = vmatpush1.msra.mxu0 0.0
    %328 = vmatprep.mubr.f32.mxu0 0.0
    %329 = vmatmul.mubr.f32.gmra.mrb[0].mxu0 %v130
    %v330 = vpop.f32.mrb[0].mxu0
    %v331 = vadd.f32 %v262, %v330
    %v332 = vpop.f32.mrb[0].mxu0
    %333 = vmatprep.mubr.f32.mxu0 0.0
    %334 = vmatmul.mubr.f32.gmra.mrb[0].mxu0 %v132
    %v335 = vpop.f32.mrb[0].mxu0
    %v336 = vadd.f32 %v262, %v335
    %v337 = vpop.f32.mrb[0].mxu0
    %338 = vdwg.mxu0
    %v341 = vcombine.high %v331, %v331
    %v343 = vunpack.c.l.s4 1983009808
    %v344 = vunpack.c.0.s8 %v343
    %v345 = vlaneseq
    %v346 = vshrl.u32 %v345, 7
    %v347 = vsub.s32 %v344, %v346
    %v348 = vrot.slane %v331, %v347
    %v350 = vunpack.c.l.s4 1983009808
    %v351 = vunpack.c.0.s8 %v350
    %v352 = vlaneseq
    %v353 = vshrl.u32 %v352, 7
    %v354 = vsub.s32 %v351, %v353
    %v355 = vrot.slane %v341, %v354
    %v356 = vcombine.high %v348, %v348
    %v357 = vcombine.high %v355, %v355
    %v358 = vcombine.high %v336, %v336
    %v360 = vunpack.c.l.s4 1983009808
    %v361 = vunpack.c.0.s8 %v360
    %v362 = vlaneseq
    %v363 = vshrl.u32 %v362, 7
    %v364 = vsub.s32 %v361, %v363
    %v365 = vrot.slane %v336, %v364
    %v367 = vunpack.c.l.s4 1983009808
    %v368 = vunpack.c.0.s8 %v367
    %v369 = vlaneseq
    %v370 = vshrl.u32 %v369, 7
    %v371 = vsub.s32 %v368, %v370
    %v372 = vrot.slane %v358, %v371
    %v373 = vcombine.high %v365, %v365
    %v374 = vcombine.high %v372, %v372
    %vm383 = vcmask 254976
    %384 = vst.msk [vmem:[#allocation2] sm:$0x3] %vm383, %v218
    %385 = vst.msk [vmem:[#allocation2 + $0x2] sm:$0x3] %vm383, %v226
    %386 = vst.msk [vmem:[#allocation2 + $0x4] sm:$0x3] %vm383, %v225
    %387 = vst.msk [vmem:[#allocation2 + $0x6] sm:$0x3] %vm383, %v227
    %388 = vst.msk [vmem:[#allocation2 + $0x8] sm:$0x3] %vm383, %v235
    %389 = vst.msk [vmem:[#allocation2 + $0xa] sm:$0x3] %vm383, %v243
    %390 = vst.msk [vmem:[#allocation2 + $0xc] sm:$0x3] %vm383, %v242
    %391 = vst.msk [vmem:[#allocation2 + $0xe] sm:$0x3] %vm383, %v244
    %392 = vst.msk [vmem:[#allocation3] sm:$0x3] %vm383, %v348
    %393 = vst.msk [vmem:[#allocation3 + $0x2] sm:$0x3] %vm383, %v356
    %394 = vst.msk [vmem:[#allocation3 + $0x4] sm:$0x3] %vm383, %v355
    %395 = vst.msk [vmem:[#allocation3 + $0x6] sm:$0x3] %vm383, %v357
    %396 = vst.msk [vmem:[#allocation3 + $0x8] sm:$0x3] %vm383, %v365
    %397 = vst.msk [vmem:[#allocation3 + $0xa] sm:$0x3] %vm383, %v373
    %398 = vst.msk [vmem:[#allocation3 + $0xc] sm:$0x3] %vm383, %v372
    %399 = vst.msk [vmem:[#allocation3 + $0xe] sm:$0x3] %vm383, %v374
    %v401 = vunpack.c.l.s4 1983009808
    %v402 = vunpack.c.0.s8 %v401
    %v403 = vlaneseq
    %v404 = vshrl.u32 %v403, 7
    %v405 = vsub.s32 %v402, %v404
    %v406 = vrot.slane %v218, %v405
    %v408 = vunpack.c.l.s4 1983009808
    %v409 = vunpack.c.0.s8 %v408
    %v410 = vlaneseq
    %v411 = vshrl.u32 %v410, 7
    %v412 = vsub.s32 %v409, %v411
    %v413 = vrot.slane %v226, %v412
    %v415 = vunpack.c.l.s4 1983009808
    %v416 = vunpack.c.0.s8 %v415
    %v417 = vlaneseq
    %v418 = vshrl.u32 %v417, 7
    %v419 = vsub.s32 %v416, %v418
    %v420 = vrot.slane %v225, %v419
    %v422 = vunpack.c.l.s4 1983009808
    %v423 = vunpack.c.0.s8 %v422
    %v424 = vlaneseq
    %v425 = vshrl.u32 %v424, 7
    %v426 = vsub.s32 %v423, %v425
    %v427 = vrot.slane %v227, %v426
    %v429 = vunpack.c.l.s4 1983009808
    %v430 = vunpack.c.0.s8 %v429
    %v431 = vlaneseq
    %v432 = vshrl.u32 %v431, 7
    %v433 = vsub.s32 %v430, %v432
    %v434 = vrot.slane %v235, %v433
    %v436 = vunpack.c.l.s4 1983009808
    %v437 = vunpack.c.0.s8 %v436
    %v438 = vlaneseq
    %v439 = vshrl.u32 %v438, 7
    %v440 = vsub.s32 %v437, %v439
    %v441 = vrot.slane %v243, %v440
    %v443 = vunpack.c.l.s4 1983009808
    %v444 = vunpack.c.0.s8 %v443
    %v445 = vlaneseq
    %v446 = vshrl.u32 %v445, 7
    %v447 = vsub.s32 %v444, %v446
    %v448 = vrot.slane %v242, %v447
    %v450 = vunpack.c.l.s4 1983009808
    %v451 = vunpack.c.0.s8 %v450
    %v452 = vlaneseq
    %v453 = vshrl.u32 %v452, 7
    %v454 = vsub.s32 %v451, %v453
    %v455 = vrot.slane %v244, %v454
    %456 = vrot.lane.b32.xlu0 %v406, 96
    %v457 = vpop.permute.xlu0 %456
    %458 = vrot.lane.b32.xlu0 %v413, 96
    %v459 = vpop.permute.xlu0 %458
    %460 = vrot.lane.b32.xlu0 %v420, 96
    %v461 = vpop.permute.xlu0 %460
    %462 = vrot.lane.b32.xlu0 %v427, 96
    %v463 = vpop.permute.xlu0 %462
    %464 = vrot.lane.b32.xlu0 %v434, 96
    %v465 = vpop.permute.xlu0 %464
    %466 = vrot.lane.b32.xlu0 %v441, 96
    %v467 = vpop.permute.xlu0 %466
    %468 = vrot.lane.b32.xlu0 %v448, 96
    %v469 = vpop.permute.xlu0 %468
    %470 = vrot.lane.b32.xlu0 %v455, 96
    %v471 = vpop.permute.xlu0 %470
    %s480 = scalar_lea.vmem [#allocation2], 16
    %481 = vst.msk [vmem:[%s480] sm:$0x3] %vm383, %v457
    %482 = vst.msk [vmem:[%s480 + $0x2] sm:$0x3] %vm383, %v459
    %483 = vst.msk [vmem:[%s480 + $0x4] sm:$0x3] %vm383, %v461
    %484 = vst.msk [vmem:[%s480 + $0x6] sm:$0x3] %vm383, %v463
    %485 = vst.msk [vmem:[%s480 + $0x8] sm:$0x3] %vm383, %v465
    %486 = vst.msk [vmem:[%s480 + $0xa] sm:$0x3] %vm383, %v467
    %487 = vst.msk [vmem:[%s480 + $0xc] sm:$0x3] %vm383, %v469
    %488 = vst.msk [vmem:[%s480 + $0xe] sm:$0x3] %vm383, %v471
    %v490 = vunpack.c.l.s4 1983009808
    %v491 = vunpack.c.0.s8 %v490
    %v492 = vlaneseq
    %v493 = vshrl.u32 %v492, 7
    %v494 = vsub.s32 %v491, %v493
    %v495 = vrot.slane %v348, %v494
    %v497 = vunpack.c.l.s4 1983009808
    %v498 = vunpack.c.0.s8 %v497
    %v499 = vlaneseq
    %v500 = vshrl.u32 %v499, 7
    %v501 = vsub.s32 %v498, %v500
    %v502 = vrot.slane %v356, %v501
    %v504 = vunpack.c.l.s4 1983009808
    %v505 = vunpack.c.0.s8 %v504
    %v506 = vlaneseq
    %v507 = vshrl.u32 %v506, 7
    %v508 = vsub.s32 %v505, %v507
    %v509 = vrot.slane %v355, %v508
    %v511 = vunpack.c.l.s4 1983009808
    %v512 = vunpack.c.0.s8 %v511
    %v513 = vlaneseq
    %v514 = vshrl.u32 %v513, 7
    %v515 = vsub.s32 %v512, %v514
    %v516 = vrot.slane %v357, %v515
    %v518 = vunpack.c.l.s4 1983009808
    %v519 = vunpack.c.0.s8 %v518
    %v520 = vlaneseq
    %v521 = vshrl.u32 %v520, 7
    %v522 = vsub.s32 %v519, %v521
    %v523 = vrot.slane %v365, %v522
    %v525 = vunpack.c.l.s4 1983009808
    %v526 = vunpack.c.0.s8 %v525
    %v527 = vlaneseq
    %v528 = vshrl.u32 %v527, 7
    %v529 = vsub.s32 %v526, %v528
    %v530 = vrot.slane %v373, %v529
    %v532 = vunpack.c.l.s4 1983009808
    %v533 = vunpack.c.0.s8 %v532
    %v534 = vlaneseq
    %v535 = vshrl.u32 %v534, 7
    %v536 = vsub.s32 %v533, %v535
    %v537 = vrot.slane %v372, %v536
    %v539 = vunpack.c.l.s4 1983009808
    %v540 = vunpack.c.0.s8 %v539
    %v541 = vlaneseq
    %v542 = vshrl.u32 %v541, 7
    %v543 = vsub.s32 %v540, %v542
    %v544 = vrot.slane %v374, %v543
    %545 = vrot.lane.b32.xlu0 %v495, 96
    %v546 = vpop.permute.xlu0 %545
    %547 = vrot.lane.b32.xlu0 %v502, 96
    %v548 = vpop.permute.xlu0 %547
    %549 = vrot.lane.b32.xlu0 %v509, 96
    %v550 = vpop.permute.xlu0 %549
    %551 = vrot.lane.b32.xlu0 %v516, 96
    %v552 = vpop.permute.xlu0 %551
    %553 = vrot.lane.b32.xlu0 %v523, 96
    %v554 = vpop.permute.xlu0 %553
    %555 = vrot.lane.b32.xlu0 %v530, 96
    %v556 = vpop.permute.xlu0 %555
    %557 = vrot.lane.b32.xlu0 %v537, 96
    %v558 = vpop.permute.xlu0 %557
    %559 = vrot.lane.b32.xlu0 %v544, 96
    %v560 = vpop.permute.xlu0 %559
    %s569 = scalar_lea.vmem [#allocation3], 16
    %570 = vst.msk [vmem:[%s569] sm:$0x3] %vm383, %v546
    %571 = vst.msk [vmem:[%s569 + $0x2] sm:$0x3] %vm383, %v548
    %572 = vst.msk [vmem:[%s569 + $0x4] sm:$0x3] %vm383, %v550
    %573 = vst.msk [vmem:[%s569 + $0x6] sm:$0x3] %vm383, %v552
    %574 = vst.msk [vmem:[%s569 + $0x8] sm:$0x3] %vm383, %v554
    %575 = vst.msk [vmem:[%s569 + $0xa] sm:$0x3] %vm383, %v556
    %576 = vst.msk [vmem:[%s569 + $0xc] sm:$0x3] %vm383, %v558
    %577 = vst.msk [vmem:[%s569 + $0xe] sm:$0x3] %vm383, %v560
    %578 = vrot.lane.b32.xlu0 %v406, 64
    %v579 = vpop.permute.xlu0 %578
    %580 = vrot.lane.b32.xlu0 %v413, 64
    %v581 = vpop.permute.xlu0 %580
    %582 = vrot.lane.b32.xlu0 %v420, 64
    %v583 = vpop.permute.xlu0 %582
    %584 = vrot.lane.b32.xlu0 %v427, 64
    %v585 = vpop.permute.xlu0 %584
    %586 = vrot.lane.b32.xlu0 %v434, 64
    %v587 = vpop.permute.xlu0 %586
    %588 = vrot.lane.b32.xlu0 %v441, 64
    %v589 = vpop.permute.xlu0 %588
    %590 = vrot.lane.b32.xlu0 %v448, 64
    %v591 = vpop.permute.xlu0 %590
    %592 = vrot.lane.b32.xlu0 %v455, 64
    %v593 = vpop.permute.xlu0 %592
    %s602 = scalar_lea.vmem [#allocation2], 32
    %603 = vst.msk [vmem:[%s602] sm:$0x3] %vm383, %v579
    %604 = vst.msk [vmem:[%s602 + $0x2] sm:$0x3] %vm383, %v581
    %605 = vst.msk [vmem:[%s602 + $0x4] sm:$0x3] %vm383, %v583
    %606 = vst.msk [vmem:[%s602 + $0x6] sm:$0x3] %vm383, %v585
    %607 = vst.msk [vmem:[%s602 + $0x8] sm:$0x3] %vm383, %v587
    %608 = vst.msk [vmem:[%s602 + $0xa] sm:$0x3] %vm383, %v589
    %609 = vst.msk [vmem:[%s602 + $0xc] sm:$0x3] %vm383, %v591
    %610 = vst.msk [vmem:[%s602 + $0xe] sm:$0x3] %vm383, %v593
    %611 = vrot.lane.b32.xlu0 %v495, 64
    %v612 = vpop.permute.xlu0 %611
    %613 = vrot.lane.b32.xlu0 %v502, 64
    %v614 = vpop.permute.xlu0 %613
    %615 = vrot.lane.b32.xlu0 %v509, 64
    %v616 = vpop.permute.xlu0 %615
    %617 = vrot.lane.b32.xlu0 %v516, 64
    %v618 = vpop.permute.xlu0 %617
    %619 = vrot.lane.b32.xlu0 %v523, 64
    %v620 = vpop.permute.xlu0 %619
    %621 = vrot.lane.b32.xlu0 %v530, 64
    %v622 = vpop.permute.xlu0 %621
    %623 = vrot.lane.b32.xlu0 %v537, 64
    %v624 = vpop.permute.xlu0 %623
    %625 = vrot.lane.b32.xlu0 %v544, 64
    %v626 = vpop.permute.xlu0 %625
    %s635 = scalar_lea.vmem [#allocation3], 32
    %636 = vst.msk [vmem:[%s635] sm:$0x3] %vm383, %v612
    %637 = vst.msk [vmem:[%s635 + $0x2] sm:$0x3] %vm383, %v614
    %638 = vst.msk [vmem:[%s635 + $0x4] sm:$0x3] %vm383, %v616
    %639 = vst.msk [vmem:[%s635 + $0x6] sm:$0x3] %vm383, %v618
    %640 = vst.msk [vmem:[%s635 + $0x8] sm:$0x3] %vm383, %v620
    %641 = vst.msk [vmem:[%s635 + $0xa] sm:$0x3] %vm383, %v622
    %642 = vst.msk [vmem:[%s635 + $0xc] sm:$0x3] %vm383, %v624
    %643 = vst.msk [vmem:[%s635 + $0xe] sm:$0x3] %vm383, %v626
    %v644 = vld [vmem:[%s3] sm:$0xff]
    %v645 = vld [vmem:[%s3 + $0x8] sm:$0xff]
    %v646 = vld [vmem:[%s3 + $0x10] sm:$0xff]
    %v647 = vld [vmem:[%s3 + $0x18] sm:$0xff]
    %v648 = vld [vmem:[%s7] sm:$0xff]
    %v649 = vld [vmem:[%s7 + $0x8] sm:$0xff]
    %v650 = vld [vmem:[%s7 + $0x10] sm:$0xff]
    %v651 = vld [vmem:[%s7 + $0x18] sm:$0xff]
    %v652 = vld [vmem:[%s16] sm:$0xff]
    %v653 = vld [vmem:[%s16 + $0x8] sm:$0xff]
    %v654 = vld [vmem:[%s16 + $0x10] sm:$0xff]
    %v655 = vld [vmem:[%s16 + $0x18] sm:$0xff]
    %v656 = vld [vmem:[%s5] sm:$0x1]
    %v658 = vlaneseq
    %v659 = vshrl.u32 %v658, 7
    %v660 = vsub.s32 0, %v659
    %v661 = vrot.slane %v656, %v660
    %v663 = vld [vmem:[%s9] sm:$0x1]
    %v665 = vlaneseq
    %v666 = vshrl.u32 %v665, 7
    %v667 = vsub.s32 0, %v666
    %v668 = vrot.slane %v663, %v667
    %v670 = vld [vmem:[%s18] sm:$0x1]
    %v672 = vlaneseq
    %v673 = vshrl.u32 %v672, 7
    %v674 = vsub.s32 0, %v673
    %v675 = vrot.slane %v670, %v674
    %v677 = vld [vmem:[#allocation2] sm:$0x3]
    %v678 = vld [vmem:[%s480] sm:$0x3]
    %v679 = vld [vmem:[%s602] sm:$0x3]
    %v681 = vsel %vm129, 0.0, 0
    %683 = vmatprep.subr.mxu0 0.0
    %684 = vmatpush1.msra.mxu0 %v644
    %685 = vmatprep.subr.mxu0 0.0
    %686 = vmatpush1.msra.mxu0 %v645
    %687 = vmatprep.subr.mxu0 0.0
    %688 = vmatpush1.msra.mxu0 %v646
    %689 = vmatprep.subr.mxu0 0.0
    %690 = vmatpush1.msra.mxu0 %v647
    %691 = vmatprep.subr.mxu0 0.0
    %692 = vmatpush1.msra.mxu0 0.0
    %693 = vmatprep.subr.mxu0 0.0
    %694 = vmatpush1.msra.mxu0 0.0
    %695 = vmatprep.subr.mxu0 0.0
    %696 = vmatpush1.msra.mxu0 0.0
    %697 = vmatprep.subr.mxu0 0.0
    %698 = vmatpush1.msra.mxu0 0.0
    %699 = vmatprep.subr.mxu0 0.0
    %700 = vmatpush1.msra.mxu0 0.0
    %701 = vmatprep.subr.mxu0 0.0
    %702 = vmatpush1.msra.mxu0 0.0
    %703 = vmatprep.subr.mxu0 0.0
    %704 = vmatpush1.msra.mxu0 0.0
    %705 = vmatprep.subr.mxu0 0.0
    %706 = vmatpush1.msra.mxu0 0.0
    %707 = vmatprep.subr.mxu0 0.0
    %708 = vmatpush1.msra.mxu0 0.0
    %709 = vmatprep.subr.mxu0 0.0
    %710 = vmatpush1.msra.mxu0 0.0
    %711 = vmatprep.subr.mxu0 0.0
    %712 = vmatpush1.msra.mxu0 0.0
    %713 = vmatprep.subr.mxu0 0.0
    %714 = vmatpush1.msra.mxu0 0.0
    %715 = vmatprep.subr.mxu0 0.0
    %716 = vmatpush1.msra.mxu0 0.0
    %717 = vmatprep.subr.mxu0 0.0
    %718 = vmatpush1.msra.mxu0 0.0
    %719 = vmatprep.subr.mxu0 0.0
    %720 = vmatpush1.msra.mxu0 0.0
    %721 = vmatprep.subr.mxu0 0.0
    %722 = vmatpush1.msra.mxu0 0.0
    %723 = vmatprep.subr.mxu0 0.0
    %724 = vmatpush1.msra.mxu0 0.0
    %725 = vmatprep.subr.mxu0 0.0
    %726 = vmatpush1.msra.mxu0 0.0
    %727 = vmatprep.subr.mxu0 0.0
    %728 = vmatpush1.msra.mxu0 0.0
    %729 = vmatprep.subr.mxu0 0.0
    %730 = vmatpush1.msra.mxu0 0.0
    %731 = vmatprep.subr.mxu0 0.0
    %732 = vmatpush1.msra.mxu0 0.0
    %733 = vmatprep.subr.mxu0 0.0
    %734 = vmatpush1.msra.mxu0 0.0
    %735 = vmatprep.subr.mxu0 0.0
    %736 = vmatpush1.msra.mxu0 0.0
    %737 = vmatprep.subr.mxu0 0.0
    %738 = vmatpush1.msra.mxu0 0.0
    %739 = vmatprep.subr.mxu0 0.0
    %740 = vmatpush1.msra.mxu0 0.0
    %741 = vmatprep.subr.mxu0 0.0
    %742 = vmatpush1.msra.mxu0 0.0
    %743 = vmatprep.subr.mxu0 0.0
    %744 = vmatpush1.msra.mxu0 0.0
    %745 = vmatprep.subr.mxu0 0.0
    %746 = vmatpush1.msra.mxu0 0.0
    %747 = vmatprep.mubr.f32.mxu0 0.0
    %748 = vmatmul.mubr.f32.gmra.mrb[0].mxu0 %v681
    %v749 = vpop.f32.mrb[0].mxu0
    %v750 = vadd.f32 %v661, %v749
    %v751 = vpop.f32.mrb[0].mxu0
    %752 = vdwg.mxu0
    %v753 = vadd.f32 %v677, %v750
    %v754 = vxor.u32 %v753, 2147483648
    %v755 = vmul.f32 %v754, 1.442695
    %v756 = vpow.pop %v755
    %v757 = vadd.f32 %v756, 1.0
    %v758 = vrcp.pop %v757
    %v759 = vmul.f32 1.0, %v758
    %761 = vrot.lane.b32.xlu0 %v750, 96
    %v762 = vpop.permute.xlu0 %761
    %v764 = vadd.f32 %v678, %v762
    %v765 = vxor.u32 %v764, 2147483648
    %v766 = vmul.f32 %v765, 1.442695
    %v767 = vpow.pop %v766
    %v768 = vadd.f32 %v767, 1.0
    %v769 = vrcp.pop %v768
    %v770 = vmul.f32 1.0, %v769
    %771 = vrot.lane.b32.xlu0 %v750, 64
    %v772 = vpop.permute.xlu0 %771
    %v774 = vmul.f32 %v759, %v772
    %v775 = vadd.f32 %v679, %v774
    %v776 = vtanh.pop %v775
    %v777 = vsub.f32 1.0, %v770
    %v778 = vmul.f32 %v777, %v776
    %v779 = vmul.f32 %v770, 0.0
    %v780 = vadd.f32 %v778, %v779
    %s781 = scalar_lea.vmem [#allocation3], 14
    %v782 = vld [vmem:[%s781] sm:$0x3]
    %s783 = scalar_lea.vmem [#allocation3], 30
    %v784 = vld [vmem:[%s783] sm:$0x3]
    %s785 = scalar_lea.vmem [#allocation3], 46
    %v786 = vld [vmem:[%s785] sm:$0x3]
    %787 = vmatprep.subr.mxu0 0.0
    %788 = vmatpush1.msra.mxu0 %v648
    %789 = vmatprep.subr.mxu0 0.0
    %790 = vmatpush1.msra.mxu0 %v649
    %791 = vmatprep.subr.mxu0 0.0
    %792 = vmatpush1.msra.mxu0 %v650
    %793 = vmatprep.subr.mxu0 0.0
    %794 = vmatpush1.msra.mxu0 %v651
    %795 = vmatprep.subr.mxu0 0.0
    %796 = vmatpush1.msra.mxu0 0.0
    %797 = vmatprep.subr.mxu0 0.0
    %798 = vmatpush1.msra.mxu0 0.0
    %799 = vmatprep.subr.mxu0 0.0
    %800 = vmatpush1.msra.mxu0 0.0
    %801 = vmatprep.subr.mxu0 0.0
    %802 = vmatpush1.msra.mxu0 0.0
    %803 = vmatprep.subr.mxu0 0.0
    %804 = vmatpush1.msra.mxu0 0.0
    %805 = vmatprep.subr.mxu0 0.0
    %806 = vmatpush1.msra.mxu0 0.0
    %807 = vmatprep.subr.mxu0 0.0
    %808 = vmatpush1.msra.mxu0 0.0
    %809 = vmatprep.subr.mxu0 0.0
    %810 = vmatpush1.msra.mxu0 0.0
    %811 = vmatprep.subr.mxu0 0.0
    %812 = vmatpush1.msra.mxu0 0.0
    %813 = vmatprep.subr.mxu0 0.0
    %814 = vmatpush1.msra.mxu0 0.0
    %815 = vmatprep.subr.mxu0 0.0
    %816 = vmatpush1.msra.mxu0 0.0
    %817 = vmatprep.subr.mxu0 0.0
    %818 = vmatpush1.msra.mxu0 0.0
    %819 = vmatprep.subr.mxu0 0.0
    %820 = vmatpush1.msra.mxu0 0.0
    %821 = vmatprep.subr.mxu0 0.0
    %822 = vmatpush1.msra.mxu0 0.0
    %823 = vmatprep.subr.mxu0 0.0
    %824 = vmatpush1.msra.mxu0 0.0
    %825 = vmatprep.subr.mxu0 0.0
    %826 = vmatpush1.msra.mxu0 0.0
    %827 = vmatprep.subr.mxu0 0.0
    %828 = vmatpush1.msra.mxu0 0.0
    %829 = vmatprep.subr.mxu0 0.0
    %830 = vmatpush1.msra.mxu0 0.0
    %831 = vmatprep.subr.mxu0 0.0
    %832 = vmatpush1.msra.mxu0 0.0
    %833 = vmatprep.subr.mxu0 0.0
    %834 = vmatpush1.msra.mxu0 0.0
    %835 = vmatprep.subr.mxu0 0.0
    %836 = vmatpush1.msra.mxu0 0.0
    %837 = vmatprep.subr.mxu0 0.0
    %838 = vmatpush1.msra.mxu0 0.0
    %839 = vmatprep.subr.mxu0 0.0
    %840 = vmatpush1.msra.mxu0 0.0
    %841 = vmatprep.subr.mxu0 0.0
    %842 = vmatpush1.msra.mxu0 0.0
    %843 = vmatprep.subr.mxu0 0.0
    %844 = vmatpush1.msra.mxu0 0.0
    %845 = vmatprep.subr.mxu0 0.0
    %846 = vmatpush1.msra.mxu0 0.0
    %847 = vmatprep.subr.mxu0 0.0
    %848 = vmatpush1.msra.mxu0 0.0
    %849 = vmatprep.subr.mxu0 0.0
    %850 = vmatpush1.msra.mxu0 0.0
    %851 = vmatprep.mubr.f32.mxu0 0.0
    %852 = vmatmul.mubr.f32.gmra.mrb[0].mxu0 %v681
    %v853 = vpop.f32.mrb[0].mxu0
    %v854 = vadd.f32 %v668, %v853
    %v855 = vpop.f32.mrb[0].mxu0
    %856 = vdwg.mxu0
    %v857 = vadd.f32 %v782, %v854
    %v858 = vxor.u32 %v857, 2147483648
    %v859 = vmul.f32 %v858, 1.442695
    %v860 = vpow.pop %v859
    %v861 = vadd.f32 %v860, 1.0
    %v862 = vrcp.pop %v861
    %v863 = vmul.f32 1.0, %v862
    %865 = vrot.lane.b32.xlu0 %v854, 96
    %v866 = vpop.permute.xlu0 %865
    %v868 = vadd.f32 %v784, %v866
    %v869 = vxor.u32 %v868, 2147483648
    %v870 = vmul.f32 %v869, 1.442695
    %v871 = vpow.pop %v870
    %v872 = vadd.f32 %v871, 1.0
    %v873 = vrcp.pop %v872
    %v874 = vmul.f32 1.0, %v873
    %875 = vrot.lane.b32.xlu0 %v854, 64
    %v876 = vpop.permute.xlu0 %875
    %v878 = vmul.f32 %v863, %v876
    %v879 = vadd.f32 %v786, %v878
    %v880 = vtanh.pop %v879
    %v881 = vsub.f32 1.0, %v874
    %v882 = vmul.f32 %v881, %v880
    %v883 = vmul.f32 %v874, 0.0
    %v884 = vadd.f32 %v882, %v883
    %885 = vst.msk [vmem:[#allocation5] sm:$0x3] %vm383, %v780
    %s886 = scalar_lea.vmem [#allocation6], 14
    %887 = vst.msk [vmem:[%s886] sm:$0x3] %vm383, %v884
    %s888 = scalar_lea.vmem [#allocation2], 2
    %v889 = vld [vmem:[%s888] sm:$0x3]
    %s890 = scalar_lea.vmem [#allocation2], 18
    %v891 = vld [vmem:[%s890] sm:$0x3]
    %s892 = scalar_lea.vmem [#allocation2], 34
    %v893 = vld [vmem:[%s892] sm:$0x3]
    %v895 = vsel %vm129, %v780, 0
    %897 = vmatprep.subr.mxu0 0.0
    %898 = vmatpush1.msra.mxu0 %v644
    %899 = vmatprep.subr.mxu0 0.0
    %900 = vmatpush1.msra.mxu0 %v645
    %901 = vmatprep.subr.mxu0 0.0
    %902 = vmatpush1.msra.mxu0 %v646
    %903 = vmatprep.subr.mxu0 0.0
    %904 = vmatpush1.msra.mxu0 %v647
    %905 = vmatprep.subr.mxu0 0.0
    %906 = vmatpush1.msra.mxu0 0.0
    %907 = vmatprep.subr.mxu0 0.0
    %908 = vmatpush1.msra.mxu0 0.0
    %909 = vmatprep.subr.mxu0 0.0
    %910 = vmatpush1.msra.mxu0 0.0
    %911 = vmatprep.subr.mxu0 0.0
    %912 = vmatpush1.msra.mxu0 0.0
    %913 = vmatprep.subr.mxu0 0.0
    %914 = vmatpush1.msra.mxu0 0.0
    %915 = vmatprep.subr.mxu0 0.0
    %916 = vmatpush1.msra.mxu0 0.0
    %917 = vmatprep.subr.mxu0 0.0
    %918 = vmatpush1.msra.mxu0 0.0
    %919 = vmatprep.subr.mxu0 0.0
    %920 = vmatpush1.msra.mxu0 0.0
    %921 = vmatprep.subr.mxu0 0.0
    %922 = vmatpush1.msra.mxu0 0.0
    %923 = vmatprep.subr.mxu0 0.0
    %924 = vmatpush1.msra.mxu0 0.0
    %925 = vmatprep.subr.mxu0 0.0
    %926 = vmatpush1.msra.mxu0 0.0
    %927 = vmatprep.subr.mxu0 0.0
    %928 = vmatpush1.msra.mxu0 0.0
    %929 = vmatprep.subr.mxu0 0.0
    %930 = vmatpush1.msra.mxu0 0.0
    %931 = vmatprep.subr.mxu0 0.0
    %932 = vmatpush1.msra.mxu0 0.0
    %933 = vmatprep.subr.mxu0 0.0
    %934 = vmatpush1.msra.mxu0 0.0
    %935 = vmatprep.subr.mxu0 0.0
    %936 = vmatpush1.msra.mxu0 0.0
    %937 = vmatprep.subr.mxu0 0.0
    %938 = vmatpush1.msra.mxu0 0.0
    %939 = vmatprep.subr.mxu0 0.0
    %940 = vmatpush1.msra.mxu0 0.0
    %941 = vmatprep.subr.mxu0 0.0
    %942 = vmatpush1.msra.mxu0 0.0
    %943 = vmatprep.subr.mxu0 0.0
    %944 = vmatpush1.msra.mxu0 0.0
    %945 = vmatprep.subr.mxu0 0.0
    %946 = vmatpush1.msra.mxu0 0.0
    %947 = vmatprep.subr.mxu0 0.0
    %948 = vmatpush1.msra.mxu0 0.0
    %949 = vmatprep.subr.mxu0 0.0
    %950 = vmatpush1.msra.mxu0 0.0
    %951 = vmatprep.subr.mxu0 0.0
    %952 = vmatpush1.msra.mxu0 0.0
    %953 = vmatprep.subr.mxu0 0.0
    %954 = vmatpush1.msra.mxu0 0.0
    %955 = vmatprep.subr.mxu0 0.0
    %956 = vmatpush1.msra.mxu0 0.0
    %957 = vmatprep.subr.mxu0 0.0
    %958 = vmatpush1.msra.mxu0 0.0
    %959 = vmatprep.subr.mxu0 0.0
    %960 = vmatpush1.msra.mxu0 0.0
    %961 = vmatprep.mubr.f32.mxu0 0.0
    %962 = vmatmul.mubr.f32.gmra.mrb[0].mxu0 %v895
    %v963 = vpop.f32.mrb[0].mxu0
    %v964 = vadd.f32 %v661, %v963
    %v965 = vpop.f32.mrb[0].mxu0
    %966 = vdwg.mxu0
    %v967 = vadd.f32 %v889, %v964
    %v968 = vxor.u32 %v967, 2147483648
    %v969 = vmul.f32 %v968, 1.442695
    %v970 = vpow.pop %v969
    %v971 = vadd.f32 %v970, 1.0
    %v972 = vrcp.pop %v971
    %v973 = vmul.f32 1.0, %v972
    %975 = vrot.lane.b32.xlu0 %v964, 96
    %v976 = vpop.permute.xlu0 %975
    %v978 = vadd.f32 %v891, %v976
    %v979 = vxor.u32 %v978, 2147483648
    %v980 = vmul.f32 %v979, 1.442695
    %v981 = vpow.pop %v980
    %v982 = vadd.f32 %v981, 1.0
    %v983 = vrcp.pop %v982
    %v984 = vmul.f32 1.0, %v983
    %985 = vrot.lane.b32.xlu0 %v964, 64
    %v986 = vpop.permute.xlu0 %985
    %v988 = vmul.f32 %v973, %v986
    %v989 = vadd.f32 %v893, %v988
    %v990 = vtanh.pop %v989
    %v991 = vsub.f32 1.0, %v984
    %v992 = vmul.f32 %v991, %v990
    %v993 = vmul.f32 %v984, %v780
    %v994 = vadd.f32 %v992, %v993
    %s995 = scalar_lea.vmem [#allocation3], 12
    %v996 = vld [vmem:[%s995] sm:$0x3]
    %s997 = scalar_lea.vmem [#allocation3], 28
    %v998 = vld [vmem:[%s997] sm:$0x3]
    %s999 = scalar_lea.vmem [#allocation3], 44
    %v1000 = vld [vmem:[%s999] sm:$0x3]
    %v1002 = vsel %vm129, %v884, 0
    %1004 = vmatprep.subr.mxu0 0.0
    %1005 = vmatpush1.msra.mxu0 %v648
    %1006 = vmatprep.subr.mxu0 0.0
    %1007 = vmatpush1.msra.mxu0 %v649
    %1008 = vmatprep.subr.mxu0 0.0
    %1009 = vmatpush1.msra.mxu0 %v650
    %1010 = vmatprep.subr.mxu0 0.0
    %1011 = vmatpush1.msra.mxu0 %v651
    %1012 = vmatprep.subr.mxu0 0.0
    %1013 = vmatpush1.msra.mxu0 0.0
    %1014 = vmatprep.subr.mxu0 0.0
    %1015 = vmatpush1.msra.mxu0 0.0
    %1016 = vmatprep.subr.mxu0 0.0
    %1017 = vmatpush1.msra.mxu0 0.0
    %1018 = vmatprep.subr.mxu0 0.0
    %1019 = vmatpush1.msra.mxu0 0.0
    %1020 = vmatprep.subr.mxu0 0.0
    %1021 = vmatpush1.msra.mxu0 0.0
    %1022 = vmatprep.subr.mxu0 0.0
    %1023 = vmatpush1.msra.mxu0 0.0
    %1024 = vmatprep.subr.mxu0 0.0
    %1025 = vmatpush1.msra.mxu0 0.0
    %1026 = vmatprep.subr.mxu0 0.0
    %1027 = vmatpush1.msra.mxu0 0.0
    %1028 = vmatprep.subr.mxu0 0.0
    %1029 = vmatpush1.msra.mxu0 0.0
    %1030 = vmatprep.subr.mxu0 0.0
    %1031 = vmatpush1.msra.mxu0 0.0
    %1032 = vmatprep.subr.mxu0 0.0
    %1033 = vmatpush1.msra.mxu0 0.0
    %1034 = vmatprep.subr.mxu0 0.0
    %1035 = vmatpush1.msra.mxu0 0.0
    %1036 = vmatprep.subr.mxu0 0.0
    %1037 = vmatpush1.msra.mxu0 0.0
    %1038 = vmatprep.subr.mxu0 0.0
    %1039 = vmatpush1.msra.mxu0 0.0
    %1040 = vmatprep.subr.mxu0 0.0
    %1041 = vmatpush1.msra.mxu0 0.0
    %1042 = vmatprep.subr.mxu0 0.0
    %1043 = vmatpush1.msra.mxu0 0.0
    %1044 = vmatprep.subr.mxu0 0.0
    %1045 = vmatpush1.msra.mxu0 0.0
    %1046 = vmatprep.subr.mxu0 0.0
    %1047 = vmatpush1.msra.mxu0 0.0
    %1048 = vmatprep.subr.mxu0 0.0
    %1049 = vmatpush1.msra.mxu0 0.0
    %1050 = vmatprep.subr.mxu0 0.0
    %1051 = vmatpush1.msra.mxu0 0.0
    %1052 = vmatprep.subr.mxu0 0.0
    %1053 = vmatpush1.msra.mxu0 0.0
    %1054 = vmatprep.subr.mxu0 0.0
    %1055 = vmatpush1.msra.mxu0 0.0
    %1056 = vmatprep.subr.mxu0 0.0
    %1057 = vmatpush1.msra.mxu0 0.0
    %1058 = vmatprep.subr.mxu0 0.0
    %1059 = vmatpush1.msra.mxu0 0.0
    %1060 = vmatprep.subr.mxu0 0.0
    %1061 = vmatpush1.msra.mxu0 0.0
    %1062 = vmatprep.subr.mxu0 0.0
    %1063 = vmatpush1.msra.mxu0 0.0
    %1064 = vmatprep.subr.mxu0 0.0
    %1065 = vmatpush1.msra.mxu0 0.0
    %1066 = vmatprep.subr.mxu0 0.0
    %1067 = vmatpush1.msra.mxu0 0.0
    %1068 = vmatprep.mubr.f32.mxu0 0.0
    %1069 = vmatmul.mubr.f32.gmra.mrb[0].mxu0 %v1002
    %v1070 = vpop.f32.mrb[0].mxu0
    %v1071 = vadd.f32 %v668, %v1070
    %v1072 = vpop.f32.mrb[0].mxu0
    %1073 = vdwg.mxu0
    %v1074 = vadd.f32 %v996, %v1071
    %v1075 = vxor.u32 %v1074, 2147483648
    %v1076 = vmul.f32 %v1075, 1.442695
    %v1077 = vpow.pop %v1076
    %v1078 = vadd.f32 %v1077, 1.0
    %v1079 = vrcp.pop %v1078
    %v1080 = vmul.f32 1.0, %v1079
    %1082 = vrot.lane.b32.xlu0 %v1071, 96
    %v1083 = vpop.permute.xlu0 %1082
    %v1085 = vadd.f32 %v998, %v1083
    %v1086 = vxor.u32 %v1085, 2147483648
    %v1087 = vmul.f32 %v1086, 1.442695
    %v1088 = vpow.pop %v1087
    %v1089 = vadd.f32 %v1088, 1.0
    %v1090 = vrcp.pop %v1089
    %v1091 = vmul.f32 1.0, %v1090
    %1092 = vrot.lane.b32.xlu0 %v1071, 64
    %v1093 = vpop.permute.xlu0 %1092
    %v1095 = vmul.f32 %v1080, %v1093
    %v1096 = vadd.f32 %v1000, %v1095
    %v1097 = vtanh.pop %v1096
    %v1098 = vsub.f32 1.0, %v1091
    %v1099 = vmul.f32 %v1098, %v1097
    %v1100 = vmul.f32 %v1091, %v884
    %v1101 = vadd.f32 %v1099, %v1100
    %s1102 = scalar_lea.vmem [#allocation5], 2
    %1103 = vst.msk [vmem:[%s1102] sm:$0x3] %vm383, %v994
    %s1104 = scalar_lea.vmem [#allocation6], 12
    %1105 = vst.msk [vmem:[%s1104] sm:$0x3] %vm383, %v1101
    %s1106 = scalar_lea.vmem [#allocation2], 4
    %v1107 = vld [vmem:[%s1106] sm:$0x3]
    %s1108 = scalar_lea.vmem [#allocation2], 20
    %v1109 = vld [vmem:[%s1108] sm:$0x3]
    %s1110 = scalar_lea.vmem [#allocation2], 36
    %v1111 = vld [vmem:[%s1110] sm:$0x3]
    %v1113 = vsel %vm129, %v994, 0
    %1115 = vmatprep.subr.mxu0 0.0
    %1116 = vmatpush1.msra.mxu0 %v644
    %1117 = vmatprep.subr.mxu0 0.0
    %1118 = vmatpush1.msra.mxu0 %v645
    %1119 = vmatprep.subr.mxu0 0.0
    %1120 = vmatpush1.msra.mxu0 %v646
    %1121 = vmatprep.subr.mxu0 0.0
    %1122 = vmatpush1.msra.mxu0 %v647
    %1123 = vmatprep.subr.mxu0 0.0
    %1124 = vmatpush1.msra.mxu0 0.0
    %1125 = vmatprep.subr.mxu0 0.0
    %1126 = vmatpush1.msra.mxu0 0.0
    %1127 = vmatprep.subr.mxu0 0.0
    %1128 = vmatpush1.msra.mxu0 0.0
    %1129 = vmatprep.subr.mxu0 0.0
    %1130 = vmatpush1.msra.mxu0 0.0
    %1131 = vmatprep.subr.mxu0 0.0
    %1132 = vmatpush1.msra.mxu0 0.0
    %1133 = vmatprep.subr.mxu0 0.0
    %1134 = vmatpush1.msra.mxu0 0.0
    %1135 = vmatprep.subr.mxu0 0.0
    %1136 = vmatpush1.msra.mxu0 0.0
    %1137 = vmatprep.subr.mxu0 0.0
    %1138 = vmatpush1.msra.mxu0 0.0
    %1139 = vmatprep.subr.mxu0 0.0
    %1140 = vmatpush1.msra.mxu0 0.0
    %1141 = vmatprep.subr.mxu0 0.0
    %1142 = vmatpush1.msra.mxu0 0.0
    %1143 = vmatprep.subr.mxu0 0.0
    %1144 = vmatpush1.msra.mxu0 0.0
    %1145 = vmatprep.subr.mxu0 0.0
    %1146 = vmatpush1.msra.mxu0 0.0
    %1147 = vmatprep.subr.mxu0 0.0
    %1148 = vmatpush1.msra.mxu0 0.0
    %1149 = vmatprep.subr.mxu0 0.0
    %1150 = vmatpush1.msra.mxu0 0.0
    %1151 = vmatprep.subr.mxu0 0.0
    %1152 = vmatpush1.msra.mxu0 0.0
    %1153 = vmatprep.subr.mxu0 0.0
    %1154 = vmatpush1.msra.mxu0 0.0
    %1155 = vmatprep.subr.mxu0 0.0
    %1156 = vmatpush1.msra.mxu0 0.0
    %1157 = vmatprep.subr.mxu0 0.0
    %1158 = vmatpush1.msra.mxu0 0.0
    %1159 = vmatprep.subr.mxu0 0.0
    %1160 = vmatpush1.msra.mxu0 0.0
    %1161 = vmatprep.subr.mxu0 0.0
    %1162 = vmatpush1.msra.mxu0 0.0
    %1163 = vmatprep.subr.mxu0 0.0
    %1164 = vmatpush1.msra.mxu0 0.0
    %1165 = vmatprep.subr.mxu0 0.0
    %1166 = vmatpush1.msra.mxu0 0.0
    %1167 = vmatprep.subr.mxu0 0.0
    %1168 = vmatpush1.msra.mxu0 0.0
    %1169 = vmatprep.subr.mxu0 0.0
    %1170 = vmatpush1.msra.mxu0 0.0
    %1171 = vmatprep.subr.mxu0 0.0
    %1172 = vmatpush1.msra.mxu0 0.0
    %1173 = vmatprep.subr.mxu0 0.0
    %1174 = vmatpush1.msra.mxu0 0.0
    %1175 = vmatprep.subr.mxu0 0.0
    %1176 = vmatpush1.msra.mxu0 0.0
    %1177 = vmatprep.subr.mxu0 0.0
    %1178 = vmatpush1.msra.mxu0 0.0
    %1179 = vmatprep.mubr.f32.mxu0 0.0
    %1180 = vmatmul.mubr.f32.gmra.mrb[0].mxu0 %v1113
    %v1181 = vpop.f32.mrb[0].mxu0
    %v1182 = vadd.f32 %v661, %v1181
    %v1183 = vpop.f32.mrb[0].mxu0
    %1184 = vdwg.mxu0
    %v1185 = vadd.f32 %v1107, %v1182
    %v1186 = vxor.u32 %v1185, 2147483648
    %v1187 = vmul.f32 %v1186, 1.442695
    %v1188 = vpow.pop %v1187
    %v1189 = vadd.f32 %v1188, 1.0
    %v1190 = vrcp.pop %v1189
    %v1191 = vmul.f32 1.0, %v1190
    %1193 = vrot.lane.b32.xlu0 %v1182, 96
    %v1194 = vpop.permute.xlu0 %1193
    %v1196 = vadd.f32 %v1109, %v1194
    %v1197 = vxor.u32 %v1196, 2147483648
    %v1198 = vmul.f32 %v1197, 1.442695
    %v1199 = vpow.pop %v1198
    %v1200 = vadd.f32 %v1199, 1.0
    %v1201 = vrcp.pop %v1200
    %v1202 = vmul.f32 1.0, %v1201
    %1203 = vrot.lane.b32.xlu0 %v1182, 64
    %v1204 = vpop.permute.xlu0 %1203
    %v1206 = vmul.f32 %v1191, %v1204
    %v1207 = vadd.f32 %v1111, %v1206
    %v1208 = vtanh.pop %v1207
    %v1209 = vsub.f32 1.0, %v1202
    %v1210 = vmul.f32 %v1209, %v1208
    %v1211 = vmul.f32 %v1202, %v994
    %v1212 = vadd.f32 %v1210, %v1211
    %s1213 = scalar_lea.vmem [#allocation3], 10
    %v1214 = vld [vmem:[%s1213] sm:$0x3]
    %s1215 = scalar_lea.vmem [#allocation3], 26
    %v1216 = vld [vmem:[%s1215] sm:$0x3]
    %s1217 = scalar_lea.vmem [#allocation3], 42
    %v1218 = vld [vmem:[%s1217] sm:$0x3]
    %v1220 = vsel %vm129, %v1101, 0
    %1222 = vmatprep.subr.mxu0 0.0
    %1223 = vmatpush1.msra.mxu0 %v648
    %1224 = vmatprep.subr.mxu0 0.0
    %1225 = vmatpush1.msra.mxu0 %v649
    %1226 = vmatprep.subr.mxu0 0.0
    %1227 = vmatpush1.msra.mxu0 %v650
    %1228 = vmatprep.subr.mxu0 0.0
    %1229 = vmatpush1.msra.mxu0 %v651
    %1230 = vmatprep.subr.mxu0 0.0
    %1231 = vmatpush1.msra.mxu0 0.0
    %1232 = vmatprep.subr.mxu0 0.0
    %1233 = vmatpush1.msra.mxu0 0.0
    %1234 = vmatprep.subr.mxu0 0.0
    %1235 = vmatpush1.msra.mxu0 0.0
    %1236 = vmatprep.subr.mxu0 0.0
    %1237 = vmatpush1.msra.mxu0 0.0
    %1238 = vmatprep.subr.mxu0 0.0
    %1239 = vmatpush1.msra.mxu0 0.0
    %1240 = vmatprep.subr.mxu0 0.0
    %1241 = vmatpush1.msra.mxu0 0.0
    %1242 = vmatprep.subr.mxu0 0.0
    %1243 = vmatpush1.msra.mxu0 0.0
    %1244 = vmatprep.subr.mxu0 0.0
    %1245 = vmatpush1.msra.mxu0 0.0
    %1246 = vmatprep.subr.mxu0 0.0
    %1247 = vmatpush1.msra.mxu0 0.0
    %1248 = vmatprep.subr.mxu0 0.0
    %1249 = vmatpush1.msra.mxu0 0.0
    %1250 = vmatprep.subr.mxu0 0.0
    %1251 = vmatpush1.msra.mxu0 0.0
    %1252 = vmatprep.subr.mxu0 0.0
    %1253 = vmatpush1.msra.mxu0 0.0
    %1254 = vmatprep.subr.mxu0 0.0
    %1255 = vmatpush1.msra.mxu0 0.0
    %1256 = vmatprep.subr.mxu0 0.0
    %1257 = vmatpush1.msra.mxu0 0.0
    %1258 = vmatprep.subr.mxu0 0.0
    %1259 = vmatpush1.msra.mxu0 0.0
    %1260 = vmatprep.subr.mxu0 0.0
    %1261 = vmatpush1.msra.mxu0 0.0
    %1262 = vmatprep.subr.mxu0 0.0
    %1263 = vmatpush1.msra.mxu0 0.0
    %1264 = vmatprep.subr.mxu0 0.0
    %1265 = vmatpush1.msra.mxu0 0.0
    %1266 = vmatprep.subr.mxu0 0.0
    %1267 = vmatpush1.msra.mxu0 0.0
    %1268 = vmatprep.subr.mxu0 0.0
    %1269 = vmatpush1.msra.mxu0 0.0
    %1270 = vmatprep.subr.mxu0 0.0
    %1271 = vmatpush1.msra.mxu0 0.0
    %1272 = vmatprep.subr.mxu0 0.0
    %1273 = vmatpush1.msra.mxu0 0.0
    %1274 = vmatprep.subr.mxu0 0.0
    %1275 = vmatpush1.msra.mxu0 0.0
    %1276 = vmatprep.subr.mxu0 0.0
    %1277 = vmatpush1.msra.mxu0 0.0
    %1278 = vmatprep.subr.mxu0 0.0
    %1279 = vmatpush1.msra.mxu0 0.0
    %1280 = vmatprep.subr.mxu0 0.0
    %1281 = vmatpush1.msra.mxu0 0.0
    %1282 = vmatprep.subr.mxu0 0.0
    %1283 = vmatpush1.msra.mxu0 0.0
    %1284 = vmatprep.subr.mxu0 0.0
    %1285 = vmatpush1.msra.mxu0 0.0
    %1286 = vmatprep.mubr.f32.mxu0 0.0
    %1287 = vmatmul.mubr.f32.gmra.mrb[0].mxu0 %v1220
    %v1288 = vpop.f32.mrb[0].mxu0
    %v1289 = vadd.f32 %v668, %v1288
    %v1290 = vpop.f32.mrb[0].mxu0
    %1291 = vdwg.mxu0
    %v1292 = vadd.f32 %v1214, %v1289
    %v1293 = vxor.u32 %v1292, 2147483648
    %v1294 = vmul.f32 %v1293, 1.442695
    %v1295 = vpow.pop %v1294
    %v1296 = vadd.f32 %v1295, 1.0
    %v1297 = vrcp.pop %v1296
    %v1298 = vmul.f32 1.0, %v1297
    %1300 = vrot.lane.b32.xlu0 %v1289, 96
    %v1301 = vpop.permute.xlu0 %1300
    %v1303 = vadd.f32 %v1216, %v1301
    %v1304 = vxor.u32 %v1303, 2147483648
    %v1305 = vmul.f32 %v1304, 1.442695
    %v1306 = vpow.pop %v1305
    %v1307 = vadd.f32 %v1306, 1.0
    %v1308 = vrcp.pop %v1307
    %v1309 = vmul.f32 1.0, %v1308
    %1310 = vrot.lane.b32.xlu0 %v1289, 64
    %v1311 = vpop.permute.xlu0 %1310
    %v1313 = vmul.f32 %v1298, %v1311
    %v1314 = vadd.f32 %v1218, %v1313
    %v1315 = vtanh.pop %v1314
    %v1316 = vsub.f32 1.0, %v1309
    %v1317 = vmul.f32 %v1316, %v1315
    %v1318 = vmul.f32 %v1309, %v1101
    %v1319 = vadd.f32 %v1317, %v1318
    %s1320 = scalar_lea.vmem [#allocation5], 4
    %1321 = vst.msk [vmem:[%s1320] sm:$0x3] %vm383, %v1212
    %s1322 = scalar_lea.vmem [#allocation6], 10
    %1323 = vst.msk [vmem:[%s1322] sm:$0x3] %vm383, %v1319
    %s1324 = scalar_lea.vmem [#allocation2], 6
    %v1325 = vld [vmem:[%s1324] sm:$0x3]
    %s1326 = scalar_lea.vmem [#allocation2], 22
    %v1327 = vld [vmem:[%s1326] sm:$0x3]
    %s1328 = scalar_lea.vmem [#allocation2], 38
    %v1329 = vld [vmem:[%s1328] sm:$0x3]
    %v1331 = vsel %vm129, %v1212, 0
    %1333 = vmatprep.subr.mxu0 0.0
    %1334 = vmatpush1.msra.mxu0 %v644
    %1335 = vmatprep.subr.mxu0 0.0
    %1336 = vmatpush1.msra.mxu0 %v645
    %1337 = vmatprep.subr.mxu0 0.0
    %1338 = vmatpush1.msra.mxu0 %v646
    %1339 = vmatprep.subr.mxu0 0.0
    %1340 = vmatpush1.msra.mxu0 %v647
    %1341 = vmatprep.subr.mxu0 0.0
    %1342 = vmatpush1.msra.mxu0 0.0
    %1343 = vmatprep.subr.mxu0 0.0
    %1344 = vmatpush1.msra.mxu0 0.0
    %1345 = vmatprep.subr.mxu0 0.0
    %1346 = vmatpush1.msra.mxu0 0.0
    %1347 = vmatprep.subr.mxu0 0.0
    %1348 = vmatpush1.msra.mxu0 0.0
    %1349 = vmatprep.subr.mxu0 0.0
    %1350 = vmatpush1.msra.mxu0 0.0
    %1351 = vmatprep.subr.mxu0 0.0
    %1352 = vmatpush1.msra.mxu0 0.0
    %1353 = vmatprep.subr.mxu0 0.0
    %1354 = vmatpush1.msra.mxu0 0.0
    %1355 = vmatprep.subr.mxu0 0.0
    %1356 = vmatpush1.msra.mxu0 0.0
    %1357 = vmatprep.subr.mxu0 0.0
    %1358 = vmatpush1.msra.mxu0 0.0
    %1359 = vmatprep.subr.mxu0 0.0
    %1360 = vmatpush1.msra.mxu0 0.0
    %1361 = vmatprep.subr.mxu0 0.0
    %1362 = vmatpush1.msra.mxu0 0.0
    %1363 = vmatprep.subr.mxu0 0.0
    %1364 = vmatpush1.msra.mxu0 0.0
    %1365 = vmatprep.subr.mxu0 0.0
    %1366 = vmatpush1.msra.mxu0 0.0
    %1367 = vmatprep.subr.mxu0 0.0
    %1368 = vmatpush1.msra.mxu0 0.0
    %1369 = vmatprep.subr.mxu0 0.0
    %1370 = vmatpush1.msra.mxu0 0.0
    %1371 = vmatprep.subr.mxu0 0.0
    %1372 = vmatpush1.msra.mxu0 0.0
    %1373 = vmatprep.subr.mxu0 0.0
    %1374 = vmatpush1.msra.mxu0 0.0
    %1375 = vmatprep.subr.mxu0 0.0
    %1376 = vmatpush1.msra.mxu0 0.0
    %1377 = vmatprep.subr.mxu0 0.0
    %1378 = vmatpush1.msra.mxu0 0.0
    %1379 = vmatprep.subr.mxu0 0.0
    %1380 = vmatpush1.msra.mxu0 0.0
    %1381 = vmatprep.subr.mxu0 0.0
    %1382 = vmatpush1.msra.mxu0 0.0
    %1383 = vmatprep.subr.mxu0 0.0
    %1384 = vmatpush1.msra.mxu0 0.0
    %1385 = vmatprep.subr.mxu0 0.0
    %1386 = vmatpush1.msra.mxu0 0.0
    %1387 = vmatprep.subr.mxu0 0.0
    %1388 = vmatpush1.msra.mxu0 0.0
    %1389 = vmatprep.subr.mxu0 0.0
    %1390 = vmatpush1.msra.mxu0 0.0
    %1391 = vmatprep.subr.mxu0 0.0
    %1392 = vmatpush1.msra.mxu0 0.0
    %1393 = vmatprep.subr.mxu0 0.0
    %1394 = vmatpush1.msra.mxu0 0.0
    %1395 = vmatprep.subr.mxu0 0.0
    %1396 = vmatpush1.msra.mxu0 0.0
    %1397 = vmatprep.mubr.f32.mxu0 0.0
    %1398 = vmatmul.mubr.f32.gmra.mrb[0].mxu0 %v1331
    %v1399 = vpop.f32.mrb[0].mxu0
    %v1400 = vadd.f32 %v661, %v1399
    %v1401 = vpop.f32.mrb[0].mxu0
    %1402 = vdwg.mxu0
    %v1403 = vadd.f32 %v1325, %v1400
    %v1404 = vxor.u32 %v1403, 2147483648
    %v1405 = vmul.f32 %v1404, 1.442695
    %v1406 = vpow.pop %v1405
    %v1407 = vadd.f32 %v1406, 1.0
    %v1408 = vrcp.pop %v1407
    %v1409 = vmul.f32 1.0, %v1408
    %1411 = vrot.lane.b32.xlu0 %v1400, 96
    %v1412 = vpop.permute.xlu0 %1411
    %v1414 = vadd.f32 %v1327, %v1412
    %v1415 = vxor.u32 %v1414, 2147483648
    %v1416 = vmul.f32 %v1415, 1.442695
    %v1417 = vpow.pop %v1416
    %v1418 = vadd.f32 %v1417, 1.0
    %v1419 = vrcp.pop %v1418
    %v1420 = vmul.f32 1.0, %v1419
    %1421 = vrot.lane.b32.xlu0 %v1400, 64
    %v1422 = vpop.permute.xlu0 %1421
    %v1424 = vmul.f32 %v1409, %v1422
    %v1425 = vadd.f32 %v1329, %v1424
    %v1426 = vtanh.pop %v1425
    %v1427 = vsub.f32 1.0, %v1420
    %v1428 = vmul.f32 %v1427, %v1426
    %v1429 = vmul.f32 %v1420, %v1212
    %v1430 = vadd.f32 %v1428, %v1429
    %s1431 = scalar_lea.vmem [#allocation3], 8
    %v1432 = vld [vmem:[%s1431] sm:$0x3]
    %s1433 = scalar_lea.vmem [#allocation3], 24
    %v1434 = vld [vmem:[%s1433] sm:$0x3]
    %s1435 = scalar_lea.vmem [#allocation3], 40
    %v1436 = vld [vmem:[%s1435] sm:$0x3]
    %v1438 = vsel %vm129, %v1319, 0
    %1440 = vmatprep.subr.mxu0 0.0
    %1441 = vmatpush1.msra.mxu0 %v648
    %1442 = vmatprep.subr.mxu0 0.0
    %1443 = vmatpush1.msra.mxu0 %v649
    %1444 = vmatprep.subr.mxu0 0.0
    %1445 = vmatpush1.msra.mxu0 %v650
    %1446 = vmatprep.subr.mxu0 0.0
    %1447 = vmatpush1.msra.mxu0 %v651
    %1448 = vmatprep.subr.mxu0 0.0
    %1449 = vmatpush1.msra.mxu0 0.0
    %1450 = vmatprep.subr.mxu0 0.0
    %1451 = vmatpush1.msra.mxu0 0.0
    %1452 = vmatprep.subr.mxu0 0.0
    %1453 = vmatpush1.msra.mxu0 0.0
    %1454 = vmatprep.subr.mxu0 0.0
    %1455 = vmatpush1.msra.mxu0 0.0
    %1456 = vmatprep.subr.mxu0 0.0
    %1457 = vmatpush1.msra.mxu0 0.0
    %1458 = vmatprep.subr.mxu0 0.0
    %1459 = vmatpush1.msra.mxu0 0.0
    %1460 = vmatprep.subr.mxu0 0.0
    %1461 = vmatpush1.msra.mxu0 0.0
    %1462 = vmatprep.subr.mxu0 0.0
    %1463 = vmatpush1.msra.mxu0 0.0
    %1464 = vmatprep.subr.mxu0 0.0
    %1465 = vmatpush1.msra.mxu0 0.0
    %1466 = vmatprep.subr.mxu0 0.0
    %1467 = vmatpush1.msra.mxu0 0.0
    %1468 = vmatprep.subr.mxu0 0.0
    %1469 = vmatpush1.msra.mxu0 0.0
    %1470 = vmatprep.subr.mxu0 0.0
    %1471 = vmatpush1.msra.mxu0 0.0
    %1472 = vmatprep.subr.mxu0 0.0
    %1473 = vmatpush1.msra.mxu0 0.0
    %1474 = vmatprep.subr.mxu0 0.0
    %1475 = vmatpush1.msra.mxu0 0.0
    %1476 = vmatprep.subr.mxu0 0.0
    %1477 = vmatpush1.msra.mxu0 0.0
    %1478 = vmatprep.subr.mxu0 0.0
    %1479 = vmatpush1.msra.mxu0 0.0
    %1480 = vmatprep.subr.mxu0 0.0
    %1481 = vmatpush1.msra.mxu0 0.0
    %1482 = vmatprep.subr.mxu0 0.0
    %1483 = vmatpush1.msra.mxu0 0.0
    %1484 = vmatprep.subr.mxu0 0.0
    %1485 = vmatpush1.msra.mxu0 0.0
    %1486 = vmatprep.subr.mxu0 0.0
    %1487 = vmatpush1.msra.mxu0 0.0
    %1488 = vmatprep.subr.mxu0 0.0
    %1489 = vmatpush1.msra.mxu0 0.0
    %1490 = vmatprep.subr.mxu0 0.0
    %1491 = vmatpush1.msra.mxu0 0.0
    %1492 = vmatprep.subr.mxu0 0.0
    %1493 = vmatpush1.msra.mxu0 0.0
    %1494 = vmatprep.subr.mxu0 0.0
    %1495 = vmatpush1.msra.mxu0 0.0
    %1496 = vmatprep.subr.mxu0 0.0
    %1497 = vmatpush1.msra.mxu0 0.0
    %1498 = vmatprep.subr.mxu0 0.0
    %1499 = vmatpush1.msra.mxu0 0.0
    %1500 = vmatprep.subr.mxu0 0.0
    %1501 = vmatpush1.msra.mxu0 0.0
    %1502 = vmatprep.subr.mxu0 0.0
    %1503 = vmatpush1.msra.mxu0 0.0
    %1504 = vmatprep.mubr.f32.mxu0 0.0
    %1505 = vmatmul.mubr.f32.gmra.mrb[0].mxu0 %v1438
    %v1506 = vpop.f32.mrb[0].mxu0
    %v1507 = vadd.f32 %v668, %v1506
    %v1508 = vpop.f32.mrb[0].mxu0
    %1509 = vdwg.mxu0
    %v1510 = vadd.f32 %v1432, %v1507
    %v1511 = vxor.u32 %v1510, 2147483648
    %v1512 = vmul.f32 %v1511, 1.442695
    %v1513 = vpow.pop %v1512
    %v1514 = vadd.f32 %v1513, 1.0
    %v1515 = vrcp.pop %v1514
    %v1516 = vmul.f32 1.0, %v1515
    %1518 = vrot.lane.b32.xlu0 %v1507, 96
    %v1519 = vpop.permute.xlu0 %1518
    %v1521 = vadd.f32 %v1434, %v1519
    %v1522 = vxor.u32 %v1521, 2147483648
    %v1523 = vmul.f32 %v1522, 1.442695
    %v1524 = vpow.pop %v1523
    %v1525 = vadd.f32 %v1524, 1.0
    %v1526 = vrcp.pop %v1525
    %v1527 = vmul.f32 1.0, %v1526
    %1528 = vrot.lane.b32.xlu0 %v1507, 64
    %v1529 = vpop.permute.xlu0 %1528
    %v1531 = vmul.f32 %v1516, %v1529
    %v1532 = vadd.f32 %v1436, %v1531
    %v1533 = vtanh.pop %v1532
    %v1534 = vsub.f32 1.0, %v1527
    %v1535 = vmul.f32 %v1534, %v1533
    %v1536 = vmul.f32 %v1527, %v1319
    %v1537 = vadd.f32 %v1535, %v1536
    %s1538 = scalar_lea.vmem [#allocation5], 6
    %1539 = vst.msk [vmem:[%s1538] sm:$0x3] %vm383, %v1430
    %s1540 = scalar_lea.vmem [#allocation6], 8
    %1541 = vst.msk [vmem:[%s1540] sm:$0x3] %vm383, %v1537
    %s1542 = scalar_lea.vmem [#allocation2], 8
    %v1543 = vld [vmem:[%s1542] sm:$0x3]
    %s1544 = scalar_lea.vmem [#allocation2], 24
    %v1545 = vld [vmem:[%s1544] sm:$0x3]
    %s1546 = scalar_lea.vmem [#allocation2], 40
    %v1547 = vld [vmem:[%s1546] sm:$0x3]
    %v1549 = vsel %vm129, %v1430, 0
    %1551 = vmatprep.subr.mxu0 0.0
    %1552 = vmatpush1.msra.mxu0 %v644
    %1553 = vmatprep.subr.mxu0 0.0
    %1554 = vmatpush1.msra.mxu0 %v645
    %1555 = vmatprep.subr.mxu0 0.0
    %1556 = vmatpush1.msra.mxu0 %v646
    %1557 = vmatprep.subr.mxu0 0.0
    %1558 = vmatpush1.msra.mxu0 %v647
    %1559 = vmatprep.subr.mxu0 0.0
    %1560 = vmatpush1.msra.mxu0 0.0
    %1561 = vmatprep.subr.mxu0 0.0
    %1562 = vmatpush1.msra.mxu0 0.0
    %1563 = vmatprep.subr.mxu0 0.0
    %1564 = vmatpush1.msra.mxu0 0.0
    %1565 = vmatprep.subr.mxu0 0.0
    %1566 = vmatpush1.msra.mxu0 0.0
    %1567 = vmatprep.subr.mxu0 0.0
    %1568 = vmatpush1.msra.mxu0 0.0
    %1569 = vmatprep.subr.mxu0 0.0
    %1570 = vmatpush1.msra.mxu0 0.0
    %1571 = vmatprep.subr.mxu0 0.0
    %1572 = vmatpush1.msra.mxu0 0.0
    %1573 = vmatprep.subr.mxu0 0.0
    %1574 = vmatpush1.msra.mxu0 0.0
    %1575 = vmatprep.subr.mxu0 0.0
    %1576 = vmatpush1.msra.mxu0 0.0
    %1577 = vmatprep.subr.mxu0 0.0
    %1578 = vmatpush1.msra.mxu0 0.0
    %1579 = vmatprep.subr.mxu0 0.0
    %1580 = vmatpush1.msra.mxu0 0.0
    %1581 = vmatprep.subr.mxu0 0.0
    %1582 = vmatpush1.msra.mxu0 0.0
    %1583 = vmatprep.subr.mxu0 0.0
    %1584 = vmatpush1.msra.mxu0 0.0
    %1585 = vmatprep.subr.mxu0 0.0
    %1586 = vmatpush1.msra.mxu0 0.0
    %1587 = vmatprep.subr.mxu0 0.0
    %1588 = vmatpush1.msra.mxu0 0.0
    %1589 = vmatprep.subr.mxu0 0.0
    %1590 = vmatpush1.msra.mxu0 0.0
    %1591 = vmatprep.subr.mxu0 0.0
    %1592 = vmatpush1.msra.mxu0 0.0
    %1593 = vmatprep.subr.mxu0 0.0
    %1594 = vmatpush1.msra.mxu0 0.0
    %1595 = vmatprep.subr.mxu0 0.0
    %1596 = vmatpush1.msra.mxu0 0.0
    %1597 = vmatprep.subr.mxu0 0.0
    %1598 = vmatpush1.msra.mxu0 0.0
    %1599 = vmatprep.subr.mxu0 0.0
    %1600 = vmatpush1.msra.mxu0 0.0
    %1601 = vmatprep.subr.mxu0 0.0
    %1602 = vmatpush1.msra.mxu0 0.0
    %1603 = vmatprep.subr.mxu0 0.0
    %1604 = vmatpush1.msra.mxu0 0.0
    %1605 = vmatprep.subr.mxu0 0.0
    %1606 = vmatpush1.msra.mxu0 0.0
    %1607 = vmatprep.subr.mxu0 0.0
    %1608 = vmatpush1.msra.mxu0 0.0
    %1609 = vmatprep.subr.mxu0 0.0
    %1610 = vmatpush1.msra.mxu0 0.0
    %1611 = vmatprep.subr.mxu0 0.0
    %1612 = vmatpush1.msra.mxu0 0.0
    %1613 = vmatprep.subr.mxu0 0.0
    %1614 = vmatpush1.msra.mxu0 0.0
    %1615 = vmatprep.mubr.f32.mxu0 0.0
    %1616 = vmatmul.mubr.f32.gmra.mrb[0].mxu0 %v1549
    %v1617 = vpop.f32.mrb[0].mxu0
    %v1618 = vadd.f32 %v661, %v1617
    %v1619 = vpop.f32.mrb[0].mxu0
    %1620 = vdwg.mxu0
    %v1621 = vadd.f32 %v1543, %v1618
    %v1622 = vxor.u32 %v1621, 2147483648
    %v1623 = vmul.f32 %v1622, 1.442695
    %v1624 = vpow.pop %v1623
    %v1625 = vadd.f32 %v1624, 1.0
    %v1626 = vrcp.pop %v1625
    %v1627 = vmul.f32 1.0, %v1626
    %1629 = vrot.lane.b32.xlu0 %v1618, 96
    %v1630 = vpop.permute.xlu0 %1629
    %v1632 = vadd.f32 %v1545, %v1630
    %v1633 = vxor.u32 %v1632, 2147483648
    %v1634 = vmul.f32 %v1633, 1.442695
    %v1635 = vpow.pop %v1634
    %v1636 = vadd.f32 %v1635, 1.0
    %v1637 = vrcp.pop %v1636
    %v1638 = vmul.f32 1.0, %v1637
    %1639 = vrot.lane.b32.xlu0 %v1618, 64
    %v1640 = vpop.permute.xlu0 %1639
    %v1642 = vmul.f32 %v1627, %v1640
    %v1643 = vadd.f32 %v1547, %v1642
    %v1644 = vtanh.pop %v1643
    %v1645 = vsub.f32 1.0, %v1638
    %v1646 = vmul.f32 %v1645, %v1644
    %v1647 = vmul.f32 %v1638, %v1430
    %v1648 = vadd.f32 %v1646, %v1647
    %s1649 = scalar_lea.vmem [#allocation3], 6
    %v1650 = vld [vmem:[%s1649] sm:$0x3]
    %s1651 = scalar_lea.vmem [#allocation3], 22
    %v1652 = vld [vmem:[%s1651] sm:$0x3]
    %s1653 = scalar_lea.vmem [#allocation3], 38
    %v1654 = vld [vmem:[%s1653] sm:$0x3]
    %v1656 = vsel %vm129, %v1537, 0
    %1658 = vmatprep.subr.mxu0 0.0
    %1659 = vmatpush1.msra.mxu0 %v648
    %1660 = vmatprep.subr.mxu0 0.0
    %1661 = vmatpush1.msra.mxu0 %v649
    %1662 = vmatprep.subr.mxu0 0.0
    %1663 = vmatpush1.msra.mxu0 %v650
    %1664 = vmatprep.subr.mxu0 0.0
    %1665 = vmatpush1.msra.mxu0 %v651
    %1666 = vmatprep.subr.mxu0 0.0
    %1667 = vmatpush1.msra.mxu0 0.0
    %1668 = vmatprep.subr.mxu0 0.0
    %1669 = vmatpush1.msra.mxu0 0.0
    %1670 = vmatprep.subr.mxu0 0.0
    %1671 = vmatpush1.msra.mxu0 0.0
    %1672 = vmatprep.subr.mxu0 0.0
    %1673 = vmatpush1.msra.mxu0 0.0
    %1674 = vmatprep.subr.mxu0 0.0
    %1675 = vmatpush1.msra.mxu0 0.0
    %1676 = vmatprep.subr.mxu0 0.0
    %1677 = vmatpush1.msra.mxu0 0.0
    %1678 = vmatprep.subr.mxu0 0.0
    %1679 = vmatpush1.msra.mxu0 0.0
    %1680 = vmatprep.subr.mxu0 0.0
    %1681 = vmatpush1.msra.mxu0 0.0
    %1682 = vmatprep.subr.mxu0 0.0
    %1683 = vmatpush1.msra.mxu0 0.0
    %1684 = vmatprep.subr.mxu0 0.0
    %1685 = vmatpush1.msra.mxu0 0.0
    %1686 = vmatprep.subr.mxu0 0.0
    %1687 = vmatpush1.msra.mxu0 0.0
    %1688 = vmatprep.subr.mxu0 0.0
    %1689 = vmatpush1.msra.mxu0 0.0
    %1690 = vmatprep.subr.mxu0 0.0
    %1691 = vmatpush1.msra.mxu0 0.0
    %1692 = vmatprep.subr.mxu0 0.0
    %1693 = vmatpush1.msra.mxu0 0.0
    %1694 = vmatprep.subr.mxu0 0.0
    %1695 = vmatpush1.msra.mxu0 0.0
    %1696 = vmatprep.subr.mxu0 0.0
    %1697 = vmatpush1.msra.mxu0 0.0
    %1698 = vmatprep.subr.mxu0 0.0
    %1699 = vmatpush1.msra.mxu0 0.0
    %1700 = vmatprep.subr.mxu0 0.0
    %1701 = vmatpush1.msra.mxu0 0.0
    %1702 = vmatprep.subr.mxu0 0.0
    %1703 = vmatpush1.msra.mxu0 0.0
    %1704 = vmatprep.subr.mxu0 0.0
    %1705 = vmatpush1.msra.mxu0 0.0
    %1706 = vmatprep.subr.mxu0 0.0
    %1707 = vmatpush1.msra.mxu0 0.0
    %1708 = vmatprep.subr.mxu0 0.0
    %1709 = vmatpush1.msra.mxu0 0.0
    %1710 = vmatprep.subr.mxu0 0.0
    %1711 = vmatpush1.msra.mxu0 0.0
    %1712 = vmatprep.subr.mxu0 0.0
    %1713 = vmatpush1.msra.mxu0 0.0
    %1714 = vmatprep.subr.mxu0 0.0
    %1715 = vmatpush1.msra.mxu0 0.0
    %1716 = vmatprep.subr.mxu0 0.0
    %1717 = vmatpush1.msra.mxu0 0.0
    %1718 = vmatprep.subr.mxu0 0.0
    %1719 = vmatpush1.msra.mxu0 0.0
    %1720 = vmatprep.subr.mxu0 0.0
    %1721 = vmatpush1.msra.mxu0 0.0
    %1722 = vmatprep.mubr.f32.mxu0 0.0
    %1723 = vmatmul.mubr.f32.gmra.mrb[0].mxu0 %v1656
    %v1724 = vpop.f32.mrb[0].mxu0
    %v1725 = vadd.f32 %v668, %v1724
    %v1726 = vpop.f32.mrb[0].mxu0
    %1727 = vdwg.mxu0
    %v1728 = vadd.f32 %v1650, %v1725
    %v1729 = vxor.u32 %v1728, 2147483648
    %v1730 = vmul.f32 %v1729, 1.442695
    %v1731 = vpow.pop %v1730
    %v1732 = vadd.f32 %v1731, 1.0
    %v1733 = vrcp.pop %v1732
    %v1734 = vmul.f32 1.0, %v1733
    %1736 = vrot.lane.b32.xlu0 %v1725, 96
    %v1737 = vpop.permute.xlu0 %1736
    %v1739 = vadd.f32 %v1652, %v1737
    %v1740 = vxor.u32 %v1739, 2147483648
    %v1741 = vmul.f32 %v1740, 1.442695
    %v1742 = vpow.pop %v1741
    %v1743 = vadd.f32 %v1742, 1.0
    %v1744 = vrcp.pop %v1743
    %v1745 = vmul.f32 1.0, %v1744
    %1746 = vrot.lane.b32.xlu0 %v1725, 64
    %v1747 = vpop.permute.xlu0 %1746
    %v1749 = vmul.f32 %v1734, %v1747
    %v1750 = vadd.f32 %v1654, %v1749
    %v1751 = vtanh.pop %v1750
    %v1752 = vsub.f32 1.0, %v1745
    %v1753 = vmul.f32 %v1752, %v1751
    %v1754 = vmul.f32 %v1745, %v1537
    %v1755 = vadd.f32 %v1753, %v1754
    %s1756 = scalar_lea.vmem [#allocation5], 8
    %1757 = vst.msk [vmem:[%s1756] sm:$0x3] %vm383, %v1648
    %s1758 = scalar_lea.vmem [#allocation6], 6
    %1759 = vst.msk [vmem:[%s1758] sm:$0x3] %vm383, %v1755
    %s1760 = scalar_lea.vmem [#allocation2], 10
    %v1761 = vld [vmem:[%s1760] sm:$0x3]
    %s1762 = scalar_lea.vmem [#allocation2], 26
    %v1763 = vld [vmem:[%s1762] sm:$0x3]
    %s1764 = scalar_lea.vmem [#allocation2], 42
    %v1765 = vld [vmem:[%s1764] sm:$0x3]
    %v1767 = vsel %vm129, %v1648, 0
    %1769 = vmatprep.subr.mxu0 0.0
    %1770 = vmatpush1.msra.mxu0 %v644
    %1771 = vmatprep.subr.mxu0 0.0
    %1772 = vmatpush1.msra.mxu0 %v645
    %1773 = vmatprep.subr.mxu0 0.0
    %1774 = vmatpush1.msra.mxu0 %v646
    %1775 = vmatprep.subr.mxu0 0.0
    %1776 = vmatpush1.msra.mxu0 %v647
    %1777 = vmatprep.subr.mxu0 0.0
    %1778 = vmatpush1.msra.mxu0 0.0
    %1779 = vmatprep.subr.mxu0 0.0
    %1780 = vmatpush1.msra.mxu0 0.0
    %1781 = vmatprep.subr.mxu0 0.0
    %1782 = vmatpush1.msra.mxu0 0.0
    %1783 = vmatprep.subr.mxu0 0.0
    %1784 = vmatpush1.msra.mxu0 0.0
    %1785 = vmatprep.subr.mxu0 0.0
    %1786 = vmatpush1.msra.mxu0 0.0
    %1787 = vmatprep.subr.mxu0 0.0
    %1788 = vmatpush1.msra.mxu0 0.0
    %1789 = vmatprep.subr.mxu0 0.0
    %1790 = vmatpush1.msra.mxu0 0.0
    %1791 = vmatprep.subr.mxu0 0.0
    %1792 = vmatpush1.msra.mxu0 0.0
    %1793 = vmatprep.subr.mxu0 0.0
    %1794 = vmatpush1.msra.mxu0 0.0
    %1795 = vmatprep.subr.mxu0 0.0
    %1796 = vmatpush1.msra.mxu0 0.0
    %1797 = vmatprep.subr.mxu0 0.0
    %1798 = vmatpush1.msra.mxu0 0.0
    %1799 = vmatprep.subr.mxu0 0.0
    %1800 = vmatpush1.msra.mxu0 0.0
    %1801 = vmatprep.subr.mxu0 0.0
    %1802 = vmatpush1.msra.mxu0 0.0
    %1803 = vmatprep.subr.mxu0 0.0
    %1804 = vmatpush1.msra.mxu0 0.0
    %1805 = vmatprep.subr.mxu0 0.0
    %1806 = vmatpush1.msra.mxu0 0.0
    %1807 = vmatprep.subr.mxu0 0.0
    %1808 = vmatpush1.msra.mxu0 0.0
    %1809 = vmatprep.subr.mxu0 0.0
    %1810 = vmatpush1.msra.mxu0 0.0
    %1811 = vmatprep.subr.mxu0 0.0
    %1812 = vmatpush1.msra.mxu0 0.0
    %1813 = vmatprep.subr.mxu0 0.0
    %1814 = vmatpush1.msra.mxu0 0.0
    %1815 = vmatprep.subr.mxu0 0.0
    %1816 = vmatpush1.msra.mxu0 0.0
    %1817 = vmatprep.subr.mxu0 0.0
    %1818 = vmatpush1.msra.mxu0 0.0
    %1819 = vmatprep.subr.mxu0 0.0
    %1820 = vmatpush1.msra.mxu0 0.0
    %1821 = vmatprep.subr.mxu0 0.0
    %1822 = vmatpush1.msra.mxu0 0.0
    %1823 = vmatprep.subr.mxu0 0.0
    %1824 = vmatpush1.msra.mxu0 0.0
    %1825 = vmatprep.subr.mxu0 0.0
    %1826 = vmatpush1.msra.mxu0 0.0
    %1827 = vmatprep.subr.mxu0 0.0
    %1828 = vmatpush1.msra.mxu0 0.0
    %1829 = vmatprep.subr.mxu0 0.0
    %1830 = vmatpush1.msra.mxu0 0.0
    %1831 = vmatprep.subr.mxu0 0.0
    %1832 = vmatpush1.msra.mxu0 0.0
    %1833 = vmatprep.mubr.f32.mxu0 0.0
    %1834 = vmatmul.mubr.f32.gmra.mrb[0].mxu0 %v1767
    %v1835 = vpop.f32.mrb[0].mxu0
    %v1836 = vadd.f32 %v661, %v1835
    %v1837 = vpop.f32.mrb[0].mxu0
    %1838 = vdwg.mxu0
    %v1839 = vadd.f32 %v1761, %v1836
    %v1840 = vxor.u32 %v1839, 2147483648
    %v1841 = vmul.f32 %v1840, 1.442695
    %v1842 = vpow.pop %v1841
    %v1843 = vadd.f32 %v1842, 1.0
    %v1844 = vrcp.pop %v1843
    %v1845 = vmul.f32 1.0, %v1844
    %1847 = vrot.lane.b32.xlu0 %v1836, 96
    %v1848 = vpop.permute.xlu0 %1847
    %v1850 = vadd.f32 %v1763, %v1848
    %v1851 = vxor.u32 %v1850, 2147483648
    %v1852 = vmul.f32 %v1851, 1.442695
    %v1853 = vpow.pop %v1852
    %v1854 = vadd.f32 %v1853, 1.0
    %v1855 = vrcp.pop %v1854
    %v1856 = vmul.f32 1.0, %v1855
    %1857 = vrot.lane.b32.xlu0 %v1836, 64
    %v1858 = vpop.permute.xlu0 %1857
    %v1860 = vmul.f32 %v1845, %v1858
    %v1861 = vadd.f32 %v1765, %v1860
    %v1862 = vtanh.pop %v1861
    %v1863 = vsub.f32 1.0, %v1856
    %v1864 = vmul.f32 %v1863, %v1862
    %v1865 = vmul.f32 %v1856, %v1648
    %v1866 = vadd.f32 %v1864, %v1865
    %s1867 = scalar_lea.vmem [#allocation3], 4
    %v1868 = vld [vmem:[%s1867] sm:$0x3]
    %s1869 = scalar_lea.vmem [#allocation3], 20
    %v1870 = vld [vmem:[%s1869] sm:$0x3]
    %s1871 = scalar_lea.vmem [#allocation3], 36
    %v1872 = vld [vmem:[%s1871] sm:$0x3]
    %v1874 = vsel %vm129, %v1755, 0
    %1876 = vmatprep.subr.mxu0 0.0
    %1877 = vmatpush1.msra.mxu0 %v648
    %1878 = vmatprep.subr.mxu0 0.0
    %1879 = vmatpush1.msra.mxu0 %v649
    %1880 = vmatprep.subr.mxu0 0.0
    %1881 = vmatpush1.msra.mxu0 %v650
    %1882 = vmatprep.subr.mxu0 0.0
    %1883 = vmatpush1.msra.mxu0 %v651
    %1884 = vmatprep.subr.mxu0 0.0
    %1885 = vmatpush1.msra.mxu0 0.0
    %1886 = vmatprep.subr.mxu0 0.0
    %1887 = vmatpush1.msra.mxu0 0.0
    %1888 = vmatprep.subr.mxu0 0.0
    %1889 = vmatpush1.msra.mxu0 0.0
    %1890 = vmatprep.subr.mxu0 0.0
    %1891 = vmatpush1.msra.mxu0 0.0
    %1892 = vmatprep.subr.mxu0 0.0
    %1893 = vmatpush1.msra.mxu0 0.0
    %1894 = vmatprep.subr.mxu0 0.0
    %1895 = vmatpush1.msra.mxu0 0.0
    %1896 = vmatprep.subr.mxu0 0.0
    %1897 = vmatpush1.msra.mxu0 0.0
    %1898 = vmatprep.subr.mxu0 0.0
    %1899 = vmatpush1.msra.mxu0 0.0
    %1900 = vmatprep.subr.mxu0 0.0
    %1901 = vmatpush1.msra.mxu0 0.0
    %1902 = vmatprep.subr.mxu0 0.0
    %1903 = vmatpush1.msra.mxu0 0.0
    %1904 = vmatprep.subr.mxu0 0.0
    %1905 = vmatpush1.msra.mxu0 0.0
    %1906 = vmatprep.subr.mxu0 0.0
    %1907 = vmatpush1.msra.mxu0 0.0
    %1908 = vmatprep.subr.mxu0 0.0
    %1909 = vmatpush1.msra.mxu0 0.0
    %1910 = vmatprep.subr.mxu0 0.0
    %1911 = vmatpush1.msra.mxu0 0.0
    %1912 = vmatprep.subr.mxu0 0.0
    %1913 = vmatpush1.msra.mxu0 0.0
    %1914 = vmatprep.subr.mxu0 0.0
    %1915 = vmatpush1.msra.mxu0 0.0
    %1916 = vmatprep.subr.mxu0 0.0
    %1917 = vmatpush1.msra.mxu0 0.0
    %1918 = vmatprep.subr.mxu0 0.0
    %1919 = vmatpush1.msra.mxu0 0.0
    %1920 = vmatprep.subr.mxu0 0.0
    %1921 = vmatpush1.msra.mxu0 0.0
    %1922 = vmatprep.subr.mxu0 0.0
    %1923 = vmatpush1.msra.mxu0 0.0
    %1924 = vmatprep.subr.mxu0 0.0
    %1925 = vmatpush1.msra.mxu0 0.0
    %1926 = vmatprep.subr.mxu0 0.0
    %1927 = vmatpush1.msra.mxu0 0.0
    %1928 = vmatprep.subr.mxu0 0.0
    %1929 = vmatpush1.msra.mxu0 0.0
    %1930 = vmatprep.subr.mxu0 0.0
    %1931 = vmatpush1.msra.mxu0 0.0
    %1932 = vmatprep.subr.mxu0 0.0
    %1933 = vmatpush1.msra.mxu0 0.0
    %1934 = vmatprep.subr.mxu0 0.0
    %1935 = vmatpush1.msra.mxu0 0.0
    %1936 = vmatprep.subr.mxu0 0.0
    %1937 = vmatpush1.msra.mxu0 0.0
    %1938 = vmatprep.subr.mxu0 0.0
    %1939 = vmatpush1.msra.mxu0 0.0
    %1940 = vmatprep.mubr.f32.mxu0 0.0
    %1941 = vmatmul.mubr.f32.gmra.mrb[0].mxu0 %v1874
    %v1942 = vpop.f32.mrb[0].mxu0
    %v1943 = vadd.f32 %v668, %v1942
    %v1944 = vpop.f32.mrb[0].mxu0
    %1945 = vdwg.mxu0
    %v1946 = vadd.f32 %v1868, %v1943
    %v1947 = vxor.u32 %v1946, 2147483648
    %v1948 = vmul.f32 %v1947, 1.442695
    %v1949 = vpow.pop %v1948
    %v1950 = vadd.f32 %v1949, 1.0
    %v1951 = vrcp.pop %v1950
    %v1952 = vmul.f32 1.0, %v1951
    %1954 = vrot.lane.b32.xlu0 %v1943, 96
    %v1955 = vpop.permute.xlu0 %1954
    %v1957 = vadd.f32 %v1870, %v1955
    %v1958 = vxor.u32 %v1957, 2147483648
    %v1959 = vmul.f32 %v1958, 1.442695
    %v1960 = vpow.pop %v1959
    %v1961 = vadd.f32 %v1960, 1.0
    %v1962 = vrcp.pop %v1961
    %v1963 = vmul.f32 1.0, %v1962
    %1964 = vrot.lane.b32.xlu0 %v1943, 64
    %v1965 = vpop.permute.xlu0 %1964
    %v1967 = vmul.f32 %v1952, %v1965
    %v1968 = vadd.f32 %v1872, %v1967
    %v1969 = vtanh.pop %v1968
    %v1970 = vsub.f32 1.0, %v1963
    %v1971 = vmul.f32 %v1970, %v1969
    %v1972 = vmul.f32 %v1963, %v1755
    %v1973 = vadd.f32 %v1971, %v1972
    %s1974 = scalar_lea.vmem [#allocation5], 10
    %1975 = vst.msk [vmem:[%s1974] sm:$0x3] %vm383, %v1866
    %s1976 = scalar_lea.vmem [#allocation6], 4
    %1977 = vst.msk [vmem:[%s1976] sm:$0x3] %vm383, %v1973
    %s1978 = scalar_lea.vmem [#allocation2], 12
    %v1979 = vld [vmem:[%s1978] sm:$0x3]
    %s1980 = scalar_lea.vmem [#allocation2], 28
    %v1981 = vld [vmem:[%s1980] sm:$0x3]
    %s1982 = scalar_lea.vmem [#allocation2], 44
    %v1983 = vld [vmem:[%s1982] sm:$0x3]
    %v1985 = vsel %vm129, %v1866, 0
    %1987 = vmatprep.subr.mxu0 0.0
    %1988 = vmatpush1.msra.mxu0 %v644
    %1989 = vmatprep.subr.mxu0 0.0
    %1990 = vmatpush1.msra.mxu0 %v645
    %1991 = vmatprep.subr.mxu0 0.0
    %1992 = vmatpush1.msra.mxu0 %v646
    %1993 = vmatprep.subr.mxu0 0.0
    %1994 = vmatpush1.msra.mxu0 %v647
    %1995 = vmatprep.subr.mxu0 0.0
    %1996 = vmatpush1.msra.mxu0 0.0
    %1997 = vmatprep.subr.mxu0 0.0
    %1998 = vmatpush1.msra.mxu0 0.0
    %1999 = vmatprep.subr.mxu0 0.0
    %2000 = vmatpush1.msra.mxu0 0.0
    %2001 = vmatprep.subr.mxu0 0.0
    %2002 = vmatpush1.msra.mxu0 0.0
    %2003 = vmatprep.subr.mxu0 0.0
    %2004 = vmatpush1.msra.mxu0 0.0
    %2005 = vmatprep.subr.mxu0 0.0
    %2006 = vmatpush1.msra.mxu0 0.0
    %2007 = vmatprep.subr.mxu0 0.0
    %2008 = vmatpush1.msra.mxu0 0.0
    %2009 = vmatprep.subr.mxu0 0.0
    %2010 = vmatpush1.msra.mxu0 0.0
    %2011 = vmatprep.subr.mxu0 0.0
    %2012 = vmatpush1.msra.mxu0 0.0
    %2013 = vmatprep.subr.mxu0 0.0
    %2014 = vmatpush1.msra.mxu0 0.0
    %2015 = vmatprep.subr.mxu0 0.0
    %2016 = vmatpush1.msra.mxu0 0.0
    %2017 = vmatprep.subr.mxu0 0.0
    %2018 = vmatpush1.msra.mxu0 0.0
    %2019 = vmatprep.subr.mxu0 0.0
    %2020 = vmatpush1.msra.mxu0 0.0
    %2021 = vmatprep.subr.mxu0 0.0
    %2022 = vmatpush1.msra.mxu0 0.0
    %2023 = vmatprep.subr.mxu0 0.0
    %2024 = vmatpush1.msra.mxu0 0.0
    %2025 = vmatprep.subr.mxu0 0.0
    %2026 = vmatpush1.msra.mxu0 0.0
    %2027 = vmatprep.subr.mxu0 0.0
    %2028 = vmatpush1.msra.mxu0 0.0
    %2029 = vmatprep.subr.mxu0 0.0
    %2030 = vmatpush1.msra.mxu0 0.0
    %2031 = vmatprep.subr.mxu0 0.0
    %2032 = vmatpush1.msra.mxu0 0.0
    %2033 = vmatprep.subr.mxu0 0.0
    %2034 = vmatpush1.msra.mxu0 0.0
    %2035 = vmatprep.subr.mxu0 0.0
    %2036 = vmatpush1.msra.mxu0 0.0
    %2037 = vmatprep.subr.mxu0 0.0
    %2038 = vmatpush1.msra.mxu0 0.0
    %2039 = vmatprep.subr.mxu0 0.0
    %2040 = vmatpush1.msra.mxu0 0.0
    %2041 = vmatprep.subr.mxu0 0.0
    %2042 = vmatpush1.msra.mxu0 0.0
    %2043 = vmatprep.subr.mxu0 0.0
    %2044 = vmatpush1.msra.mxu0 0.0
    %2045 = vmatprep.subr.mxu0 0.0
    %2046 = vmatpush1.msra.mxu0 0.0
    %2047 = vmatprep.subr.mxu0 0.0
    %2048 = vmatpush1.msra.mxu0 0.0
    %2049 = vmatprep.subr.mxu0 0.0
    %2050 = vmatpush1.msra.mxu0 0.0
    %2051 = vmatprep.mubr.f32.mxu0 0.0
    %2052 = vmatmul.mubr.f32.gmra.mrb[0].mxu0 %v1985
    %v2053 = vpop.f32.mrb[0].mxu0
    %v2054 = vadd.f32 %v661, %v2053
    %v2055 = vpop.f32.mrb[0].mxu0
    %2056 = vdwg.mxu0
    %v2057 = vadd.f32 %v1979, %v2054
    %v2058 = vxor.u32 %v2057, 2147483648
    %v2059 = vmul.f32 %v2058, 1.442695
    %v2060 = vpow.pop %v2059
    %v2061 = vadd.f32 %v2060, 1.0
    %v2062 = vrcp.pop %v2061
    %v2063 = vmul.f32 1.0, %v2062
    %2065 = vrot.lane.b32.xlu0 %v2054, 96
    %v2066 = vpop.permute.xlu0 %2065
    %v2068 = vadd.f32 %v1981, %v2066
    %v2069 = vxor.u32 %v2068, 2147483648
    %v2070 = vmul.f32 %v2069, 1.442695
    %v2071 = vpow.pop %v2070
    %v2072 = vadd.f32 %v2071, 1.0
    %v2073 = vrcp.pop %v2072
    %v2074 = vmul.f32 1.0, %v2073
    %2075 = vrot.lane.b32.xlu0 %v2054, 64
    %v2076 = vpop.permute.xlu0 %2075
    %v2078 = vmul.f32 %v2063, %v2076
    %v2079 = vadd.f32 %v1983, %v2078
    %v2080 = vtanh.pop %v2079
    %v2081 = vsub.f32 1.0, %v2074
    %v2082 = vmul.f32 %v2081, %v2080
    %v2083 = vmul.f32 %v2074, %v1866
    %v2084 = vadd.f32 %v2082, %v2083
    %s2085 = scalar_lea.vmem [#allocation3], 2
    %v2086 = vld [vmem:[%s2085] sm:$0x3]
    %s2087 = scalar_lea.vmem [#allocation3], 18
    %v2088 = vld [vmem:[%s2087] sm:$0x3]
    %s2089 = scalar_lea.vmem [#allocation3], 34
    %v2090 = vld [vmem:[%s2089] sm:$0x3]
    %v2092 = vsel %vm129, %v1973, 0
    %2094 = vmatprep.subr.mxu0 0.0
    %2095 = vmatpush1.msra.mxu0 %v648
    %2096 = vmatprep.subr.mxu0 0.0
    %2097 = vmatpush1.msra.mxu0 %v649
    %2098 = vmatprep.subr.mxu0 0.0
    %2099 = vmatpush1.msra.mxu0 %v650
    %2100 = vmatprep.subr.mxu0 0.0
    %2101 = vmatpush1.msra.mxu0 %v651
    %2102 = vmatprep.subr.mxu0 0.0
    %2103 = vmatpush1.msra.mxu0 0.0
    %2104 = vmatprep.subr.mxu0 0.0
    %2105 = vmatpush1.msra.mxu0 0.0
    %2106 = vmatprep.subr.mxu0 0.0
    %2107 = vmatpush1.msra.mxu0 0.0
    %2108 = vmatprep.subr.mxu0 0.0
    %2109 = vmatpush1.msra.mxu0 0.0
    %2110 = vmatprep.subr.mxu0 0.0
    %2111 = vmatpush1.msra.mxu0 0.0
    %2112 = vmatprep.subr.mxu0 0.0
    %2113 = vmatpush1.msra.mxu0 0.0
    %2114 = vmatprep.subr.mxu0 0.0
    %2115 = vmatpush1.msra.mxu0 0.0
    %2116 = vmatprep.subr.mxu0 0.0
    %2117 = vmatpush1.msra.mxu0 0.0
    %2118 = vmatprep.subr.mxu0 0.0
    %2119 = vmatpush1.msra.mxu0 0.0
    %2120 = vmatprep.subr.mxu0 0.0
    %2121 = vmatpush1.msra.mxu0 0.0
    %2122 = vmatprep.subr.mxu0 0.0
    %2123 = vmatpush1.msra.mxu0 0.0
    %2124 = vmatprep.subr.mxu0 0.0
    %2125 = vmatpush1.msra.mxu0 0.0
    %2126 = vmatprep.subr.mxu0 0.0
    %2127 = vmatpush1.msra.mxu0 0.0
    %2128 = vmatprep.subr.mxu0 0.0
    %2129 = vmatpush1.msra.mxu0 0.0
    %2130 = vmatprep.subr.mxu0 0.0
    %2131 = vmatpush1.msra.mxu0 0.0
    %2132 = vmatprep.subr.mxu0 0.0
    %2133 = vmatpush1.msra.mxu0 0.0
    %2134 = vmatprep.subr.mxu0 0.0
    %2135 = vmatpush1.msra.mxu0 0.0
    %2136 = vmatprep.subr.mxu0 0.0
    %2137 = vmatpush1.msra.mxu0 0.0
    %2138 = vmatprep.subr.mxu0 0.0
    %2139 = vmatpush1.msra.mxu0 0.0
    %2140 = vmatprep.subr.mxu0 0.0
    %2141 = vmatpush1.msra.mxu0 0.0
    %2142 = vmatprep.subr.mxu0 0.0
    %2143 = vmatpush1.msra.mxu0 0.0
    %2144 = vmatprep.subr.mxu0 0.0
    %2145 = vmatpush1.msra.mxu0 0.0
    %2146 = vmatprep.subr.mxu0 0.0
    %2147 = vmatpush1.msra.mxu0 0.0
    %2148 = vmatprep.subr.mxu0 0.0
    %2149 = vmatpush1.msra.mxu0 0.0
    %2150 = vmatprep.subr.mxu0 0.0
    %2151 = vmatpush1.msra.mxu0 0.0
    %2152 = vmatprep.subr.mxu0 0.0
    %2153 = vmatpush1.msra.mxu0 0.0
    %2154 = vmatprep.subr.mxu0 0.0
    %2155 = vmatpush1.msra.mxu0 0.0
    %2156 = vmatprep.subr.mxu0 0.0
    %2157 = vmatpush1.msra.mxu0 0.0
    %2158 = vmatprep.mubr.f32.mxu0 0.0
    %2159 = vmatmul.mubr.f32.gmra.mrb[0].mxu0 %v2092
    %v2160 = vpop.f32.mrb[0].mxu0
    %v2161 = vadd.f32 %v668, %v2160
    %v2162 = vpop.f32.mrb[0].mxu0
    %2163 = vdwg.mxu0
    %v2164 = vadd.f32 %v2086, %v2161
    %v2165 = vxor.u32 %v2164, 2147483648
    %v2166 = vmul.f32 %v2165, 1.442695
    %v2167 = vpow.pop %v2166
    %v2168 = vadd.f32 %v2167, 1.0
    %v2169 = vrcp.pop %v2168
    %v2170 = vmul.f32 1.0, %v2169
    %2172 = vrot.lane.b32.xlu0 %v2161, 96
    %v2173 = vpop.permute.xlu0 %2172
    %v2175 = vadd.f32 %v2088, %v2173
    %v2176 = vxor.u32 %v2175, 2147483648
    %v2177 = vmul.f32 %v2176, 1.442695
    %v2178 = vpow.pop %v2177
    %v2179 = vadd.f32 %v2178, 1.0
    %v2180 = vrcp.pop %v2179
    %v2181 = vmul.f32 1.0, %v2180
    %2182 = vrot.lane.b32.xlu0 %v2161, 64
    %v2183 = vpop.permute.xlu0 %2182
    %v2185 = vmul.f32 %v2170, %v2183
    %v2186 = vadd.f32 %v2090, %v2185
    %v2187 = vtanh.pop %v2186
    %v2188 = vsub.f32 1.0, %v2181
    %v2189 = vmul.f32 %v2188, %v2187
    %v2190 = vmul.f32 %v2181, %v1973
    %v2191 = vadd.f32 %v2189, %v2190
    %s2192 = scalar_lea.vmem [#allocation5], 12
    %2193 = vst.msk [vmem:[%s2192] sm:$0x3] %vm383, %v2084
    %s2194 = scalar_lea.vmem [#allocation6], 2
    %2195 = vst.msk [vmem:[%s2194] sm:$0x3] %vm383, %v2191
    %s2196 = scalar_lea.vmem [#allocation2], 14
    %v2197 = vld [vmem:[%s2196] sm:$0x3]
    %s2198 = scalar_lea.vmem [#allocation2], 30
    %v2199 = vld [vmem:[%s2198] sm:$0x3]
    %s2200 = scalar_lea.vmem [#allocation2], 46
    %v2201 = vld [vmem:[%s2200] sm:$0x3]
    %v2203 = vsel %vm129, %v2084, 0
    %2205 = vmatprep.subr.mxu0 0.0
    %2206 = vmatpush1.msra.mxu0 %v644
    %2207 = vmatprep.subr.mxu0 0.0
    %2208 = vmatpush1.msra.mxu0 %v645
    %2209 = vmatprep.subr.mxu0 0.0
    %2210 = vmatpush1.msra.mxu0 %v646
    %2211 = vmatprep.subr.mxu0 0.0
    %2212 = vmatpush1.msra.mxu0 %v647
    %2213 = vmatprep.subr.mxu0 0.0
    %2214 = vmatpush1.msra.mxu0 0.0
    %2215 = vmatprep.subr.mxu0 0.0
    %2216 = vmatpush1.msra.mxu0 0.0
    %2217 = vmatprep.subr.mxu0 0.0
    %2218 = vmatpush1.msra.mxu0 0.0
    %2219 = vmatprep.subr.mxu0 0.0
    %2220 = vmatpush1.msra.mxu0 0.0
    %2221 = vmatprep.subr.mxu0 0.0
    %2222 = vmatpush1.msra.mxu0 0.0
    %2223 = vmatprep.subr.mxu0 0.0
    %2224 = vmatpush1.msra.mxu0 0.0
    %2225 = vmatprep.subr.mxu0 0.0
    %2226 = vmatpush1.msra.mxu0 0.0
    %2227 = vmatprep.subr.mxu0 0.0
    %2228 = vmatpush1.msra.mxu0 0.0
    %2229 = vmatprep.subr.mxu0 0.0
    %2230 = vmatpush1.msra.mxu0 0.0
    %2231 = vmatprep.subr.mxu0 0.0
    %2232 = vmatpush1.msra.mxu0 0.0
    %2233 = vmatprep.subr.mxu0 0.0
    %2234 = vmatpush1.msra.mxu0 0.0
    %2235 = vmatprep.subr.mxu0 0.0
    %2236 = vmatpush1.msra.mxu0 0.0
    %2237 = vmatprep.subr.mxu0 0.0
    %2238 = vmatpush1.msra.mxu0 0.0
    %2239 = vmatprep.subr.mxu0 0.0
    %2240 = vmatpush1.msra.mxu0 0.0
    %2241 = vmatprep.subr.mxu0 0.0
    %2242 = vmatpush1.msra.mxu0 0.0
    %2243 = vmatprep.subr.mxu0 0.0
    %2244 = vmatpush1.msra.mxu0 0.0
    %2245 = vmatprep.subr.mxu0 0.0
    %2246 = vmatpush1.msra.mxu0 0.0
    %2247 = vmatprep.subr.mxu0 0.0
    %2248 = vmatpush1.msra.mxu0 0.0
    %2249 = vmatprep.subr.mxu0 0.0
    %2250 = vmatpush1.msra.mxu0 0.0
    %2251 = vmatprep.subr.mxu0 0.0
    %2252 = vmatpush1.msra.mxu0 0.0
    %2253 = vmatprep.subr.mxu0 0.0
    %2254 = vmatpush1.msra.mxu0 0.0
    %2255 = vmatprep.subr.mxu0 0.0
    %2256 = vmatpush1.msra.mxu0 0.0
    %2257 = vmatprep.subr.mxu0 0.0
    %2258 = vmatpush1.msra.mxu0 0.0
    %2259 = vmatprep.subr.mxu0 0.0
    %2260 = vmatpush1.msra.mxu0 0.0
    %2261 = vmatprep.subr.mxu0 0.0
    %2262 = vmatpush1.msra.mxu0 0.0
    %2263 = vmatprep.subr.mxu0 0.0
    %2264 = vmatpush1.msra.mxu0 0.0
    %2265 = vmatprep.subr.mxu0 0.0
    %2266 = vmatpush1.msra.mxu0 0.0
    %2267 = vmatprep.subr.mxu0 0.0
    %2268 = vmatpush1.msra.mxu0 0.0
    %2269 = vmatprep.mubr.f32.mxu0 0.0
    %2270 = vmatmul.mubr.f32.gmra.mrb[0].mxu0 %v2203
    %v2271 = vpop.f32.mrb[0].mxu0
    %v2272 = vadd.f32 %v661, %v2271
    %v2273 = vpop.f32.mrb[0].mxu0
    %2274 = vdwg.mxu0
    %v2275 = vadd.f32 %v2197, %v2272
    %v2276 = vxor.u32 %v2275, 2147483648
    %v2277 = vmul.f32 %v2276, 1.442695
    %v2278 = vpow.pop %v2277
    %v2279 = vadd.f32 %v2278, 1.0
    %v2280 = vrcp.pop %v2279
    %v2281 = vmul.f32 1.0, %v2280
    %2283 = vrot.lane.b32.xlu0 %v2272, 96
    %v2284 = vpop.permute.xlu0 %2283
    %v2286 = vadd.f32 %v2199, %v2284
    %v2287 = vxor.u32 %v2286, 2147483648
    %v2288 = vmul.f32 %v2287, 1.442695
    %v2289 = vpow.pop %v2288
    %v2290 = vadd.f32 %v2289, 1.0
    %v2291 = vrcp.pop %v2290
    %v2292 = vmul.f32 1.0, %v2291
    %2293 = vrot.lane.b32.xlu0 %v2272, 64
    %v2294 = vpop.permute.xlu0 %2293
    %v2296 = vmul.f32 %v2281, %v2294
    %v2297 = vadd.f32 %v2201, %v2296
    %v2298 = vtanh.pop %v2297
    %v2299 = vsub.f32 1.0, %v2292
    %v2300 = vmul.f32 %v2299, %v2298
    %v2301 = vmul.f32 %v2292, %v2084
    %v2302 = vadd.f32 %v2300, %v2301
    %v2303 = vld [vmem:[#allocation3] sm:$0x3]
    %v2304 = vld [vmem:[%s569] sm:$0x3]
    %v2305 = vld [vmem:[%s635] sm:$0x3]
    %v2307 = vsel %vm129, %v2191, 0
    %2309 = vmatprep.subr.mxu0 0.0
    %2310 = vmatpush1.msra.mxu0 %v648
    %2311 = vmatprep.subr.mxu0 0.0
    %2312 = vmatpush1.msra.mxu0 %v649
    %2313 = vmatprep.subr.mxu0 0.0
    %2314 = vmatpush1.msra.mxu0 %v650
    %2315 = vmatprep.subr.mxu0 0.0
    %2316 = vmatpush1.msra.mxu0 %v651
    %2317 = vmatprep.subr.mxu0 0.0
    %2318 = vmatpush1.msra.mxu0 0.0
    %2319 = vmatprep.subr.mxu0 0.0
    %2320 = vmatpush1.msra.mxu0 0.0
    %2321 = vmatprep.subr.mxu0 0.0
    %2322 = vmatpush1.msra.mxu0 0.0
    %2323 = vmatprep.subr.mxu0 0.0
    %2324 = vmatpush1.msra.mxu0 0.0
    %2325 = vmatprep.subr.mxu0 0.0
    %2326 = vmatpush1.msra.mxu0 0.0
    %2327 = vmatprep.subr.mxu0 0.0
    %2328 = vmatpush1.msra.mxu0 0.0
    %2329 = vmatprep.subr.mxu0 0.0
    %2330 = vmatpush1.msra.mxu0 0.0
    %2331 = vmatprep.subr.mxu0 0.0
    %2332 = vmatpush1.msra.mxu0 0.0
    %2333 = vmatprep.subr.mxu0 0.0
    %2334 = vmatpush1.msra.mxu0 0.0
    %2335 = vmatprep.subr.mxu0 0.0
    %2336 = vmatpush1.msra.mxu0 0.0
    %2337 = vmatprep.subr.mxu0 0.0
    %2338 = vmatpush1.msra.mxu0 0.0
    %2339 = vmatprep.subr.mxu0 0.0
    %2340 = vmatpush1.msra.mxu0 0.0
    %2341 = vmatprep.subr.mxu0 0.0
    %2342 = vmatpush1.msra.mxu0 0.0
    %2343 = vmatprep.subr.mxu0 0.0
    %2344 = vmatpush1.msra.mxu0 0.0
    %2345 = vmatprep.subr.mxu0 0.0
    %2346 = vmatpush1.msra.mxu0 0.0
    %2347 = vmatprep.subr.mxu0 0.0
    %2348 = vmatpush1.msra.mxu0 0.0
    %2349 = vmatprep.subr.mxu0 0.0
    %2350 = vmatpush1.msra.mxu0 0.0
    %2351 = vmatprep.subr.mxu0 0.0
    %2352 = vmatpush1.msra.mxu0 0.0
    %2353 = vmatprep.subr.mxu0 0.0
    %2354 = vmatpush1.msra.mxu0 0.0
    %2355 = vmatprep.subr.mxu0 0.0
    %2356 = vmatpush1.msra.mxu0 0.0
    %2357 = vmatprep.subr.mxu0 0.0
    %2358 = vmatpush1.msra.mxu0 0.0
    %2359 = vmatprep.subr.mxu0 0.0
    %2360 = vmatpush1.msra.mxu0 0.0
    %2361 = vmatprep.subr.mxu0 0.0
    %2362 = vmatpush1.msra.mxu0 0.0
    %2363 = vmatprep.subr.mxu0 0.0
    %2364 = vmatpush1.msra.mxu0 0.0
    %2365 = vmatprep.subr.mxu0 0.0
    %2366 = vmatpush1.msra.mxu0 0.0
    %2367 = vmatprep.subr.mxu0 0.0
    %2368 = vmatpush1.msra.mxu0 0.0
    %2369 = vmatprep.subr.mxu0 0.0
    %2370 = vmatpush1.msra.mxu0 0.0
    %2371 = vmatprep.subr.mxu0 0.0
    %2372 = vmatpush1.msra.mxu0 0.0
    %2373 = vmatprep.mubr.f32.mxu0 0.0
    %2374 = vmatmul.mubr.f32.gmra.mrb[0].mxu0 %v2307
    %v2375 = vpop.f32.mrb[0].mxu0
    %v2376 = vadd.f32 %v668, %v2375
    %v2377 = vpop.f32.mrb[0].mxu0
    %2378 = vdwg.mxu0
    %v2379 = vadd.f32 %v2303, %v2376
    %v2380 = vxor.u32 %v2379, 2147483648
    %v2381 = vmul.f32 %v2380, 1.442695
    %v2382 = vpow.pop %v2381
    %v2383 = vadd.f32 %v2382, 1.0
    %v2384 = vrcp.pop %v2383
    %v2385 = vmul.f32 1.0, %v2384
    %2387 = vrot.lane.b32.xlu0 %v2376, 96
    %v2388 = vpop.permute.xlu0 %2387
    %v2390 = vadd.f32 %v2304, %v2388
    %v2391 = vxor.u32 %v2390, 2147483648
    %v2392 = vmul.f32 %v2391, 1.442695
    %v2393 = vpow.pop %v2392
    %v2394 = vadd.f32 %v2393, 1.0
    %v2395 = vrcp.pop %v2394
    %v2396 = vmul.f32 1.0, %v2395
    %2397 = vrot.lane.b32.xlu0 %v2376, 64
    %v2398 = vpop.permute.xlu0 %2397
    %v2400 = vmul.f32 %v2385, %v2398
    %v2401 = vadd.f32 %v2305, %v2400
    %v2402 = vtanh.pop %v2401
    %v2403 = vsub.f32 1.0, %v2396
    %v2404 = vmul.f32 %v2403, %v2402
    %v2405 = vmul.f32 %v2396, %v2191
    %v2406 = vadd.f32 %v2404, %v2405
    %s2407 = scalar_lea.vmem [#allocation5], 14
    %2408 = vst.msk [vmem:[%s2407] sm:$0x3] %vm383, %v2302
    %2409 = vst.msk [vmem:[#allocation6] sm:$0x3] %vm383, %v2406
    %v2410 = vadd.f32 %v2302, %v2406
    %v2411 = vld [vmem:[#allocation5] sm:$0x3]
    %v2412 = vld [vmem:[#allocation5 + $0x2] sm:$0x3]
    %v2413 = vld [vmem:[#allocation5 + $0x4] sm:$0x3]
    %v2414 = vld [vmem:[#allocation5 + $0x6] sm:$0x3]
    %v2415 = vld [vmem:[#allocation5 + $0x8] sm:$0x3]
    %v2416 = vld [vmem:[#allocation5 + $0xa] sm:$0x3]
    %v2417 = vld [vmem:[#allocation5 + $0xc] sm:$0x3]
    %v2418 = vld [vmem:[#allocation5 + $0xe] sm:$0x3]
    %v2419 = vld [vmem:[#allocation6] sm:$0x3]
    %v2420 = vld [vmem:[#allocation6 + $0x2] sm:$0x3]
    %v2421 = vld [vmem:[#allocation6 + $0x4] sm:$0x3]
    %v2422 = vld [vmem:[#allocation6 + $0x6] sm:$0x3]
    %v2423 = vld [vmem:[#allocation6 + $0x8] sm:$0x3]
    %v2424 = vld [vmem:[#allocation6 + $0xa] sm:$0x3]
    %v2425 = vld [vmem:[#allocation6 + $0xc] sm:$0x3]
    %v2426 = vld [vmem:[#allocation6 + $0xe] sm:$0x3]
    %v2427 = vadd.f32 %v2411, %v2419
    %v2428 = vadd.f32 %v2412, %v2420
    %v2429 = vadd.f32 %v2413, %v2421
    %v2430 = vadd.f32 %v2414, %v2422
    %v2431 = vadd.f32 %v2415, %v2423
    %v2432 = vadd.f32 %v2416, %v2424
    %v2433 = vadd.f32 %v2417, %v2425
    %v2434 = vadd.f32 %v2418, %v2426
    %v2435 = vld [vmem:[%s10] sm:$0xff]
    %v2436 = vld [vmem:[%s10 + $0x8] sm:$0xff]
    %v2437 = vld [vmem:[%s10 + $0x10] sm:$0xff]
    %v2438 = vld [vmem:[%s10 + $0x18] sm:$0xff]
    %v2447 = vcombine.low %v2427, %v2428
    %v2448 = vcombine.low %v2429, %v2430
    %v2450 = vunpack.c.l.s4 1983009808
    %v2451 = vunpack.c.0.s8 %v2450
    %v2452 = vlaneseq
    %v2453 = vshrl.u32 %v2452, 7
    %v2454 = vsub.s32 %v2451, %v2453
    %v2455 = vrot.slane %v2447, %v2454
    %v2457 = vunpack.c.l.s4 1983009808
    %v2458 = vunpack.c.0.s8 %v2457
    %v2459 = vlaneseq
    %v2460 = vshrl.u32 %v2459, 7
    %v2461 = vsub.s32 %v2458, %v2460
    %v2462 = vrot.slane %v2448, %v2461
    %v2463 = vcombine.low %v2455, %v2462
    %v2464 = vcombine.low %v2431, %v2432
    %v2465 = vcombine.low %v2433, %v2434
    %v2467 = vunpack.c.l.s4 1983009808
    %v2468 = vunpack.c.0.s8 %v2467
    %v2469 = vlaneseq
    %v2470 = vshrl.u32 %v2469, 7
    %v2471 = vsub.s32 %v2468, %v2470
    %v2472 = vrot.slane %v2464, %v2471
    %v2474 = vunpack.c.l.s4 1983009808
    %v2475 = vunpack.c.0.s8 %v2474
    %v2476 = vlaneseq
    %v2477 = vshrl.u32 %v2476, 7
    %v2478 = vsub.s32 %v2475, %v2477
    %v2479 = vrot.slane %v2465, %v2478
    %v2480 = vcombine.low %v2472, %v2479
    %v2481 = vsel %vm129, %v2463, 0
    %v2483 = vsel %vm129, %v2480, 0
    %2485 = vmatprep.subr.mxu0 0.0
    %2486 = vmatpush1.msra.mxu0 %v2435
    %2487 = vmatprep.subr.mxu0 0.0
    %2488 = vmatpush1.msra.mxu0 %v2436
    %2489 = vmatprep.subr.mxu0 0.0
    %2490 = vmatpush1.msra.mxu0 %v2437
    %2491 = vmatprep.subr.mxu0 0.0
    %2492 = vmatpush1.msra.mxu0 %v2438
    %2493 = vmatprep.subr.mxu0 0.0
    %2494 = vmatpush1.msra.mxu0 0.0
    %2495 = vmatprep.subr.mxu0 0.0
    %2496 = vmatpush1.msra.mxu0 0.0
    %2497 = vmatprep.subr.mxu0 0.0
    %2498 = vmatpush1.msra.mxu0 0.0
    %2499 = vmatprep.subr.mxu0 0.0
    %2500 = vmatpush1.msra.mxu0 0.0
    %2501 = vmatprep.subr.mxu0 0.0
    %2502 = vmatpush1.msra.mxu0 0.0
    %2503 = vmatprep.subr.mxu0 0.0
    %2504 = vmatpush1.msra.mxu0 0.0
    %2505 = vmatprep.subr.mxu0 0.0
    %2506 = vmatpush1.msra.mxu0 0.0
    %2507 = vmatprep.subr.mxu0 0.0
    %2508 = vmatpush1.msra.mxu0 0.0
    %2509 = vmatprep.subr.mxu0 0.0
    %2510 = vmatpush1.msra.mxu0 0.0
    %2511 = vmatprep.subr.mxu0 0.0
    %2512 = vmatpush1.msra.mxu0 0.0
    %2513 = vmatprep.subr.mxu0 0.0
    %2514 = vmatpush1.msra.mxu0 0.0
    %2515 = vmatprep.subr.mxu0 0.0
    %2516 = vmatpush1.msra.mxu0 0.0
    %2517 = vmatprep.subr.mxu0 0.0
    %2518 = vmatpush1.msra.mxu0 0.0
    %2519 = vmatprep.subr.mxu0 0.0
    %2520 = vmatpush1.msra.mxu0 0.0
    %2521 = vmatprep.subr.mxu0 0.0
    %2522 = vmatpush1.msra.mxu0 0.0
    %2523 = vmatprep.subr.mxu0 0.0
    %2524 = vmatpush1.msra.mxu0 0.0
    %2525 = vmatprep.subr.mxu0 0.0
    %2526 = vmatpush1.msra.mxu0 0.0
    %2527 = vmatprep.subr.mxu0 0.0
    %2528 = vmatpush1.msra.mxu0 0.0
    %2529 = vmatprep.subr.mxu0 0.0
    %2530 = vmatpush1.msra.mxu0 0.0
    %2531 = vmatprep.subr.mxu0 0.0
    %2532 = vmatpush1.msra.mxu0 0.0
    %2533 = vmatprep.subr.mxu0 0.0
    %2534 = vmatpush1.msra.mxu0 0.0
    %2535 = vmatprep.subr.mxu0 0.0
    %2536 = vmatpush1.msra.mxu0 0.0
    %2537 = vmatprep.subr.mxu0 0.0
    %2538 = vmatpush1.msra.mxu0 0.0
    %2539 = vmatprep.subr.mxu0 0.0
    %2540 = vmatpush1.msra.mxu0 0.0
    %2541 = vmatprep.subr.mxu0 0.0
    %2542 = vmatpush1.msra.mxu0 0.0
    %2543 = vmatprep.subr.mxu0 0.0
    %2544 = vmatpush1.msra.mxu0 0.0
    %2545 = vmatprep.subr.mxu0 0.0
    %2546 = vmatpush1.msra.mxu0 0.0
    %2547 = vmatprep.subr.mxu0 0.0
    %2548 = vmatpush1.msra.mxu0 0.0
    %2549 = vmatprep.mubr.f32.mxu0 0.0
    %2550 = vmatmul.mubr.f32.gmra.mrb[0].mxu0 %v2481
    %v2551 = vpop.f32.mrb[0].mxu0
    %v2552 = vadd.f32 0.0, %v2551
    %v2553 = vpop.f32.mrb[0].mxu0
    %2554 = vmatprep.mubr.f32.mxu0 0.0
    %2555 = vmatmul.mubr.f32.gmra.mrb[0].mxu0 %v2483
    %v2556 = vpop.f32.mrb[0].mxu0
    %v2557 = vadd.f32 0.0, %v2556
    %v2558 = vpop.f32.mrb[0].mxu0
    %2559 = vdwg.mxu0
    %v2562 = vcombine.high %v2552, %v2552
    %v2564 = vunpack.c.l.s4 1983009808
    %v2565 = vunpack.c.0.s8 %v2564
    %v2566 = vlaneseq
    %v2567 = vshrl.u32 %v2566, 7
    %v2568 = vsub.s32 %v2565, %v2567
    %v2569 = vrot.slane %v2552, %v2568
    %v2571 = vunpack.c.l.s4 1983009808
    %v2572 = vunpack.c.0.s8 %v2571
    %v2573 = vlaneseq
    %v2574 = vshrl.u32 %v2573, 7
    %v2575 = vsub.s32 %v2572, %v2574
    %v2576 = vrot.slane %v2562, %v2575
    %v2577 = vcombine.high %v2569, %v2569
    %v2578 = vcombine.high %v2576, %v2576
    %v2579 = vcombine.high %v2557, %v2557
    %v2581 = vunpack.c.l.s4 1983009808
    %v2582 = vunpack.c.0.s8 %v2581
    %v2583 = vlaneseq
    %v2584 = vshrl.u32 %v2583, 7
    %v2585 = vsub.s32 %v2582, %v2584
    %v2586 = vrot.slane %v2557, %v2585
    %v2588 = vunpack.c.l.s4 1983009808
    %v2589 = vunpack.c.0.s8 %v2588
    %v2590 = vlaneseq
    %v2591 = vshrl.u32 %v2590, 7
    %v2592 = vsub.s32 %v2589, %v2591
    %v2593 = vrot.slane %v2579, %v2592
    %v2594 = vcombine.high %v2586, %v2586
    %v2595 = vcombine.high %v2593, %v2593
    %v2604 = vld [vmem:[%s11] sm:$0xff]
    %v2605 = vld [vmem:[%s11 + $0x8] sm:$0xff]
    %v2606 = vld [vmem:[%s11 + $0x10] sm:$0xff]
    %v2607 = vld [vmem:[%s11 + $0x18] sm:$0xff]
    %v2608 = vld [vmem:[%s12] sm:$0x1]
    %v2610 = vlaneseq
    %v2611 = vshrl.u32 %v2610, 7
    %v2612 = vsub.s32 0, %v2611
    %v2613 = vrot.slane %v2608, %v2612
    %v2616 = vsel %vm129, %v2410, 0
    %2618 = vmatprep.subr.mxu0 0.0
    %2619 = vmatpush1.msra.mxu0 %v2604
    %2620 = vmatprep.subr.mxu0 0.0
    %2621 = vmatpush1.msra.mxu0 %v2605
    %2622 = vmatprep.subr.mxu0 0.0
    %2623 = vmatpush1.msra.mxu0 %v2606
    %2624 = vmatprep.subr.mxu0 0.0
    %2625 = vmatpush1.msra.mxu0 %v2607
    %2626 = vmatprep.subr.mxu0 0.0
    %2627 = vmatpush1.msra.mxu0 0.0
    %2628 = vmatprep.subr.mxu0 0.0
    %2629 = vmatpush1.msra.mxu0 0.0
    %2630 = vmatprep.subr.mxu0 0.0
    %2631 = vmatpush1.msra.mxu0 0.0
    %2632 = vmatprep.subr.mxu0 0.0
    %2633 = vmatpush1.msra.mxu0 0.0
    %2634 = vmatprep.subr.mxu0 0.0
    %2635 = vmatpush1.msra.mxu0 0.0
    %2636 = vmatprep.subr.mxu0 0.0
    %2637 = vmatpush1.msra.mxu0 0.0
    %2638 = vmatprep.subr.mxu0 0.0
    %2639 = vmatpush1.msra.mxu0 0.0
    %2640 = vmatprep.subr.mxu0 0.0
    %2641 = vmatpush1.msra.mxu0 0.0
    %2642 = vmatprep.subr.mxu0 0.0
    %2643 = vmatpush1.msra.mxu0 0.0
    %2644 = vmatprep.subr.mxu0 0.0
    %2645 = vmatpush1.msra.mxu0 0.0
    %2646 = vmatprep.subr.mxu0 0.0
    %2647 = vmatpush1.msra.mxu0 0.0
    %2648 = vmatprep.subr.mxu0 0.0
    %2649 = vmatpush1.msra.mxu0 0.0
    %2650 = vmatprep.subr.mxu0 0.0
    %2651 = vmatpush1.msra.mxu0 0.0
    %2652 = vmatprep.subr.mxu0 0.0
    %2653 = vmatpush1.msra.mxu0 0.0
    %2654 = vmatprep.subr.mxu0 0.0
    %2655 = vmatpush1.msra.mxu0 0.0
    %2656 = vmatprep.subr.mxu0 0.0
    %2657 = vmatpush1.msra.mxu0 0.0
    %2658 = vmatprep.subr.mxu0 0.0
    %2659 = vmatpush1.msra.mxu0 0.0
    %2660 = vmatprep.subr.mxu0 0.0
    %2661 = vmatpush1.msra.mxu0 0.0
    %2662 = vmatprep.subr.mxu0 0.0
    %2663 = vmatpush1.msra.mxu0 0.0
    %2664 = vmatprep.subr.mxu0 0.0
    %2665 = vmatpush1.msra.mxu0 0.0
    %2666 = vmatprep.subr.mxu0 0.0
    %2667 = vmatpush1.msra.mxu0 0.0
    %2668 = vmatprep.subr.mxu0 0.0
    %2669 = vmatpush1.msra.mxu0 0.0
    %2670 = vmatprep.subr.mxu0 0.0
    %2671 = vmatpush1.msra.mxu0 0.0
    %2672 = vmatprep.subr.mxu0 0.0
    %2673 = vmatpush1.msra.mxu0 0.0
    %2674 = vmatprep.subr.mxu0 0.0
    %2675 = vmatpush1.msra.mxu0 0.0
    %2676 = vmatprep.subr.mxu0 0.0
    %2677 = vmatpush1.msra.mxu0 0.0
    %2678 = vmatprep.subr.mxu0 0.0
    %2679 = vmatpush1.msra.mxu0 0.0
    %2680 = vmatprep.subr.mxu0 0.0
    %2681 = vmatpush1.msra.mxu0 0.0
    %2682 = vmatprep.mubr.f32.mxu0 0.0
    %2683 = vmatmul.mubr.f32.gmra.mrb[0].mxu0 %v2616
    %v2684 = vpop.f32.mrb[0].mxu0
    %v2685 = vadd.f32 %v2613, %v2684
    %v2686 = vpop.f32.mrb[0].mxu0
    %2687 = vdwg.mxu0
    %v2688 = vadd.f32 %v2569, %v2685
    %v2689 = vadd.f32 %v2577, %v2685
    %v2690 = vadd.f32 %v2576, %v2685
    %v2691 = vadd.f32 %v2578, %v2685
    %v2692 = vadd.f32 %v2586, %v2685
    %v2693 = vadd.f32 %v2594, %v2685
    %v2694 = vadd.f32 %v2593, %v2685
    %v2695 = vadd.f32 %v2595, %v2685
    %v2696 = vtanh.pop %v2688
    %v2697 = vtanh.pop %v2689
    %v2698 = vtanh.pop %v2690
    %v2699 = vtanh.pop %v2691
    %v2700 = vtanh.pop %v2692
    %v2701 = vtanh.pop %v2693
    %v2702 = vtanh.pop %v2694
    %v2703 = vtanh.pop %v2695
    %v2704 = vld [vmem:[%s13] sm:$0x1]
    %v2706 = vlaneseq
    %v2707 = vshrl.u32 %v2706, 7
    %v2708 = vsub.s32 0, %v2707
    %v2709 = vrot.slane %v2704, %v2708
    %v2711 = vmul.f32 %v2696, %v2709
    %v2712 = vmul.f32 %v2697, %v2709
    %v2713 = vmul.f32 %v2698, %v2709
    %v2714 = vmul.f32 %v2699, %v2709
    %v2715 = vmul.f32 %v2700, %v2709
    %v2716 = vmul.f32 %v2701, %v2709
    %v2717 = vmul.f32 %v2702, %v2709
    %v2718 = vmul.f32 %v2703, %v2709
    %v2719 = vsel %vm383, %v2711, 0.0
    %2720 = vadd.xlane.f32.xlu0 %v2719
    %v2721 = vpop.xlane.xlu0 %2720
    %v2722 = vsel %vm383, %v2712, 0.0
    %2723 = vadd.xlane.f32.xlu0 %v2722
    %v2724 = vpop.xlane.xlu0 %2723
    %v2725 = vsel %vm383, %v2713, 0.0
    %2726 = vadd.xlane.f32.xlu0 %v2725
    %v2727 = vpop.xlane.xlu0 %2726
    %v2728 = vsel %vm383, %v2714, 0.0
    %2729 = vadd.xlane.f32.xlu0 %v2728
    %v2730 = vpop.xlane.xlu0 %2729
    %v2731 = vsel %vm383, %v2715, 0.0
    %2732 = vadd.xlane.f32.xlu0 %v2731
    %v2733 = vpop.xlane.xlu0 %2732
    %v2734 = vsel %vm383, %v2716, 0.0
    %2735 = vadd.xlane.f32.xlu0 %v2734
    %v2736 = vpop.xlane.xlu0 %2735
    %v2737 = vsel %vm383, %v2717, 0.0
    %2738 = vadd.xlane.f32.xlu0 %v2737
    %v2739 = vpop.xlane.xlu0 %2738
    %v2740 = vsel %vm383, %v2718, 0.0
    %2741 = vadd.xlane.f32.xlu0 %v2740
    %v2742 = vpop.xlane.xlu0 %2741
    %v2743 = vld [vmem:[#allocation7] sm:$0x1]
    %v2745 = vlaneseq
    %v2746 = vshrl.u32 %v2745, 7
    %v2747 = vsub.s32 0, %v2746
    %v2748 = vrot.slane %v2743, %v2747
    %2749 = vset.pattern.permute.xlu0 0
    %2750 = vperm.xlu0 %2749, %v2748
    %v2751 = vpop.permute.xlu0 %2750
    %v2753 = vadd.f32 %v2721, %v2751
    %v2754 = vadd.f32 %v2724, %v2751
    %v2755 = vadd.f32 %v2727, %v2751
    %v2756 = vadd.f32 %v2730, %v2751
    %v2757 = vadd.f32 %v2733, %v2751
    %v2758 = vadd.f32 %v2736, %v2751
    %v2759 = vadd.f32 %v2739, %v2751
    %v2760 = vadd.f32 %v2742, %v2751
    %v2761 = vld [vmem:[%s1] sm:$0xff]
    %vm2762 = vcmp.eq.s32.totalorder %v2761, 0
    %v2771 = vlaneseq
    %v2772 = vand.u32 %v2771, 127
    %v2773 = vlaneseq
    %v2774 = vshrl.u32 %v2773, 7
    %v2775 = vsub.s32 %v2772, %v2774
    %v2776 = vrot.slane %v2753, %v2775
    %v2777 = vlaneseq
    %v2778 = vshrl.u32 %v2777, 7
    %v2779 = vsub.s32 %v2772, %v2778
    %v2780 = vrot.slane %v2754, %v2779
    %v2781 = vlaneseq
    %v2782 = vshrl.u32 %v2781, 7
    %v2783 = vsub.s32 %v2772, %v2782
    %v2784 = vrot.slane %v2755, %v2783
    %v2785 = vlaneseq
    %v2786 = vshrl.u32 %v2785, 7
    %v2787 = vsub.s32 %v2772, %v2786
    %v2788 = vrot.slane %v2756, %v2787
    %v2789 = vlaneseq
    %v2790 = vshrl.u32 %v2789, 7
    %v2791 = vsub.s32 %v2772, %v2790
    %v2792 = vrot.slane %v2757, %v2791
    %v2793 = vlaneseq
    %v2794 = vshrl.u32 %v2793, 7
    %v2795 = vsub.s32 %v2772, %v2794
    %v2796 = vrot.slane %v2758, %v2795
    %v2797 = vlaneseq
    %v2798 = vshrl.u32 %v2797, 7
    %v2799 = vsub.s32 %v2772, %v2798
    %v2800 = vrot.slane %v2759, %v2799
    %v2801 = vlaneseq
    %v2802 = vshrl.u32 %v2801, 7
    %v2803 = vsub.s32 %v2772, %v2802
    %v2804 = vrot.slane %v2760, %v2803
    %vm2805 = vcmask 1041409
    %v2806 = vsel %vm2805, %v2780, %v2776
    %vm2807 = vcmask 1042434
    %v2808 = vsel %vm2807, %v2784, %v2806
    %vm2809 = vcmask 1043459
    %v2810 = vsel %vm2809, %v2788, %v2808
    %vm2811 = vcmask 1044484
    %v2812 = vsel %vm2811, %v2792, %v2810
    %vm2813 = vcmask 1045509
    %v2814 = vsel %vm2813, %v2796, %v2812
    %vm2815 = vcmask 1046534
    %v2816 = vsel %vm2815, %v2800, %v2814
    %vm2817 = vcmask 1047559
    %v2818 = vsel %vm2817, %v2804, %v2816
    %v2820 = vsel %vm2762, -1e+30, %v2818
    %vm2821 = vcmask 15360
    %v2822 = vsel %vm2821, %v2820, -inf
    %v2823 = vrot.slane %v2822, 4
    %v2824 = vmax.f32 %v2822, %v2823
    %v2825 = vrot.slane %v2824, 2
    %v2826 = vmax.f32 %v2824, %v2825
    %v2827 = vrot.slane %v2826, 1
    %v2828 = vmax.f32 %v2826, %v2827
    %v2829 = vsub.f32 %v2820, %v2828
    %v2830 = vmul.f32 %v2829, 1.442695
    %v2831 = vpow.pop %v2830
    %v2832 = vsel %vm2821, %v2831, 0.0
    %v2833 = vrot.slane %v2832, 4
    %v2834 = vadd.f32 %v2832, %v2833
    %v2835 = vrot.slane %v2834, 2
    %v2836 = vadd.f32 %v2834, %v2835
    %v2837 = vrot.slane %v2836, 1
    %v2838 = vadd.f32 %v2836, %v2837
    %v2839 = vrcp.pop %v2838
    %v2840 = vmul.f32 %v2831, %v2839
    %v2841 = vld [vmem:[%s15] sm:$0xff]
    %v2842 = vld [vmem:[%s15 + $0x8] sm:$0xff]
    %v2843 = vld [vmem:[%s15 + $0x10] sm:$0xff]
    %v2844 = vld [vmem:[%s15 + $0x18] sm:$0xff]
    %2845 = vmatprep.subr.mxu0 0.0
    %2846 = vmatpush1.msra.mxu0 %v2841
    %2847 = vmatprep.subr.mxu0 0.0
    %2848 = vmatpush1.msra.mxu0 %v2842
    %2849 = vmatprep.subr.mxu0 0.0
    %2850 = vmatpush1.msra.mxu0 %v2843
    %2851 = vmatprep.subr.mxu0 0.0
    %2852 = vmatpush1.msra.mxu0 %v2844
    %2853 = vmatprep.subr.mxu0 0.0
    %2854 = vmatpush1.msra.mxu0 0.0
    %2855 = vmatprep.subr.mxu0 0.0
    %2856 = vmatpush1.msra.mxu0 0.0
    %2857 = vmatprep.subr.mxu0 0.0
    %2858 = vmatpush1.msra.mxu0 0.0
    %2859 = vmatprep.subr.mxu0 0.0
    %2860 = vmatpush1.msra.mxu0 0.0
    %2861 = vmatprep.subr.mxu0 0.0
    %2862 = vmatpush1.msra.mxu0 0.0
    %2863 = vmatprep.subr.mxu0 0.0
    %2864 = vmatpush1.msra.mxu0 0.0
    %2865 = vmatprep.subr.mxu0 0.0
    %2866 = vmatpush1.msra.mxu0 0.0
    %2867 = vmatprep.subr.mxu0 0.0
    %2868 = vmatpush1.msra.mxu0 0.0
    %2869 = vmatprep.subr.mxu0 0.0
    %2870 = vmatpush1.msra.mxu0 0.0
    %2871 = vmatprep.subr.mxu0 0.0
    %2872 = vmatpush1.msra.mxu0 0.0
    %2873 = vmatprep.subr.mxu0 0.0
    %2874 = vmatpush1.msra.mxu0 0.0
    %2875 = vmatprep.subr.mxu0 0.0
    %2876 = vmatpush1.msra.mxu0 0.0
    %2877 = vmatprep.subr.mxu0 0.0
    %2878 = vmatpush1.msra.mxu0 0.0
    %2879 = vmatprep.subr.mxu0 0.0
    %2880 = vmatpush1.msra.mxu0 0.0
    %2881 = vmatprep.subr.mxu0 0.0
    %2882 = vmatpush1.msra.mxu0 0.0
    %2883 = vmatprep.subr.mxu0 0.0
    %2884 = vmatpush1.msra.mxu0 0.0
    %2885 = vmatprep.subr.mxu0 0.0
    %2886 = vmatpush1.msra.mxu0 0.0
    %2887 = vmatprep.subr.mxu0 0.0
    %2888 = vmatpush1.msra.mxu0 0.0
    %2889 = vmatprep.subr.mxu0 0.0
    %2890 = vmatpush1.msra.mxu0 0.0
    %2891 = vmatprep.subr.mxu0 0.0
    %2892 = vmatpush1.msra.mxu0 0.0
    %2893 = vmatprep.subr.mxu0 0.0
    %2894 = vmatpush1.msra.mxu0 0.0
    %2895 = vmatprep.subr.mxu0 0.0
    %2896 = vmatpush1.msra.mxu0 0.0
    %2897 = vmatprep.subr.mxu0 0.0
    %2898 = vmatpush1.msra.mxu0 0.0
    %2899 = vmatprep.subr.mxu0 0.0
    %2900 = vmatpush1.msra.mxu0 0.0
    %2901 = vmatprep.subr.mxu0 0.0
    %2902 = vmatpush1.msra.mxu0 0.0
    %2903 = vmatprep.subr.mxu0 0.0
    %2904 = vmatpush1.msra.mxu0 0.0
    %2905 = vmatprep.subr.mxu0 0.0
    %2906 = vmatpush1.msra.mxu0 0.0
    %2907 = vmatprep.subr.mxu0 0.0
    %2908 = vmatpush1.msra.mxu0 0.0
    %2909 = vmatprep.mubr.f32.mxu0 0.0
    %2910 = vmatmul.mubr.f32.gmra.mrb[0].mxu0 %v2481
    %v2911 = vpop.f32.mrb[0].mxu0
    %v2912 = vadd.f32 0.0, %v2911
    %v2913 = vpop.f32.mrb[0].mxu0
    %2914 = vmatprep.mubr.f32.mxu0 0.0
    %2915 = vmatmul.mubr.f32.gmra.mrb[0].mxu0 %v2483
    %v2916 = vpop.f32.mrb[0].mxu0
    %v2917 = vadd.f32 0.0, %v2916
    %v2918 = vpop.f32.mrb[0].mxu0
    %2919 = vdwg.mxu0
    %v2922 = vcombine.high %v2912, %v2912
    %v2924 = vunpack.c.l.s4 1983009808
    %v2925 = vunpack.c.0.s8 %v2924
    %v2926 = vlaneseq
    %v2927 = vshrl.u32 %v2926, 7
    %v2928 = vsub.s32 %v2925, %v2927
    %v2929 = vrot.slane %v2912, %v2928
    %v2931 = vunpack.c.l.s4 1983009808
    %v2932 = vunpack.c.0.s8 %v2931
    %v2933 = vlaneseq
    %v2934 = vshrl.u32 %v2933, 7
    %v2935 = vsub.s32 %v2932, %v2934
    %v2936 = vrot.slane %v2922, %v2935
    %v2937 = vcombine.high %v2929, %v2929
    %v2938 = vcombine.high %v2936, %v2936
    %v2939 = vcombine.high %v2917, %v2917
    %v2941 = vunpack.c.l.s4 1983009808
    %v2942 = vunpack.c.0.s8 %v2941
    %v2943 = vlaneseq
    %v2944 = vshrl.u32 %v2943, 7
    %v2945 = vsub.s32 %v2942, %v2944
    %v2946 = vrot.slane %v2917, %v2945
    %v2948 = vunpack.c.l.s4 1983009808
    %v2949 = vunpack.c.0.s8 %v2948
    %v2950 = vlaneseq
    %v2951 = vshrl.u32 %v2950, 7
    %v2952 = vsub.s32 %v2949, %v2951
    %v2953 = vrot.slane %v2939, %v2952
    %v2954 = vcombine.high %v2946, %v2946
    %v2955 = vcombine.high %v2953, %v2953
    %v2964 = vlaneseq
    %v2965 = vshrl.u32 %v2964, 7
    %v2966 = vsub.s32 0, %v2965
    %v2967 = vrot.slane %v2840, %v2966
    %2969 = vbcast.lane.b32.xlu0 %v2967, 256
    %v2970 = vpop.permute.xlu0 %2969
    %v2971 = vlaneseq
    %v2972 = vshrl.u32 %v2971, 7
    %v2973 = vsub.s32 1, %v2972
    %v2974 = vrot.slane %v2840, %v2973
    %2976 = vbcast.lane.b32.xlu0 %v2974, 256
    %v2977 = vpop.permute.xlu0 %2976
    %v2978 = vlaneseq
    %v2979 = vshrl.u32 %v2978, 7
    %v2980 = vsub.s32 2, %v2979
    %v2981 = vrot.slane %v2840, %v2980
    %2983 = vbcast.lane.b32.xlu0 %v2981, 256
    %v2984 = vpop.permute.xlu0 %2983
    %v2985 = vlaneseq
    %v2986 = vshrl.u32 %v2985, 7
    %v2987 = vsub.s32 3, %v2986
    %v2988 = vrot.slane %v2840, %v2987
    %2990 = vbcast.lane.b32.xlu0 %v2988, 256
    %v2991 = vpop.permute.xlu0 %2990
    %v2992 = vlaneseq
    %v2993 = vshrl.u32 %v2992, 7
    %v2994 = vsub.s32 4, %v2993
    %v2995 = vrot.slane %v2840, %v2994
    %2997 = vbcast.lane.b32.xlu0 %v2995, 256
    %v2998 = vpop.permute.xlu0 %2997
    %v2999 = vlaneseq
    %v3000 = vshrl.u32 %v2999, 7
    %v3001 = vsub.s32 5, %v3000
    %v3002 = vrot.slane %v2840, %v3001
    %3004 = vbcast.lane.b32.xlu0 %v3002, 256
    %v3005 = vpop.permute.xlu0 %3004
    %v3006 = vlaneseq
    %v3007 = vshrl.u32 %v3006, 7
    %v3008 = vsub.s32 6, %v3007
    %v3009 = vrot.slane %v2840, %v3008
    %3011 = vbcast.lane.b32.xlu0 %v3009, 256
    %v3012 = vpop.permute.xlu0 %3011
    %v3013 = vlaneseq
    %v3014 = vshrl.u32 %v3013, 7
    %v3015 = vsub.s32 7, %v3014
    %v3016 = vrot.slane %v2840, %v3015
    %3018 = vbcast.lane.b32.xlu0 %v3016, 256
    %v3019 = vpop.permute.xlu0 %3018
    %v3020 = vmul.f32 %v2929, %v2970
    %v3021 = vmul.f32 %v2937, %v2977
    %v3022 = vmul.f32 %v2936, %v2984
    %v3023 = vmul.f32 %v2938, %v2991
    %v3024 = vmul.f32 %v2946, %v2998
    %v3025 = vmul.f32 %v2954, %v3005
    %v3026 = vmul.f32 %v2953, %v3012
    %v3027 = vmul.f32 %v2955, %v3019
    %v3028 = vld [vmem:[%s17] sm:$0x1]
    %v3030 = vlaneseq
    %v3031 = vshrl.u32 %v3030, 7
    %v3032 = vsub.s32 0, %v3031
    %v3033 = vrot.slane %v3028, %v3032
    %v3035 = vadd.f32 %v3020, %v3033
    %v3036 = vadd.f32 %v3021, %v3033
    %v3037 = vadd.f32 %v3022, %v3033
    %v3038 = vadd.f32 %v3023, %v3033
    %v3039 = vadd.f32 %v3024, %v3033
    %v3040 = vadd.f32 %v3025, %v3033
    %v3041 = vadd.f32 %v3026, %v3033
    %v3042 = vadd.f32 %v3027, %v3033
    %3043 = vst.msk [vmem:[#allocation4] sm:$0x3] %vm383, %v3035
    %3044 = vst.msk [vmem:[#allocation4 + $0x2] sm:$0x3] %vm383, %v3036
    %3045 = vst.msk [vmem:[#allocation4 + $0x4] sm:$0x3] %vm383, %v3037
    %3046 = vst.msk [vmem:[#allocation4 + $0x6] sm:$0x3] %vm383, %v3038
    %3047 = vst.msk [vmem:[#allocation4 + $0x8] sm:$0x3] %vm383, %v3039
    %3048 = vst.msk [vmem:[#allocation4 + $0xa] sm:$0x3] %vm383, %v3040
    %3049 = vst.msk [vmem:[#allocation4 + $0xc] sm:$0x3] %vm383, %v3041
    %3050 = vst.msk [vmem:[#allocation4 + $0xe] sm:$0x3] %vm383, %v3042
    %v3060 = vunpack.c.l.s4 1983009808
    %v3061 = vunpack.c.0.s8 %v3060
    %v3062 = vlaneseq
    %v3063 = vshrl.u32 %v3062, 7
    %v3064 = vsub.s32 %v3061, %v3063
    %v3065 = vrot.slane %v3035, %v3064
    %v3067 = vunpack.c.l.s4 1983009808
    %v3068 = vunpack.c.0.s8 %v3067
    %v3069 = vlaneseq
    %v3070 = vshrl.u32 %v3069, 7
    %v3071 = vsub.s32 %v3068, %v3070
    %v3072 = vrot.slane %v3036, %v3071
    %v3074 = vunpack.c.l.s4 1983009808
    %v3075 = vunpack.c.0.s8 %v3074
    %v3076 = vlaneseq
    %v3077 = vshrl.u32 %v3076, 7
    %v3078 = vsub.s32 %v3075, %v3077
    %v3079 = vrot.slane %v3037, %v3078
    %v3081 = vunpack.c.l.s4 1983009808
    %v3082 = vunpack.c.0.s8 %v3081
    %v3083 = vlaneseq
    %v3084 = vshrl.u32 %v3083, 7
    %v3085 = vsub.s32 %v3082, %v3084
    %v3086 = vrot.slane %v3038, %v3085
    %v3088 = vunpack.c.l.s4 1983009808
    %v3089 = vunpack.c.0.s8 %v3088
    %v3090 = vlaneseq
    %v3091 = vshrl.u32 %v3090, 7
    %v3092 = vsub.s32 %v3089, %v3091
    %v3093 = vrot.slane %v3039, %v3092
    %v3095 = vunpack.c.l.s4 1983009808
    %v3096 = vunpack.c.0.s8 %v3095
    %v3097 = vlaneseq
    %v3098 = vshrl.u32 %v3097, 7
    %v3099 = vsub.s32 %v3096, %v3098
    %v3100 = vrot.slane %v3040, %v3099
    %v3102 = vunpack.c.l.s4 1983009808
    %v3103 = vunpack.c.0.s8 %v3102
    %v3104 = vlaneseq
    %v3105 = vshrl.u32 %v3104, 7
    %v3106 = vsub.s32 %v3103, %v3105
    %v3107 = vrot.slane %v3041, %v3106
    %v3109 = vunpack.c.l.s4 1983009808
    %v3110 = vunpack.c.0.s8 %v3109
    %v3111 = vlaneseq
    %v3112 = vshrl.u32 %v3111, 7
    %v3113 = vsub.s32 %v3110, %v3112
    %v3114 = vrot.slane %v3042, %v3113
    %3115 = vrot.lane.b32.xlu0 %v3065, 96
    %v3116 = vpop.permute.xlu0 %3115
    %3117 = vrot.lane.b32.xlu0 %v3072, 96
    %v3118 = vpop.permute.xlu0 %3117
    %3119 = vrot.lane.b32.xlu0 %v3079, 96
    %v3120 = vpop.permute.xlu0 %3119
    %3121 = vrot.lane.b32.xlu0 %v3086, 96
    %v3122 = vpop.permute.xlu0 %3121
    %3123 = vrot.lane.b32.xlu0 %v3093, 96
    %v3124 = vpop.permute.xlu0 %3123
    %3125 = vrot.lane.b32.xlu0 %v3100, 96
    %v3126 = vpop.permute.xlu0 %3125
    %3127 = vrot.lane.b32.xlu0 %v3107, 96
    %v3128 = vpop.permute.xlu0 %3127
    %3129 = vrot.lane.b32.xlu0 %v3114, 96
    %v3130 = vpop.permute.xlu0 %3129
    %s3139 = scalar_lea.vmem [#allocation4], 16
    %3140 = vst.msk [vmem:[%s3139] sm:$0x3] %vm383, %v3116
    %3141 = vst.msk [vmem:[%s3139 + $0x2] sm:$0x3] %vm383, %v3118
    %3142 = vst.msk [vmem:[%s3139 + $0x4] sm:$0x3] %vm383, %v3120
    %3143 = vst.msk [vmem:[%s3139 + $0x6] sm:$0x3] %vm383, %v3122
    %3144 = vst.msk [vmem:[%s3139 + $0x8] sm:$0x3] %vm383, %v3124
    %3145 = vst.msk [vmem:[%s3139 + $0xa] sm:$0x3] %vm383, %v3126
    %3146 = vst.msk [vmem:[%s3139 + $0xc] sm:$0x3] %vm383, %v3128
    %3147 = vst.msk [vmem:[%s3139 + $0xe] sm:$0x3] %vm383, %v3130
    %3148 = vrot.lane.b32.xlu0 %v3065, 64
    %v3149 = vpop.permute.xlu0 %3148
    %3150 = vrot.lane.b32.xlu0 %v3072, 64
    %v3151 = vpop.permute.xlu0 %3150
    %3152 = vrot.lane.b32.xlu0 %v3079, 64
    %v3153 = vpop.permute.xlu0 %3152
    %3154 = vrot.lane.b32.xlu0 %v3086, 64
    %v3155 = vpop.permute.xlu0 %3154
    %3156 = vrot.lane.b32.xlu0 %v3093, 64
    %v3157 = vpop.permute.xlu0 %3156
    %3158 = vrot.lane.b32.xlu0 %v3100, 64
    %v3159 = vpop.permute.xlu0 %3158
    %3160 = vrot.lane.b32.xlu0 %v3107, 64
    %v3161 = vpop.permute.xlu0 %3160
    %3162 = vrot.lane.b32.xlu0 %v3114, 64
    %v3163 = vpop.permute.xlu0 %3162
    %s3172 = scalar_lea.vmem [#allocation4], 32
    %3173 = vst.msk [vmem:[%s3172] sm:$0x3] %vm383, %v3149
    %3174 = vst.msk [vmem:[%s3172 + $0x2] sm:$0x3] %vm383, %v3151
    %3175 = vst.msk [vmem:[%s3172 + $0x4] sm:$0x3] %vm383, %v3153
    %3176 = vst.msk [vmem:[%s3172 + $0x6] sm:$0x3] %vm383, %v3155
    %3177 = vst.msk [vmem:[%s3172 + $0x8] sm:$0x3] %vm383, %v3157
    %3178 = vst.msk [vmem:[%s3172 + $0xa] sm:$0x3] %vm383, %v3159
    %3179 = vst.msk [vmem:[%s3172 + $0xc] sm:$0x3] %vm383, %v3161
    %3180 = vst.msk [vmem:[%s3172 + $0xe] sm:$0x3] %vm383, %v3163
    %v3181 = vld [vmem:[#allocation4] sm:$0x3]
    %v3182 = vld [vmem:[%s3139] sm:$0x3]
    %v3183 = vld [vmem:[%s3172] sm:$0x3]
    %3184 = vmatprep.subr.mxu0 0.0
    %3185 = vmatpush1.msra.mxu0 %v652
    %3186 = vmatprep.subr.mxu0 0.0
    %3187 = vmatpush1.msra.mxu0 %v653
    %3188 = vmatprep.subr.mxu0 0.0
    %3189 = vmatpush1.msra.mxu0 %v654
    %3190 = vmatprep.subr.mxu0 0.0
    %3191 = vmatpush1.msra.mxu0 %v655
    %3192 = vmatprep.subr.mxu0 0.0
    %3193 = vmatpush1.msra.mxu0 0.0
    %3194 = vmatprep.subr.mxu0 0.0
    %3195 = vmatpush1.msra.mxu0 0.0
    %3196 = vmatprep.subr.mxu0 0.0
    %3197 = vmatpush1.msra.mxu0 0.0
    %3198 = vmatprep.subr.mxu0 0.0
    %3199 = vmatpush1.msra.mxu0 0.0
    %3200 = vmatprep.subr.mxu0 0.0
    %3201 = vmatpush1.msra.mxu0 0.0
    %3202 = vmatprep.subr.mxu0 0.0
    %3203 = vmatpush1.msra.mxu0 0.0
    %3204 = vmatprep.subr.mxu0 0.0
    %3205 = vmatpush1.msra.mxu0 0.0
    %3206 = vmatprep.subr.mxu0 0.0
    %3207 = vmatpush1.msra.mxu0 0.0
    %3208 = vmatprep.subr.mxu0 0.0
    %3209 = vmatpush1.msra.mxu0 0.0
    %3210 = vmatprep.subr.mxu0 0.0
    %3211 = vmatpush1.msra.mxu0 0.0
    %3212 = vmatprep.subr.mxu0 0.0
    %3213 = vmatpush1.msra.mxu0 0.0
    %3214 = vmatprep.subr.mxu0 0.0
    %3215 = vmatpush1.msra.mxu0 0.0
    %3216 = vmatprep.subr.mxu0 0.0
    %3217 = vmatpush1.msra.mxu0 0.0
    %3218 = vmatprep.subr.mxu0 0.0
    %3219 = vmatpush1.msra.mxu0 0.0
    %3220 = vmatprep.subr.mxu0 0.0
    %3221 = vmatpush1.msra.mxu0 0.0
    %3222 = vmatprep.subr.mxu0 0.0
    %3223 = vmatpush1.msra.mxu0 0.0
    %3224 = vmatprep.subr.mxu0 0.0
    %3225 = vmatpush1.msra.mxu0 0.0
    %3226 = vmatprep.subr.mxu0 0.0
    %3227 = vmatpush1.msra.mxu0 0.0
    %3228 = vmatprep.subr.mxu0 0.0
    %3229 = vmatpush1.msra.mxu0 0.0
    %3230 = vmatprep.subr.mxu0 0.0
    %3231 = vmatpush1.msra.mxu0 0.0
    %3232 = vmatprep.subr.mxu0 0.0
    %3233 = vmatpush1.msra.mxu0 0.0
    %3234 = vmatprep.subr.mxu0 0.0
    %3235 = vmatpush1.msra.mxu0 0.0
    %3236 = vmatprep.subr.mxu0 0.0
    %3237 = vmatpush1.msra.mxu0 0.0
    %3238 = vmatprep.subr.mxu0 0.0
    %3239 = vmatpush1.msra.mxu0 0.0
    %3240 = vmatprep.subr.mxu0 0.0
    %3241 = vmatpush1.msra.mxu0 0.0
    %3242 = vmatprep.subr.mxu0 0.0
    %3243 = vmatpush1.msra.mxu0 0.0
    %3244 = vmatprep.subr.mxu0 0.0
    %3245 = vmatpush1.msra.mxu0 0.0
    %3246 = vmatprep.subr.mxu0 0.0
    %3247 = vmatpush1.msra.mxu0 0.0
    %3248 = vmatprep.mubr.f32.mxu0 0.0
    %3249 = vmatmul.mubr.f32.gmra.mrb[0].mxu0 %v2616
    %v3250 = vpop.f32.mrb[0].mxu0
    %v3251 = vadd.f32 %v675, %v3250
    %v3252 = vpop.f32.mrb[0].mxu0
    %3253 = vdwg.mxu0
    %v3254 = vadd.f32 %v3181, %v3251
    %v3255 = vxor.u32 %v3254, 2147483648
    %v3256 = vmul.f32 %v3255, 1.442695
    %v3257 = vpow.pop %v3256
    %v3258 = vadd.f32 %v3257, 1.0
    %v3259 = vrcp.pop %v3258
    %v3260 = vmul.f32 1.0, %v3259
    %3262 = vrot.lane.b32.xlu0 %v3251, 96
    %v3263 = vpop.permute.xlu0 %3262
    %v3265 = vadd.f32 %v3182, %v3263
    %v3266 = vxor.u32 %v3265, 2147483648
    %v3267 = vmul.f32 %v3266, 1.442695
    %v3268 = vpow.pop %v3267
    %v3269 = vadd.f32 %v3268, 1.0
    %v3270 = vrcp.pop %v3269
    %v3271 = vmul.f32 1.0, %v3270
    %3272 = vrot.lane.b32.xlu0 %v3251, 64
    %v3273 = vpop.permute.xlu0 %3272
    %v3275 = vmul.f32 %v3260, %v3273
    %v3276 = vadd.f32 %v3183, %v3275
    %v3277 = vtanh.pop %v3276
    %v3278 = vsub.f32 1.0, %v3271
    %v3279 = vmul.f32 %v3278, %v3277
    %v3280 = vmul.f32 %v3271, %v2410
    %v3281 = vadd.f32 %v3279, %v3280
    %3282 = vst.msk [vmem:[#allocation8] sm:$0x3] %vm383, %v3281
    %s3283 = scalar_lea.vmem [#allocation4], 2
    %v3284 = vld [vmem:[%s3283] sm:$0x3]
    %s3285 = scalar_lea.vmem [#allocation4], 18
    %v3286 = vld [vmem:[%s3285] sm:$0x3]
    %s3287 = scalar_lea.vmem [#allocation4], 34
    %v3288 = vld [vmem:[%s3287] sm:$0x3]
    %v3290 = vsel %vm129, %v3281, 0
    %3292 = vmatprep.subr.mxu0 0.0
    %3293 = vmatpush1.msra.mxu0 %v652
    %3294 = vmatprep.subr.mxu0 0.0
    %3295 = vmatpush1.msra.mxu0 %v653
    %3296 = vmatprep.subr.mxu0 0.0
    %3297 = vmatpush1.msra.mxu0 %v654
    %3298 = vmatprep.subr.mxu0 0.0
    %3299 = vmatpush1.msra.mxu0 %v655
    %3300 = vmatprep.subr.mxu0 0.0
    %3301 = vmatpush1.msra.mxu0 0.0
    %3302 = vmatprep.subr.mxu0 0.0
    %3303 = vmatpush1.msra.mxu0 0.0
    %3304 = vmatprep.subr.mxu0 0.0
    %3305 = vmatpush1.msra.mxu0 0.0
    %3306 = vmatprep.subr.mxu0 0.0
    %3307 = vmatpush1.msra.mxu0 0.0
    %3308 = vmatprep.subr.mxu0 0.0
    %3309 = vmatpush1.msra.mxu0 0.0
    %3310 = vmatprep.subr.mxu0 0.0
    %3311 = vmatpush1.msra.mxu0 0.0
    %3312 = vmatprep.subr.mxu0 0.0
    %3313 = vmatpush1.msra.mxu0 0.0
    %3314 = vmatprep.subr.mxu0 0.0
    %3315 = vmatpush1.msra.mxu0 0.0
    %3316 = vmatprep.subr.mxu0 0.0
    %3317 = vmatpush1.msra.mxu0 0.0
    %3318 = vmatprep.subr.mxu0 0.0
    %3319 = vmatpush1.msra.mxu0 0.0
    %3320 = vmatprep.subr.mxu0 0.0
    %3321 = vmatpush1.msra.mxu0 0.0
    %3322 = vmatprep.subr.mxu0 0.0
    %3323 = vmatpush1.msra.mxu0 0.0
    %3324 = vmatprep.subr.mxu0 0.0
    %3325 = vmatpush1.msra.mxu0 0.0
    %3326 = vmatprep.subr.mxu0 0.0
    %3327 = vmatpush1.msra.mxu0 0.0
    %3328 = vmatprep.subr.mxu0 0.0
    %3329 = vmatpush1.msra.mxu0 0.0
    %3330 = vmatprep.subr.mxu0 0.0
    %3331 = vmatpush1.msra.mxu0 0.0
    %3332 = vmatprep.subr.mxu0 0.0
    %3333 = vmatpush1.msra.mxu0 0.0
    %3334 = vmatprep.subr.mxu0 0.0
    %3335 = vmatpush1.msra.mxu0 0.0
    %3336 = vmatprep.subr.mxu0 0.0
    %3337 = vmatpush1.msra.mxu0 0.0
    %3338 = vmatprep.subr.mxu0 0.0
    %3339 = vmatpush1.msra.mxu0 0.0
    %3340 = vmatprep.subr.mxu0 0.0
    %3341 = vmatpush1.msra.mxu0 0.0
    %3342 = vmatprep.subr.mxu0 0.0
    %3343 = vmatpush1.msra.mxu0 0.0
    %3344 = vmatprep.subr.mxu0 0.0
    %3345 = vmatpush1.msra.mxu0 0.0
    %3346 = vmatprep.subr.mxu0 0.0
    %3347 = vmatpush1.msra.mxu0 0.0
    %3348 = vmatprep.subr.mxu0 0.0
    %3349 = vmatpush1.msra.mxu0 0.0
    %3350 = vmatprep.subr.mxu0 0.0
    %3351 = vmatpush1.msra.mxu0 0.0
    %3352 = vmatprep.subr.mxu0 0.0
    %3353 = vmatpush1.msra.mxu0 0.0
    %3354 = vmatprep.subr.mxu0 0.0
    %3355 = vmatpush1.msra.mxu0 0.0
    %3356 = vmatprep.mubr.f32.mxu0 0.0
    %3357 = vmatmul.mubr.f32.gmra.mrb[0].mxu0 %v3290
    %v3358 = vpop.f32.mrb[0].mxu0
    %v3359 = vadd.f32 %v675, %v3358
    %v3360 = vpop.f32.mrb[0].mxu0
    %3361 = vdwg.mxu0
    %v3362 = vadd.f32 %v3284, %v3359
    %v3363 = vxor.u32 %v3362, 2147483648
    %v3364 = vmul.f32 %v3363, 1.442695
    %v3365 = vpow.pop %v3364
    %v3366 = vadd.f32 %v3365, 1.0
    %v3367 = vrcp.pop %v3366
    %v3368 = vmul.f32 1.0, %v3367
    %3370 = vrot.lane.b32.xlu0 %v3359, 96
    %v3371 = vpop.permute.xlu0 %3370
    %v3373 = vadd.f32 %v3286, %v3371
    %v3374 = vxor.u32 %v3373, 2147483648
    %v3375 = vmul.f32 %v3374, 1.442695
    %v3376 = vpow.pop %v3375
    %v3377 = vadd.f32 %v3376, 1.0
    %v3378 = vrcp.pop %v3377
    %v3379 = vmul.f32 1.0, %v3378
    %3380 = vrot.lane.b32.xlu0 %v3359, 64
    %v3381 = vpop.permute.xlu0 %3380
    %v3383 = vmul.f32 %v3368, %v3381
    %v3384 = vadd.f32 %v3288, %v3383
    %v3385 = vtanh.pop %v3384
    %v3386 = vsub.f32 1.0, %v3379
    %v3387 = vmul.f32 %v3386, %v3385
    %v3388 = vmul.f32 %v3379, %v3281
    %v3389 = vadd.f32 %v3387, %v3388
    %s3390 = scalar_lea.vmem [#allocation4], 4
    %v3391 = vld [vmem:[%s3390] sm:$0x3]
    %s3392 = scalar_lea.vmem [#allocation4], 20
    %v3393 = vld [vmem:[%s3392] sm:$0x3]
    %s3394 = scalar_lea.vmem [#allocation4], 36
    %v3395 = vld [vmem:[%s3394] sm:$0x3]
    %v3397 = vsel %vm129, %v3389, 0
    %3399 = vmatprep.subr.mxu0 0.0
    %3400 = vmatpush1.msra.mxu0 %v652
    %3401 = vmatprep.subr.mxu0 0.0
    %3402 = vmatpush1.msra.mxu0 %v653
    %3403 = vmatprep.subr.mxu0 0.0
    %3404 = vmatpush1.msra.mxu0 %v654
    %3405 = vmatprep.subr.mxu0 0.0
    %3406 = vmatpush1.msra.mxu0 %v655
    %3407 = vmatprep.subr.mxu0 0.0
    %3408 = vmatpush1.msra.mxu0 0.0
    %3409 = vmatprep.subr.mxu0 0.0
    %3410 = vmatpush1.msra.mxu0 0.0
    %3411 = vmatprep.subr.mxu0 0.0
    %3412 = vmatpush1.msra.mxu0 0.0
    %3413 = vmatprep.subr.mxu0 0.0
    %3414 = vmatpush1.msra.mxu0 0.0
    %3415 = vmatprep.subr.mxu0 0.0
    %3416 = vmatpush1.msra.mxu0 0.0
    %3417 = vmatprep.subr.mxu0 0.0
    %3418 = vmatpush1.msra.mxu0 0.0
    %3419 = vmatprep.subr.mxu0 0.0
    %3420 = vmatpush1.msra.mxu0 0.0
    %3421 = vmatprep.subr.mxu0 0.0
    %3422 = vmatpush1.msra.mxu0 0.0
    %3423 = vmatprep.subr.mxu0 0.0
    %3424 = vmatpush1.msra.mxu0 0.0
    %3425 = vmatprep.subr.mxu0 0.0
    %3426 = vmatpush1.msra.mxu0 0.0
    %3427 = vmatprep.subr.mxu0 0.0
    %3428 = vmatpush1.msra.mxu0 0.0
    %3429 = vmatprep.subr.mxu0 0.0
    %3430 = vmatpush1.msra.mxu0 0.0
    %3431 = vmatprep.subr.mxu0 0.0
    %3432 = vmatpush1.msra.mxu0 0.0
    %3433 = vmatprep.subr.mxu0 0.0
    %3434 = vmatpush1.msra.mxu0 0.0
    %3435 = vmatprep.subr.mxu0 0.0
    %3436 = vmatpush1.msra.mxu0 0.0
    %3437 = vmatprep.subr.mxu0 0.0
    %3438 = vmatpush1.msra.mxu0 0.0
    %3439 = vmatprep.subr.mxu0 0.0
    %3440 = vmatpush1.msra.mxu0 0.0
    %3441 = vmatprep.subr.mxu0 0.0
    %3442 = vmatpush1.msra.mxu0 0.0
    %3443 = vmatprep.subr.mxu0 0.0
    %3444 = vmatpush1.msra.mxu0 0.0
    %3445 = vmatprep.subr.mxu0 0.0
    %3446 = vmatpush1.msra.mxu0 0.0
    %3447 = vmatprep.subr.mxu0 0.0
    %3448 = vmatpush1.msra.mxu0 0.0
    %3449 = vmatprep.subr.mxu0 0.0
    %3450 = vmatpush1.msra.mxu0 0.0
    %3451 = vmatprep.subr.mxu0 0.0
    %3452 = vmatpush1.msra.mxu0 0.0
    %3453 = vmatprep.subr.mxu0 0.0
    %3454 = vmatpush1.msra.mxu0 0.0
    %3455 = vmatprep.subr.mxu0 0.0
    %3456 = vmatpush1.msra.mxu0 0.0
    %3457 = vmatprep.subr.mxu0 0.0
    %3458 = vmatpush1.msra.mxu0 0.0
    %3459 = vmatprep.subr.mxu0 0.0
    %3460 = vmatpush1.msra.mxu0 0.0
    %3461 = vmatprep.subr.mxu0 0.0
    %3462 = vmatpush1.msra.mxu0 0.0
    %3463 = vmatprep.mubr.f32.mxu0 0.0
    %3464 = vmatmul.mubr.f32.gmra.mrb[0].mxu0 %v3397
    %v3465 = vpop.f32.mrb[0].mxu0
    %v3466 = vadd.f32 %v675, %v3465
    %v3467 = vpop.f32.mrb[0].mxu0
    %3468 = vdwg.mxu0
    %v3469 = vadd.f32 %v3391, %v3466
    %v3470 = vxor.u32 %v3469, 2147483648
    %v3471 = vmul.f32 %v3470, 1.442695
    %v3472 = vpow.pop %v3471
    %v3473 = vadd.f32 %v3472, 1.0
    %v3474 = vrcp.pop %v3473
    %v3475 = vmul.f32 1.0, %v3474
    %3477 = vrot.lane.b32.xlu0 %v3466, 96
    %v3478 = vpop.permute.xlu0 %3477
    %v3480 = vadd.f32 %v3393, %v3478
    %v3481 = vxor.u32 %v3480, 2147483648
    %v3482 = vmul.f32 %v3481, 1.442695
    %v3483 = vpow.pop %v3482
    %v3484 = vadd.f32 %v3483, 1.0
    %v3485 = vrcp.pop %v3484
    %v3486 = vmul.f32 1.0, %v3485
    %3487 = vrot.lane.b32.xlu0 %v3466, 64
    %v3488 = vpop.permute.xlu0 %3487
    %v3490 = vmul.f32 %v3475, %v3488
    %v3491 = vadd.f32 %v3395, %v3490
    %v3492 = vtanh.pop %v3491
    %v3493 = vsub.f32 1.0, %v3486
    %v3494 = vmul.f32 %v3493, %v3492
    %v3495 = vmul.f32 %v3486, %v3389
    %v3496 = vadd.f32 %v3494, %v3495
    %s3497 = scalar_lea.vmem [#allocation4], 6
    %v3498 = vld [vmem:[%s3497] sm:$0x3]
    %s3499 = scalar_lea.vmem [#allocation4], 22
    %v3500 = vld [vmem:[%s3499] sm:$0x3]
    %s3501 = scalar_lea.vmem [#allocation4], 38
    %v3502 = vld [vmem:[%s3501] sm:$0x3]
    %v3504 = vsel %vm129, %v3496, 0
    %3506 = vmatprep.subr.mxu0 0.0
    %3507 = vmatpush1.msra.mxu0 %v652
    %3508 = vmatprep.subr.mxu0 0.0
    %3509 = vmatpush1.msra.mxu0 %v653
    %3510 = vmatprep.subr.mxu0 0.0
    %3511 = vmatpush1.msra.mxu0 %v654
    %3512 = vmatprep.subr.mxu0 0.0
    %3513 = vmatpush1.msra.mxu0 %v655
    %3514 = vmatprep.subr.mxu0 0.0
    %3515 = vmatpush1.msra.mxu0 0.0
    %3516 = vmatprep.subr.mxu0 0.0
    %3517 = vmatpush1.msra.mxu0 0.0
    %3518 = vmatprep.subr.mxu0 0.0
    %3519 = vmatpush1.msra.mxu0 0.0
    %3520 = vmatprep.subr.mxu0 0.0
    %3521 = vmatpush1.msra.mxu0 0.0
    %3522 = vmatprep.subr.mxu0 0.0
    %3523 = vmatpush1.msra.mxu0 0.0
    %3524 = vmatprep.subr.mxu0 0.0
    %3525 = vmatpush1.msra.mxu0 0.0
    %3526 = vmatprep.subr.mxu0 0.0
    %3527 = vmatpush1.msra.mxu0 0.0
    %3528 = vmatprep.subr.mxu0 0.0
    %3529 = vmatpush1.msra.mxu0 0.0
    %3530 = vmatprep.subr.mxu0 0.0
    %3531 = vmatpush1.msra.mxu0 0.0
    %3532 = vmatprep.subr.mxu0 0.0
    %3533 = vmatpush1.msra.mxu0 0.0
    %3534 = vmatprep.subr.mxu0 0.0
    %3535 = vmatpush1.msra.mxu0 0.0
    %3536 = vmatprep.subr.mxu0 0.0
    %3537 = vmatpush1.msra.mxu0 0.0
    %3538 = vmatprep.subr.mxu0 0.0
    %3539 = vmatpush1.msra.mxu0 0.0
    %3540 = vmatprep.subr.mxu0 0.0
    %3541 = vmatpush1.msra.mxu0 0.0
    %3542 = vmatprep.subr.mxu0 0.0
    %3543 = vmatpush1.msra.mxu0 0.0
    %3544 = vmatprep.subr.mxu0 0.0
    %3545 = vmatpush1.msra.mxu0 0.0
    %3546 = vmatprep.subr.mxu0 0.0
    %3547 = vmatpush1.msra.mxu0 0.0
    %3548 = vmatprep.subr.mxu0 0.0
    %3549 = vmatpush1.msra.mxu0 0.0
    %3550 = vmatprep.subr.mxu0 0.0
    %3551 = vmatpush1.msra.mxu0 0.0
    %3552 = vmatprep.subr.mxu0 0.0
    %3553 = vmatpush1.msra.mxu0 0.0
    %3554 = vmatprep.subr.mxu0 0.0
    %3555 = vmatpush1.msra.mxu0 0.0
    %3556 = vmatprep.subr.mxu0 0.0
    %3557 = vmatpush1.msra.mxu0 0.0
    %3558 = vmatprep.subr.mxu0 0.0
    %3559 = vmatpush1.msra.mxu0 0.0
    %3560 = vmatprep.subr.mxu0 0.0
    %3561 = vmatpush1.msra.mxu0 0.0
    %3562 = vmatprep.subr.mxu0 0.0
    %3563 = vmatpush1.msra.mxu0 0.0
    %3564 = vmatprep.subr.mxu0 0.0
    %3565 = vmatpush1.msra.mxu0 0.0
    %3566 = vmatprep.subr.mxu0 0.0
    %3567 = vmatpush1.msra.mxu0 0.0
    %3568 = vmatprep.subr.mxu0 0.0
    %3569 = vmatpush1.msra.mxu0 0.0
    %3570 = vmatprep.mubr.f32.mxu0 0.0
    %3571 = vmatmul.mubr.f32.gmra.mrb[0].mxu0 %v3504
    %v3572 = vpop.f32.mrb[0].mxu0
    %v3573 = vadd.f32 %v675, %v3572
    %v3574 = vpop.f32.mrb[0].mxu0
    %3575 = vdwg.mxu0
    %v3576 = vadd.f32 %v3498, %v3573
    %v3577 = vxor.u32 %v3576, 2147483648
    %v3578 = vmul.f32 %v3577, 1.442695
    %v3579 = vpow.pop %v3578
    %v3580 = vadd.f32 %v3579, 1.0
    %v3581 = vrcp.pop %v3580
    %v3582 = vmul.f32 1.0, %v3581
    %3584 = vrot.lane.b32.xlu0 %v3573, 96
    %v3585 = vpop.permute.xlu0 %3584
    %v3587 = vadd.f32 %v3500, %v3585
    %v3588 = vxor.u32 %v3587, 2147483648
    %v3589 = vmul.f32 %v3588, 1.442695
    %v3590 = vpow.pop %v3589
    %v3591 = vadd.f32 %v3590, 1.0
    %v3592 = vrcp.pop %v3591
    %v3593 = vmul.f32 1.0, %v3592
    %3594 = vrot.lane.b32.xlu0 %v3573, 64
    %v3595 = vpop.permute.xlu0 %3594
    %v3597 = vmul.f32 %v3582, %v3595
    %v3598 = vadd.f32 %v3502, %v3597
    %v3599 = vtanh.pop %v3598
    %v3600 = vsub.f32 1.0, %v3593
    %v3601 = vmul.f32 %v3600, %v3599
    %v3602 = vmul.f32 %v3593, %v3496
    %v3603 = vadd.f32 %v3601, %v3602
    %s3604 = scalar_lea.vmem [#allocation4], 8
    %v3605 = vld [vmem:[%s3604] sm:$0x3]
    %s3606 = scalar_lea.vmem [#allocation4], 24
    %v3607 = vld [vmem:[%s3606] sm:$0x3]
    %s3608 = scalar_lea.vmem [#allocation4], 40
    %v3609 = vld [vmem:[%s3608] sm:$0x3]
    %v3611 = vsel %vm129, %v3603, 0
    %3613 = vmatprep.subr.mxu0 0.0
    %3614 = vmatpush1.msra.mxu0 %v652
    %3615 = vmatprep.subr.mxu0 0.0
    %3616 = vmatpush1.msra.mxu0 %v653
    %3617 = vmatprep.subr.mxu0 0.0
    %3618 = vmatpush1.msra.mxu0 %v654
    %3619 = vmatprep.subr.mxu0 0.0
    %3620 = vmatpush1.msra.mxu0 %v655
    %3621 = vmatprep.subr.mxu0 0.0
    %3622 = vmatpush1.msra.mxu0 0.0
    %3623 = vmatprep.subr.mxu0 0.0
    %3624 = vmatpush1.msra.mxu0 0.0
    %3625 = vmatprep.subr.mxu0 0.0
    %3626 = vmatpush1.msra.mxu0 0.0
    %3627 = vmatprep.subr.mxu0 0.0
    %3628 = vmatpush1.msra.mxu0 0.0
    %3629 = vmatprep.subr.mxu0 0.0
    %3630 = vmatpush1.msra.mxu0 0.0
    %3631 = vmatprep.subr.mxu0 0.0
    %3632 = vmatpush1.msra.mxu0 0.0
    %3633 = vmatprep.subr.mxu0 0.0
    %3634 = vmatpush1.msra.mxu0 0.0
    %3635 = vmatprep.subr.mxu0 0.0
    %3636 = vmatpush1.msra.mxu0 0.0
    %3637 = vmatprep.subr.mxu0 0.0
    %3638 = vmatpush1.msra.mxu0 0.0
    %3639 = vmatprep.subr.mxu0 0.0
    %3640 = vmatpush1.msra.mxu0 0.0
    %3641 = vmatprep.subr.mxu0 0.0
    %3642 = vmatpush1.msra.mxu0 0.0
    %3643 = vmatprep.subr.mxu0 0.0
    %3644 = vmatpush1.msra.mxu0 0.0
    %3645 = vmatprep.subr.mxu0 0.0
    %3646 = vmatpush1.msra.mxu0 0.0
    %3647 = vmatprep.subr.mxu0 0.0
    %3648 = vmatpush1.msra.mxu0 0.0
    %3649 = vmatprep.subr.mxu0 0.0
    %3650 = vmatpush1.msra.mxu0 0.0
    %3651 = vmatprep.subr.mxu0 0.0
    %3652 = vmatpush1.msra.mxu0 0.0
    %3653 = vmatprep.subr.mxu0 0.0
    %3654 = vmatpush1.msra.mxu0 0.0
    %3655 = vmatprep.subr.mxu0 0.0
    %3656 = vmatpush1.msra.mxu0 0.0
    %3657 = vmatprep.subr.mxu0 0.0
    %3658 = vmatpush1.msra.mxu0 0.0
    %3659 = vmatprep.subr.mxu0 0.0
    %3660 = vmatpush1.msra.mxu0 0.0
    %3661 = vmatprep.subr.mxu0 0.0
    %3662 = vmatpush1.msra.mxu0 0.0
    %3663 = vmatprep.subr.mxu0 0.0
    %3664 = vmatpush1.msra.mxu0 0.0
    %3665 = vmatprep.subr.mxu0 0.0
    %3666 = vmatpush1.msra.mxu0 0.0
    %3667 = vmatprep.subr.mxu0 0.0
    %3668 = vmatpush1.msra.mxu0 0.0
    %3669 = vmatprep.subr.mxu0 0.0
    %3670 = vmatpush1.msra.mxu0 0.0
    %3671 = vmatprep.subr.mxu0 0.0
    %3672 = vmatpush1.msra.mxu0 0.0
    %3673 = vmatprep.subr.mxu0 0.0
    %3674 = vmatpush1.msra.mxu0 0.0
    %3675 = vmatprep.subr.mxu0 0.0
    %3676 = vmatpush1.msra.mxu0 0.0
    %3677 = vmatprep.mubr.f32.mxu0 0.0
    %3678 = vmatmul.mubr.f32.gmra.mrb[0].mxu0 %v3611
    %v3679 = vpop.f32.mrb[0].mxu0
    %v3680 = vadd.f32 %v675, %v3679
    %v3681 = vpop.f32.mrb[0].mxu0
    %3682 = vdwg.mxu0
    %v3683 = vadd.f32 %v3605, %v3680
    %v3684 = vxor.u32 %v3683, 2147483648
    %v3685 = vmul.f32 %v3684, 1.442695
    %v3686 = vpow.pop %v3685
    %v3687 = vadd.f32 %v3686, 1.0
    %v3688 = vrcp.pop %v3687
    %v3689 = vmul.f32 1.0, %v3688
    %3691 = vrot.lane.b32.xlu0 %v3680, 96
    %v3692 = vpop.permute.xlu0 %3691
    %v3694 = vadd.f32 %v3607, %v3692
    %v3695 = vxor.u32 %v3694, 2147483648
    %v3696 = vmul.f32 %v3695, 1.442695
    %v3697 = vpow.pop %v3696
    %v3698 = vadd.f32 %v3697, 1.0
    %v3699 = vrcp.pop %v3698
    %v3700 = vmul.f32 1.0, %v3699
    %3701 = vrot.lane.b32.xlu0 %v3680, 64
    %v3702 = vpop.permute.xlu0 %3701
    %v3704 = vmul.f32 %v3689, %v3702
    %v3705 = vadd.f32 %v3609, %v3704
    %v3706 = vtanh.pop %v3705
    %v3707 = vsub.f32 1.0, %v3700
    %v3708 = vmul.f32 %v3707, %v3706
    %v3709 = vmul.f32 %v3700, %v3603
    %v3710 = vadd.f32 %v3708, %v3709
    %s3711 = scalar_lea.vmem [#allocation4], 10
    %v3712 = vld [vmem:[%s3711] sm:$0x3]
    %s3713 = scalar_lea.vmem [#allocation4], 26
    %v3714 = vld [vmem:[%s3713] sm:$0x3]
    %s3715 = scalar_lea.vmem [#allocation4], 42
    %v3716 = vld [vmem:[%s3715] sm:$0x3]
    %v3718 = vsel %vm129, %v3710, 0
    %3720 = vmatprep.subr.mxu0 0.0
    %3721 = vmatpush1.msra.mxu0 %v652
    %3722 = vmatprep.subr.mxu0 0.0
    %3723 = vmatpush1.msra.mxu0 %v653
    %3724 = vmatprep.subr.mxu0 0.0
    %3725 = vmatpush1.msra.mxu0 %v654
    %3726 = vmatprep.subr.mxu0 0.0
    %3727 = vmatpush1.msra.mxu0 %v655
    %3728 = vmatprep.subr.mxu0 0.0
    %3729 = vmatpush1.msra.mxu0 0.0
    %3730 = vmatprep.subr.mxu0 0.0
    %3731 = vmatpush1.msra.mxu0 0.0
    %3732 = vmatprep.subr.mxu0 0.0
    %3733 = vmatpush1.msra.mxu0 0.0
    %3734 = vmatprep.subr.mxu0 0.0
    %3735 = vmatpush1.msra.mxu0 0.0
    %3736 = vmatprep.subr.mxu0 0.0
    %3737 = vmatpush1.msra.mxu0 0.0
    %3738 = vmatprep.subr.mxu0 0.0
    %3739 = vmatpush1.msra.mxu0 0.0
    %3740 = vmatprep.subr.mxu0 0.0
    %3741 = vmatpush1.msra.mxu0 0.0
    %3742 = vmatprep.subr.mxu0 0.0
    %3743 = vmatpush1.msra.mxu0 0.0
    %3744 = vmatprep.subr.mxu0 0.0
    %3745 = vmatpush1.msra.mxu0 0.0
    %3746 = vmatprep.subr.mxu0 0.0
    %3747 = vmatpush1.msra.mxu0 0.0
    %3748 = vmatprep.subr.mxu0 0.0
    %3749 = vmatpush1.msra.mxu0 0.0
    %3750 = vmatprep.subr.mxu0 0.0
    %3751 = vmatpush1.msra.mxu0 0.0
    %3752 = vmatprep.subr.mxu0 0.0
    %3753 = vmatpush1.msra.mxu0 0.0
    %3754 = vmatprep.subr.mxu0 0.0
    %3755 = vmatpush1.msra.mxu0 0.0
    %3756 = vmatprep.subr.mxu0 0.0
    %3757 = vmatpush1.msra.mxu0 0.0
    %3758 = vmatprep.subr.mxu0 0.0
    %3759 = vmatpush1.msra.mxu0 0.0
    %3760 = vmatprep.subr.mxu0 0.0
    %3761 = vmatpush1.msra.mxu0 0.0
    %3762 = vmatprep.subr.mxu0 0.0
    %3763 = vmatpush1.msra.mxu0 0.0
    %3764 = vmatprep.subr.mxu0 0.0
    %3765 = vmatpush1.msra.mxu0 0.0
    %3766 = vmatprep.subr.mxu0 0.0
    %3767 = vmatpush1.msra.mxu0 0.0
    %3768 = vmatprep.subr.mxu0 0.0
    %3769 = vmatpush1.msra.mxu0 0.0
    %3770 = vmatprep.subr.mxu0 0.0
    %3771 = vmatpush1.msra.mxu0 0.0
    %3772 = vmatprep.subr.mxu0 0.0
    %3773 = vmatpush1.msra.mxu0 0.0
    %3774 = vmatprep.subr.mxu0 0.0
    %3775 = vmatpush1.msra.mxu0 0.0
    %3776 = vmatprep.subr.mxu0 0.0
    %3777 = vmatpush1.msra.mxu0 0.0
    %3778 = vmatprep.subr.mxu0 0.0
    %3779 = vmatpush1.msra.mxu0 0.0
    %3780 = vmatprep.subr.mxu0 0.0
    %3781 = vmatpush1.msra.mxu0 0.0
    %3782 = vmatprep.subr.mxu0 0.0
    %3783 = vmatpush1.msra.mxu0 0.0
    %3784 = vmatprep.mubr.f32.mxu0 0.0
    %3785 = vmatmul.mubr.f32.gmra.mrb[0].mxu0 %v3718
    %v3786 = vpop.f32.mrb[0].mxu0
    %v3787 = vadd.f32 %v675, %v3786
    %v3788 = vpop.f32.mrb[0].mxu0
    %3789 = vdwg.mxu0
    %v3790 = vadd.f32 %v3712, %v3787
    %v3791 = vxor.u32 %v3790, 2147483648
    %v3792 = vmul.f32 %v3791, 1.442695
    %v3793 = vpow.pop %v3792
    %v3794 = vadd.f32 %v3793, 1.0
    %v3795 = vrcp.pop %v3794
    %v3796 = vmul.f32 1.0, %v3795
    %3798 = vrot.lane.b32.xlu0 %v3787, 96
    %v3799 = vpop.permute.xlu0 %3798
    %v3801 = vadd.f32 %v3714, %v3799
    %v3802 = vxor.u32 %v3801, 2147483648
    %v3803 = vmul.f32 %v3802, 1.442695
    %v3804 = vpow.pop %v3803
    %v3805 = vadd.f32 %v3804, 1.0
    %v3806 = vrcp.pop %v3805
    %v3807 = vmul.f32 1.0, %v3806
    %3808 = vrot.lane.b32.xlu0 %v3787, 64
    %v3809 = vpop.permute.xlu0 %3808
    %v3811 = vmul.f32 %v3796, %v3809
    %v3812 = vadd.f32 %v3716, %v3811
    %v3813 = vtanh.pop %v3812
    %v3814 = vsub.f32 1.0, %v3807
    %v3815 = vmul.f32 %v3814, %v3813
    %v3816 = vmul.f32 %v3807, %v3710
    %v3817 = vadd.f32 %v3815, %v3816
    %s3818 = scalar_lea.vmem [#allocation4], 12
    %v3819 = vld [vmem:[%s3818] sm:$0x3]
    %s3820 = scalar_lea.vmem [#allocation4], 28
    %v3821 = vld [vmem:[%s3820] sm:$0x3]
    %s3822 = scalar_lea.vmem [#allocation4], 44
    %v3823 = vld [vmem:[%s3822] sm:$0x3]
    %v3825 = vsel %vm129, %v3817, 0
    %3827 = vmatprep.subr.mxu0 0.0
    %3828 = vmatpush1.msra.mxu0 %v652
    %3829 = vmatprep.subr.mxu0 0.0
    %3830 = vmatpush1.msra.mxu0 %v653
    %3831 = vmatprep.subr.mxu0 0.0
    %3832 = vmatpush1.msra.mxu0 %v654
    %3833 = vmatprep.subr.mxu0 0.0
    %3834 = vmatpush1.msra.mxu0 %v655
    %3835 = vmatprep.subr.mxu0 0.0
    %3836 = vmatpush1.msra.mxu0 0.0
    %3837 = vmatprep.subr.mxu0 0.0
    %3838 = vmatpush1.msra.mxu0 0.0
    %3839 = vmatprep.subr.mxu0 0.0
    %3840 = vmatpush1.msra.mxu0 0.0
    %3841 = vmatprep.subr.mxu0 0.0
    %3842 = vmatpush1.msra.mxu0 0.0
    %3843 = vmatprep.subr.mxu0 0.0
    %3844 = vmatpush1.msra.mxu0 0.0
    %3845 = vmatprep.subr.mxu0 0.0
    %3846 = vmatpush1.msra.mxu0 0.0
    %3847 = vmatprep.subr.mxu0 0.0
    %3848 = vmatpush1.msra.mxu0 0.0
    %3849 = vmatprep.subr.mxu0 0.0
    %3850 = vmatpush1.msra.mxu0 0.0
    %3851 = vmatprep.subr.mxu0 0.0
    %3852 = vmatpush1.msra.mxu0 0.0
    %3853 = vmatprep.subr.mxu0 0.0
    %3854 = vmatpush1.msra.mxu0 0.0
    %3855 = vmatprep.subr.mxu0 0.0
    %3856 = vmatpush1.msra.mxu0 0.0
    %3857 = vmatprep.subr.mxu0 0.0
    %3858 = vmatpush1.msra.mxu0 0.0
    %3859 = vmatprep.subr.mxu0 0.0
    %3860 = vmatpush1.msra.mxu0 0.0
    %3861 = vmatprep.subr.mxu0 0.0
    %3862 = vmatpush1.msra.mxu0 0.0
    %3863 = vmatprep.subr.mxu0 0.0
    %3864 = vmatpush1.msra.mxu0 0.0
    %3865 = vmatprep.subr.mxu0 0.0
    %3866 = vmatpush1.msra.mxu0 0.0
    %3867 = vmatprep.subr.mxu0 0.0
    %3868 = vmatpush1.msra.mxu0 0.0
    %3869 = vmatprep.subr.mxu0 0.0
    %3870 = vmatpush1.msra.mxu0 0.0
    %3871 = vmatprep.subr.mxu0 0.0
    %3872 = vmatpush1.msra.mxu0 0.0
    %3873 = vmatprep.subr.mxu0 0.0
    %3874 = vmatpush1.msra.mxu0 0.0
    %3875 = vmatprep.subr.mxu0 0.0
    %3876 = vmatpush1.msra.mxu0 0.0
    %3877 = vmatprep.subr.mxu0 0.0
    %3878 = vmatpush1.msra.mxu0 0.0
    %3879 = vmatprep.subr.mxu0 0.0
    %3880 = vmatpush1.msra.mxu0 0.0
    %3881 = vmatprep.subr.mxu0 0.0
    %3882 = vmatpush1.msra.mxu0 0.0
    %3883 = vmatprep.subr.mxu0 0.0
    %3884 = vmatpush1.msra.mxu0 0.0
    %3885 = vmatprep.subr.mxu0 0.0
    %3886 = vmatpush1.msra.mxu0 0.0
    %3887 = vmatprep.subr.mxu0 0.0
    %3888 = vmatpush1.msra.mxu0 0.0
    %3889 = vmatprep.subr.mxu0 0.0
    %3890 = vmatpush1.msra.mxu0 0.0
    %3891 = vmatprep.mubr.f32.mxu0 0.0
    %3892 = vmatmul.mubr.f32.gmra.mrb[0].mxu0 %v3825
    %v3893 = vpop.f32.mrb[0].mxu0
    %v3894 = vadd.f32 %v675, %v3893
    %v3895 = vpop.f32.mrb[0].mxu0
    %3896 = vdwg.mxu0
    %v3897 = vadd.f32 %v3819, %v3894
    %v3898 = vxor.u32 %v3897, 2147483648
    %v3899 = vmul.f32 %v3898, 1.442695
    %v3900 = vpow.pop %v3899
    %v3901 = vadd.f32 %v3900, 1.0
    %v3902 = vrcp.pop %v3901
    %v3903 = vmul.f32 1.0, %v3902
    %3905 = vrot.lane.b32.xlu0 %v3894, 96
    %v3906 = vpop.permute.xlu0 %3905
    %v3908 = vadd.f32 %v3821, %v3906
    %v3909 = vxor.u32 %v3908, 2147483648
    %v3910 = vmul.f32 %v3909, 1.442695
    %v3911 = vpow.pop %v3910
    %v3912 = vadd.f32 %v3911, 1.0
    %v3913 = vrcp.pop %v3912
    %v3914 = vmul.f32 1.0, %v3913
    %3915 = vrot.lane.b32.xlu0 %v3894, 64
    %v3916 = vpop.permute.xlu0 %3915
    %v3918 = vmul.f32 %v3903, %v3916
    %v3919 = vadd.f32 %v3823, %v3918
    %v3920 = vtanh.pop %v3919
    %v3921 = vsub.f32 1.0, %v3914
    %v3922 = vmul.f32 %v3921, %v3920
    %v3923 = vmul.f32 %v3914, %v3817
    %v3924 = vadd.f32 %v3922, %v3923
    %s3925 = scalar_lea.vmem [#allocation4], 14
    %v3926 = vld [vmem:[%s3925] sm:$0x3]
    %s3927 = scalar_lea.vmem [#allocation4], 30
    %v3928 = vld [vmem:[%s3927] sm:$0x3]
    %s3929 = scalar_lea.vmem [#allocation4], 46
    %v3930 = vld [vmem:[%s3929] sm:$0x3]
    %v3932 = vsel %vm129, %v3924, 0
    %3934 = vmatprep.subr.mxu0 0.0
    %3935 = vmatpush1.msra.mxu0 %v652
    %3936 = vmatprep.subr.mxu0 0.0
    %3937 = vmatpush1.msra.mxu0 %v653
    %3938 = vmatprep.subr.mxu0 0.0
    %3939 = vmatpush1.msra.mxu0 %v654
    %3940 = vmatprep.subr.mxu0 0.0
    %3941 = vmatpush1.msra.mxu0 %v655
    %3942 = vmatprep.subr.mxu0 0.0
    %3943 = vmatpush1.msra.mxu0 0.0
    %3944 = vmatprep.subr.mxu0 0.0
    %3945 = vmatpush1.msra.mxu0 0.0
    %3946 = vmatprep.subr.mxu0 0.0
    %3947 = vmatpush1.msra.mxu0 0.0
    %3948 = vmatprep.subr.mxu0 0.0
    %3949 = vmatpush1.msra.mxu0 0.0
    %3950 = vmatprep.subr.mxu0 0.0
    %3951 = vmatpush1.msra.mxu0 0.0
    %3952 = vmatprep.subr.mxu0 0.0
    %3953 = vmatpush1.msra.mxu0 0.0
    %3954 = vmatprep.subr.mxu0 0.0
    %3955 = vmatpush1.msra.mxu0 0.0
    %3956 = vmatprep.subr.mxu0 0.0
    %3957 = vmatpush1.msra.mxu0 0.0
    %3958 = vmatprep.subr.mxu0 0.0
    %3959 = vmatpush1.msra.mxu0 0.0
    %3960 = vmatprep.subr.mxu0 0.0
    %3961 = vmatpush1.msra.mxu0 0.0
    %3962 = vmatprep.subr.mxu0 0.0
    %3963 = vmatpush1.msra.mxu0 0.0
    %3964 = vmatprep.subr.mxu0 0.0
    %3965 = vmatpush1.msra.mxu0 0.0
    %3966 = vmatprep.subr.mxu0 0.0
    %3967 = vmatpush1.msra.mxu0 0.0
    %3968 = vmatprep.subr.mxu0 0.0
    %3969 = vmatpush1.msra.mxu0 0.0
    %3970 = vmatprep.subr.mxu0 0.0
    %3971 = vmatpush1.msra.mxu0 0.0
    %3972 = vmatprep.subr.mxu0 0.0
    %3973 = vmatpush1.msra.mxu0 0.0
    %3974 = vmatprep.subr.mxu0 0.0
    %3975 = vmatpush1.msra.mxu0 0.0
    %3976 = vmatprep.subr.mxu0 0.0
    %3977 = vmatpush1.msra.mxu0 0.0
    %3978 = vmatprep.subr.mxu0 0.0
    %3979 = vmatpush1.msra.mxu0 0.0
    %3980 = vmatprep.subr.mxu0 0.0
    %3981 = vmatpush1.msra.mxu0 0.0
    %3982 = vmatprep.subr.mxu0 0.0
    %3983 = vmatpush1.msra.mxu0 0.0
    %3984 = vmatprep.subr.mxu0 0.0
    %3985 = vmatpush1.msra.mxu0 0.0
    %3986 = vmatprep.subr.mxu0 0.0
    %3987 = vmatpush1.msra.mxu0 0.0
    %3988 = vmatprep.subr.mxu0 0.0
    %3989 = vmatpush1.msra.mxu0 0.0
    %3990 = vmatprep.subr.mxu0 0.0
    %3991 = vmatpush1.msra.mxu0 0.0
    %3992 = vmatprep.subr.mxu0 0.0
    %3993 = vmatpush1.msra.mxu0 0.0
    %3994 = vmatprep.subr.mxu0 0.0
    %3995 = vmatpush1.msra.mxu0 0.0
    %3996 = vmatprep.subr.mxu0 0.0
    %3997 = vmatpush1.msra.mxu0 0.0
    %3998 = vmatprep.mubr.f32.mxu0 0.0
    %3999 = vmatmul.mubr.f32.gmra.mrb[0].mxu0 %v3932
    %v4000 = vpop.f32.mrb[0].mxu0
    %v4001 = vadd.f32 %v675, %v4000
    %v4002 = vpop.f32.mrb[0].mxu0
    %4003 = vdwg.mxu0
    %v4004 = vadd.f32 %v3926, %v4001
    %v4005 = vxor.u32 %v4004, 2147483648
    %v4006 = vmul.f32 %v4005, 1.442695
    %v4007 = vpow.pop %v4006
    %v4008 = vadd.f32 %v4007, 1.0
    %v4009 = vrcp.pop %v4008
    %v4010 = vmul.f32 1.0, %v4009
    %4012 = vrot.lane.b32.xlu0 %v4001, 96
    %v4013 = vpop.permute.xlu0 %4012
    %v4015 = vadd.f32 %v3928, %v4013
    %v4016 = vxor.u32 %v4015, 2147483648
    %v4017 = vmul.f32 %v4016, 1.442695
    %v4018 = vpow.pop %v4017
    %v4019 = vadd.f32 %v4018, 1.0
    %v4020 = vrcp.pop %v4019
    %v4021 = vmul.f32 1.0, %v4020
    %4022 = vrot.lane.b32.xlu0 %v4001, 64
    %v4023 = vpop.permute.xlu0 %4022
    %v4025 = vmul.f32 %v4010, %v4023
    %v4026 = vadd.f32 %v3930, %v4025
    %v4027 = vtanh.pop %v4026
    %v4028 = vsub.f32 1.0, %v4021
    %v4029 = vmul.f32 %v4028, %v4027
    %v4030 = vmul.f32 %v4021, %v3924
    %v4031 = vadd.f32 %v4029, %v4030
    %4032 = vst.msk [vmem:[#allocation10] sm:$0x3] %vm383, %v4031
    // Predicated region
    $region78: #{encoder_decoder_forward.1} parent=1 // pred_check
      _
    $region79: #{encoder_decoder_forward.1} parent=1 // pred_check_branch
      %4034 = sbr.rel (0) target = $region81
    $region80: #{encoder_decoder_forward.1} parent=1 // pred_region
      %s4036 = ssub.s32 32, 32
      %4037 = vsyncadd [#allocation9], %s4036
      %s4039 = sshll.u32 [#allocation8], 4
      %s4040 = int_to_ptr.vmem [resolvable:$true] %s4039
      %4042 = dma.vmem_to_hbm [thread:$0]  %s4040, 32, %s19, [#allocation9]
    $region81: #{encoder_decoder_forward.1} parent=1 // pred_fallthru
      _
    // Predicated region
    $region82: #{encoder_decoder_forward.1} parent=1 // pred_check
      _
    $region83: #{encoder_decoder_forward.1} parent=1 // pred_check_branch
      %4044 = sbr.rel (0) target = $region85
    $region84: #{encoder_decoder_forward.1} parent=1 // pred_region
      %s4046 = ssub.s32 32, 32
      %4047 = vsyncadd [#allocation11], %s4046
      %s4049 = sshll.u32 [#allocation10], 4
      %s4050 = int_to_ptr.vmem [resolvable:$true] %s4049
      %4052 = dma.vmem_to_hbm [thread:$0]  %s4050, 32, %s20, [#allocation11]
    $region85: #{encoder_decoder_forward.1} parent=1 // pred_fallthru
      _
    // Predicated region
    $region86: #{encoder_decoder_forward.1} parent=1 // pred_check
      _
    $region87: #{encoder_decoder_forward.1} parent=1 // pred_check_branch
      %4054 = sbr.rel (0) target = $region89
    $region88: #{encoder_decoder_forward.1} parent=1 // pred_region
      %4055 = dma.done [#allocation9], 32
    $region89: #{encoder_decoder_forward.1} parent=1 // pred_fallthru
      _
    // Predicated region
    $region90: #{encoder_decoder_forward.1} parent=1 // pred_check
      _
    $region91: #{encoder_decoder_forward.1} parent=1 // pred_check_branch
      %4057 = sbr.rel (0) target = $region93
    $region92: #{encoder_decoder_forward.1} parent=1 // pred_region
      %4058 = dma.done [#allocation11], 32
    $region93: #{encoder_decoder_forward.1} parent=1 // pred_fallthru
      _
    %4059 = vsyncpa [#allocation9], 1
    %4060 = vsyncpa [#allocation11], 1

</llo_original>
